<compile_context>
chip_gen: v7x
topology: tpu7x:2x2x1
jax: 0.10.0
libtpu: 0.0.40
codegen_flags: <defaults>
</compile_context>

<pallas_src>
import functools

import jax
import jax.numpy as jnp
from jax import lax
from jax.experimental import pallas as pl
from jax.experimental.pallas import tpu as pltpu


def _layernorm(x, w, b, eps=1e-5):
    # x: (C, T); w, b: (1, T) -> normalize over the last axis (PyTorch LayerNorm
    # semantics: biased variance, eps inside the sqrt), per-(c) row.
    mu = jnp.mean(x, axis=-1, keepdims=True)
    var = jnp.mean(jnp.square(x - mu), axis=-1, keepdims=True)
    return (x - mu) * lax.rsqrt(var + eps) * w + b


def _gelu_exact(x):
    # torch.nn.GELU() default ("none" approximation): 0.5*x*(1+erf(x/sqrt(2)))
    return 0.5 * x * (1.0 + lax.erf(x * 0.7071067811865476))


def _dilated_conv1d_im2col(y, w_im2col, bias, *, dilation, ksize):
    # y: (C_in, T) f32; w_im2col: (C_out, K*C_in) bf16 (tap-major); bias: (C_out, 1) f32.
    # "same" padding pad = (K-1)*dilation//2, realized by zero-padding the time axis and
    # taking K statically-offset width-T slices; taps are stacked along the contracting
    # (sublane) axis so the whole conv is a single MXU matmul with f32 accumulation.
    c_in, t_len = y.shape
    pad = (ksize - 1) * dilation // 2
    y16 = y.astype(jnp.bfloat16)
    if pad > 0:
        zpad = jnp.zeros((c_in, pad), jnp.bfloat16)
        ypad = jnp.concatenate([zpad, y16, zpad], axis=1)      # (C_in, T + 2*pad)
    else:
        ypad = y16
    taps = [lax.slice_in_dim(ypad, k * dilation, k * dilation + t_len, axis=1)
            for k in range(ksize)]
    col = jnp.concatenate(taps, axis=0)                         # (K*C_in, T) bf16
    out = jnp.dot(w_im2col, col, preferred_element_type=jnp.float32)  # (C_out, T) f32
    return out + bias


def _convblock_kernel(ksize, bblk,
                      x_ref,
                      ln1_w_ref, ln1_b_ref, w1_ref, b1_ref,
                      ln2_w_ref, ln2_b_ref, w2_ref, b2_ref,
                      out_ref):
    ln1_w, ln1_b = ln1_w_ref[...], ln1_b_ref[...]
    ln2_w, ln2_b = ln2_w_ref[...], ln2_b_ref[...]
    w1, b1 = w1_ref[...], b1_ref[...]
    w2, b2 = w2_ref[...], b2_ref[...]
    for b in range(bblk):            # static unroll over the batch rows in this block
        x = x_ref[b]                 # (C, T)
        h = _layernorm(x, ln1_w, ln1_b)
        h = _dilated_conv1d_im2col(h, w1, b1, dilation=1, ksize=ksize)
        h = _gelu_exact(h)
        h = _layernorm(h, ln2_w, ln2_b)
        h = _dilated_conv1d_im2col(h, w2, b2, dilation=4, ksize=ksize)
        h = _gelu_exact(h)
        out_ref[b] = x + h


def conv_block(x, params, *, kernel_size, block_b=None):
    """x: (B, C, T) float32.  params: dict of weights (see main); conv weights are
    PyTorch-layout (C_out, C_in, K) and are repacked to im2col layout host-side."""
    B, C, T = x.shape
    K = kernel_size
    if block_b is None:
        block_b = 2 if B % 2 == 0 else 1
    assert B % block_b == 0

    def to_im2col(w_oik):
        # (C_out, C_in, K) -> (C_out, K*C_in), tap-major, bf16 — done host-side so no
        # in-kernel reshapes/transposes are needed.
        return jnp.transpose(w_oik, (0, 2, 1)).reshape(C, K * C).astype(jnp.bfloat16)

    w1 = to_im2col(params["w1"])
    w2 = to_im2col(params["w2"])

    full = lambda shape: pl.BlockSpec(shape, lambda i: (0,) * len(shape))
    kernel = functools.partial(_convblock_kernel, K, block_b)
    # NOTE: weights/LN params are tiny at these shapes; if C scales up (v7x: 64 MiB VMEM)
    # split C_out over an extra grid axis or raise vmem_limit_bytes.
    return pl.pallas_call(
        kernel,
        out_shape=jax.ShapeDtypeStruct((B, C, T), jnp.float32),
        grid_spec=pltpu.PrefetchScalarGridSpec(
            num_scalar_prefetch=0,
            grid=(B // block_b,),
            in_specs=[
                pl.BlockSpec((block_b, C, T), lambda i: (i, 0, 0)),  # x (block of rows)
                full((1, T)), full((1, T)),     # ln1 weight, bias
                full((C, K * C)),               # conv1 weight (im2col, bf16)
                full((C, 1)),                   # conv1 bias
                full((1, T)), full((1, T)),     # ln2 weight, bias
                full((C, K * C)),               # conv2 weight (im2col, bf16)
                full((C, 1)),                   # conv2 bias
            ],
            out_specs=pl.BlockSpec((block_b, C, T), lambda i: (i, 0, 0)),
        ),
        compiler_params=pltpu.CompilerParams(
            dimension_semantics=("parallel",),
        ),
    )(x,
      params["ln1_w"], params["ln1_b"], w1, params["b1"],
      params["ln2_w"], params["ln2_b"], w2, params["b2"])


def conv_block_reference(x, params, *, kernel_size):
    """Pure-JAX (f32) reference mirroring the PyTorch forward, for correctness checking."""
    def ln(h, w, b, eps=1e-5):
        mu = jnp.mean(h, axis=-1, keepdims=True)
        var = jnp.mean(jnp.square(h - mu), axis=-1, keepdims=True)
        return (h - mu) / jnp.sqrt(var + eps) * w[0] + b[0]

    def conv(h, w_oik, bias, dilation):
        pad = (kernel_size - 1) * dilation // 2
        out = lax.conv_general_dilated(
            h, w_oik, window_strides=(1,), padding=[(pad, pad)],
            rhs_dilation=(dilation,), dimension_numbers=("NCH", "OIH", "NCH"))
        return out + bias[None, :, :]

    def gelu(h):
        return 0.5 * h * (1.0 + lax.erf(h * 0.7071067811865476))

    h = ln(x, params["ln1_w"], params["ln1_b"])
    h = gelu(conv(h, params["w1"], params["b1"], 1))
    h = ln(h, params["ln2_w"], params["ln2_b"])
    h = gelu(conv(h, params["w2"], params["b2"], 4))
    return x + h


if __name__ == "__main__":
    B, C, K = 4, 128, 3
    T = C  # the module's LayerNorm-over-last-axis requires T == channels

    key = jax.random.PRNGKey(0)
    kx, k1, k2, k3, k4, k5, k6, k7, k8 = jax.random.split(key, 9)

    x = jax.random.normal(kx, (B, C, T), dtype=jnp.float32)

    scale = 1.0 / jnp.sqrt(jnp.float32(C * K))
    params = {
        "ln1_w": 1.0 + 0.1 * jax.random.normal(k5, (1, T), jnp.float32),
        "ln1_b": 0.1 * jax.random.normal(k6, (1, T), jnp.float32),
        "w1": jax.random.normal(k1, (C, C, K), jnp.float32) * scale,   # (C_out, C_in, K)
        "b1": jax.random.normal(k2, (C, 1), jnp.float32) * 0.1,
        "ln2_w": 1.0 + 0.1 * jax.random.normal(k7, (1, T), jnp.float32),
        "ln2_b": 0.1 * jax.random.normal(k8, (1, T), jnp.float32),
        "w2": jax.random.normal(k3, (C, C, K), jnp.float32) * scale,
        "b2": jax.random.normal(k4, (C, 1), jnp.float32) * 0.1,
    }

    out = jax.block_until_ready(conv_block(x, params, kernel_size=K))
    ref = conv_block_reference(x, params, kernel_size=K)

    assert out.shape == (B, C, T)
    err = float(jnp.max(jnp.abs(out - ref)))
    # bf16 MXU operands with f32 accumulation vs. an all-f32 reference.
    assert err < 5e-2, err

    print("KERNEL_OK")
</pallas_src>

<mosaic_0001>
module attributes {stable_mosaic.version = 11 : i64} {
  func.func @_convblock_kernel(%arg0: i32, %arg1: memref<2x128x128xf32, #tpu.memory_space<vmem>>, %arg2: memref<1x128xf32, #tpu.memory_space<vmem>>, %arg3: memref<1x128xf32, #tpu.memory_space<vmem>>, %arg4: memref<128x384xbf16, #tpu.memory_space<vmem>>, %arg5: memref<128x1xf32, #tpu.memory_space<vmem>>, %arg6: memref<1x128xf32, #tpu.memory_space<vmem>>, %arg7: memref<1x128xf32, #tpu.memory_space<vmem>>, %arg8: memref<128x384xbf16, #tpu.memory_space<vmem>>, %arg9: memref<128x1xf32, #tpu.memory_space<vmem>>, %arg10: memref<2x128x128xf32, #tpu.memory_space<vmem>>) attributes {dimension_semantics = [#tpu.dimension_semantics<parallel>], iteration_bounds = array<i64: 2>, scalar_prefetch = 0 : i64, scratch_operands = 0 : i64, tpu.core_type = #tpu.core_type<tc>, window_params = [{transform_indices = @transform_0, window_bounds = array<i64: 2, 128, 128>}, {pipeline_mode = #tpu.pipeline_mode<synchronous>, transform_indices = @transform_1, window_bounds = array<i64: 1, 128>}, {pipeline_mode = #tpu.pipeline_mode<synchronous>, transform_indices = @transform_2, window_bounds = array<i64: 1, 128>}, {pipeline_mode = #tpu.pipeline_mode<synchronous>, transform_indices = @transform_3, window_bounds = array<i64: 128, 384>}, {pipeline_mode = #tpu.pipeline_mode<synchronous>, transform_indices = @transform_4, window_bounds = array<i64: 128, 1>}, {pipeline_mode = #tpu.pipeline_mode<synchronous>, transform_indices = @transform_5, window_bounds = array<i64: 1, 128>}, {pipeline_mode = #tpu.pipeline_mode<synchronous>, transform_indices = @transform_6, window_bounds = array<i64: 1, 128>}, {pipeline_mode = #tpu.pipeline_mode<synchronous>, transform_indices = @transform_7, window_bounds = array<i64: 128, 384>}, {pipeline_mode = #tpu.pipeline_mode<synchronous>, transform_indices = @transform_8, window_bounds = array<i64: 128, 1>}, {transform_indices = @transform_9, window_bounds = array<i64: 2, 128, 128>}]} {
    %c0 = arith.constant 0 : index
    %c0_0 = arith.constant 0 : index
    %0 = vector.load %arg2[%c0, %c0_0] : memref<1x128xf32, #tpu.memory_space<vmem>>, vector<1x128xf32>
    %c0_1 = arith.constant 0 : index
    %c0_2 = arith.constant 0 : index
    %1 = vector.load %arg3[%c0_1, %c0_2] : memref<1x128xf32, #tpu.memory_space<vmem>>, vector<1x128xf32>
    %c0_3 = arith.constant 0 : index
    %c0_4 = arith.constant 0 : index
    %2 = vector.load %arg6[%c0_3, %c0_4] : memref<1x128xf32, #tpu.memory_space<vmem>>, vector<1x128xf32>
    %c0_5 = arith.constant 0 : index
    %c0_6 = arith.constant 0 : index
    %3 = vector.load %arg7[%c0_5, %c0_6] : memref<1x128xf32, #tpu.memory_space<vmem>>, vector<1x128xf32>
    %c0_7 = arith.constant 0 : index
    %c0_8 = arith.constant 0 : index
    %4 = vector.load %arg4[%c0_7, %c0_8] : memref<128x384xbf16, #tpu.memory_space<vmem>>, vector<128x384xbf16>
    %c0_9 = arith.constant 0 : index
    %c0_10 = arith.constant 0 : index
    %5 = vector.load %arg5[%c0_9, %c0_10] : memref<128x1xf32, #tpu.memory_space<vmem>>, vector<128x1xf32>
    %c0_11 = arith.constant 0 : index
    %c0_12 = arith.constant 0 : index
    %6 = vector.load %arg8[%c0_11, %c0_12] : memref<128x384xbf16, #tpu.memory_space<vmem>>, vector<128x384xbf16>
    %c0_13 = arith.constant 0 : index
    %c0_14 = arith.constant 0 : index
    %7 = vector.load %arg9[%c0_13, %c0_14] : memref<128x1xf32, #tpu.memory_space<vmem>>, vector<128x1xf32>
    %c0_15 = arith.constant 0 : index
    %c0_16 = arith.constant 0 : index
    %c0_17 = arith.constant 0 : index
    %8 = vector.load %arg1[%c0_15, %c0_16, %c0_17] : memref<2x128x128xf32, #tpu.memory_space<vmem>>, vector<1x128x128xf32>
    %9 = vector.shape_cast %8 : vector<1x128x128xf32> to vector<128x128xf32>
    %cst = arith.constant dense<0.000000e+00> : vector<128xf32>
    %10 = vector.multi_reduction <add>, %9, %cst [1] : vector<128x128xf32> to vector<128xf32>
    %11 = vector.shape_cast %10 : vector<128xf32> to vector<128x1xf32>
    %cst_18 = arith.constant 1.280000e+02 : f32
    %12 = vector.broadcast %cst_18 : f32 to vector<128x1xf32>
    %13 = arith.divf %11, %12 : vector<128x1xf32>
    %14 = vector.broadcast %13 : vector<128x1xf32> to vector<128x128xf32>
    %15 = arith.subf %9, %14 : vector<128x128xf32>
    %16 = arith.mulf %15, %15 : vector<128x128xf32>
    %cst_19 = arith.constant dense<0.000000e+00> : vector<128xf32>
    %17 = vector.multi_reduction <add>, %16, %cst_19 [1] : vector<128x128xf32> to vector<128xf32>
    %18 = vector.shape_cast %17 : vector<128xf32> to vector<128x1xf32>
    %cst_20 = arith.constant 1.280000e+02 : f32
    %19 = vector.broadcast %cst_20 : f32 to vector<128x1xf32>
    %20 = arith.divf %18, %19 : vector<128x1xf32>
    %21 = vector.broadcast %13 : vector<128x1xf32> to vector<128x128xf32>
    %22 = arith.subf %9, %21 : vector<128x128xf32>
    %cst_21 = arith.constant 9.99999974E-6 : f32
    %23 = vector.broadcast %cst_21 : f32 to vector<128x1xf32>
    %24 = arith.addf %20, %23 : vector<128x1xf32>
    %25 = math.rsqrt %24 : vector<128x1xf32>
    %26 = vector.broadcast %25 : vector<128x1xf32> to vector<128x128xf32>
    %27 = arith.mulf %22, %26 : vector<128x128xf32>
    %28 = vector.broadcast %0 : vector<1x128xf32> to vector<128x128xf32>
    %29 = arith.mulf %27, %28 : vector<128x128xf32>
    %30 = vector.broadcast %1 : vector<1x128xf32> to vector<128x128xf32>
    %31 = arith.addf %29, %30 : vector<128x128xf32>
    %32 = arith.truncf %31 : vector<128x128xf32> to vector<128x128xbf16>
    %cst_22 = arith.constant 0.000000e+00 : bf16
    %33 = vector.broadcast %cst_22 : bf16 to vector<128x1xbf16>
    %34 = tpu.concatenate %33, %32, %33 in 1 : vector<128x1xbf16>, vector<128x128xbf16>, vector<128x1xbf16> -> vector<128x130xbf16>
    %35 = vector.extract_strided_slice %34 {offsets = [0, 0], sizes = [128, 128], strides = [1, 1]} : vector<128x130xbf16> to vector<128x128xbf16>
    %36 = vector.extract_strided_slice %34 {offsets = [0, 1], sizes = [128, 128], strides = [1, 1]} : vector<128x130xbf16> to vector<128x128xbf16>
    %37 = vector.extract_strided_slice %34 {offsets = [0, 2], sizes = [128, 128], strides = [1, 1]} : vector<128x130xbf16> to vector<128x128xbf16>
    %38 = tpu.concatenate %35, %36, %37 in 0 : vector<128x128xbf16>, vector<128x128xbf16>, vector<128x128xbf16> -> vector<384x128xbf16>
    %cst_23 = arith.constant dense<0.000000e+00> : vector<128x128xf32>
    %39 = tpu.matmul %4, %38, %cst_23 {dimension_numbers = #tpu.dot_dimension_numbers<[1], [0], [0], [1], [0, 0, 1, 1], [], []>} : vector<128x384xbf16>, vector<384x128xbf16>, vector<128x128xf32> -> vector<128x128xf32>
    %40 = vector.broadcast %5 : vector<128x1xf32> to vector<128x128xf32>
    %41 = arith.addf %39, %40 : vector<128x128xf32>
    %cst_24 = arith.constant 5.000000e-01 : f32
    %42 = vector.broadcast %cst_24 : f32 to vector<128x128xf32>
    %43 = arith.mulf %42, %41 : vector<128x128xf32>
    %cst_25 = arith.constant 0.707106769 : f32
    %44 = vector.broadcast %cst_25 : f32 to vector<128x128xf32>
    %45 = arith.mulf %41, %44 : vector<128x128xf32>
    %46 = math.erf %45 : vector<128x128xf32>
    %cst_26 = arith.constant 1.000000e+00 : f32
    %47 = vector.broadcast %cst_26 : f32 to vector<128x128xf32>
    %48 = arith.addf %47, %46 : vector<128x128xf32>
    %49 = arith.mulf %43, %48 : vector<128x128xf32>
    %cst_27 = arith.constant dense<0.000000e+00> : vector<128xf32>
    %50 = vector.multi_reduction <add>, %49, %cst_27 [1] : vector<128x128xf32> to vector<128xf32>
    %51 = vector.shape_cast %50 : vector<128xf32> to vector<128x1xf32>
    %cst_28 = arith.constant 1.280000e+02 : f32
    %52 = vector.broadcast %cst_28 : f32 to vector<128x1xf32>
    %53 = arith.divf %51, %52 : vector<128x1xf32>
    %54 = vector.broadcast %53 : vector<128x1xf32> to vector<128x128xf32>
    %55 = arith.subf %49, %54 : vector<128x128xf32>
    %56 = arith.mulf %55, %55 : vector<128x128xf32>
    %cst_29 = arith.constant dense<0.000000e+00> : vector<128xf32>
    %57 = vector.multi_reduction <add>, %56, %cst_29 [1] : vector<128x128xf32> to vector<128xf32>
    %58 = vector.shape_cast %57 : vector<128xf32> to vector<128x1xf32>
    %cst_30 = arith.constant 1.280000e+02 : f32
    %59 = vector.broadcast %cst_30 : f32 to vector<128x1xf32>
    %60 = arith.divf %58, %59 : vector<128x1xf32>
    %61 = vector.broadcast %53 : vector<128x1xf32> to vector<128x128xf32>
    %62 = arith.subf %49, %61 : vector<128x128xf32>
    %cst_31 = arith.constant 9.99999974E-6 : f32
    %63 = vector.broadcast %cst_31 : f32 to vector<128x1xf32>
    %64 = arith.addf %60, %63 : vector<128x1xf32>
    %65 = math.rsqrt %64 : vector<128x1xf32>
    %66 = vector.broadcast %65 : vector<128x1xf32> to vector<128x128xf32>
    %67 = arith.mulf %62, %66 : vector<128x128xf32>
    %68 = vector.broadcast %2 : vector<1x128xf32> to vector<128x128xf32>
    %69 = arith.mulf %67, %68 : vector<128x128xf32>
    %70 = vector.broadcast %3 : vector<1x128xf32> to vector<128x128xf32>
    %71 = arith.addf %69, %70 : vector<128x128xf32>
    %72 = arith.truncf %71 : vector<128x128xf32> to vector<128x128xbf16>
    %cst_32 = arith.constant 0.000000e+00 : bf16
    %73 = vector.broadcast %cst_32 : bf16 to vector<128x4xbf16>
    %74 = tpu.concatenate %73, %72, %73 in 1 : vector<128x4xbf16>, vector<128x128xbf16>, vector<128x4xbf16> -> vector<128x136xbf16>
    %75 = vector.extract_strided_slice %74 {offsets = [0, 0], sizes = [128, 128], strides = [1, 1]} : vector<128x136xbf16> to vector<128x128xbf16>
    %76 = vector.extract_strided_slice %74 {offsets = [0, 4], sizes = [128, 128], strides = [1, 1]} : vector<128x136xbf16> to vector<128x128xbf16>
    %77 = vector.extract_strided_slice %74 {offsets = [0, 8], sizes = [128, 128], strides = [1, 1]} : vector<128x136xbf16> to vector<128x128xbf16>
    %78 = tpu.concatenate %75, %76, %77 in 0 : vector<128x128xbf16>, vector<128x128xbf16>, vector<128x128xbf16> -> vector<384x128xbf16>
    %cst_33 = arith.constant dense<0.000000e+00> : vector<128x128xf32>
    %79 = tpu.matmul %6, %78, %cst_33 {dimension_numbers = #tpu.dot_dimension_numbers<[1], [0], [0], [1], [0, 0, 1, 1], [], []>} : vector<128x384xbf16>, vector<384x128xbf16>, vector<128x128xf32> -> vector<128x128xf32>
    %80 = vector.broadcast %7 : vector<128x1xf32> to vector<128x128xf32>
    %81 = arith.addf %79, %80 : vector<128x128xf32>
    %cst_34 = arith.constant 5.000000e-01 : f32
    %82 = vector.broadcast %cst_34 : f32 to vector<128x128xf32>
    %83 = arith.mulf %82, %81 : vector<128x128xf32>
    %cst_35 = arith.constant 0.707106769 : f32
    %84 = vector.broadcast %cst_35 : f32 to vector<128x128xf32>
    %85 = arith.mulf %81, %84 : vector<128x128xf32>
    %86 = math.erf %85 : vector<128x128xf32>
    %cst_36 = arith.constant 1.000000e+00 : f32
    %87 = vector.broadcast %cst_36 : f32 to vector<128x128xf32>
    %88 = arith.addf %87, %86 : vector<128x128xf32>
    %89 = arith.mulf %83, %88 : vector<128x128xf32>
    %90 = arith.addf %9, %89 : vector<128x128xf32>
    %c0_37 = arith.constant 0 : index
    %c0_38 = arith.constant 0 : index
    %c0_39 = arith.constant 0 : index
    %91 = vector.load %arg10[%c0_37, %c0_38, %c0_39] : memref<2x128x128xf32, #tpu.memory_space<vmem>>, vector<1x128x128xf32>
    %92 = vector.shape_cast %91 : vector<1x128x128xf32> to vector<128x128xf32>
    %93 = vector.shape_cast %90 : vector<128x128xf32> to vector<1x128x128xf32>
    tpu.vector_store %arg10[%c0_37, %c0_38, %c0_39], %93 {strides = array<i32>} : memref<2x128x128xf32, #tpu.memory_space<vmem>>, vector<1x128x128xf32>,
    %c1 = arith.constant 1 : index
    %c0_40 = arith.constant 0 : index
    %c0_41 = arith.constant 0 : index
    %94 = vector.load %arg1[%c1, %c0_40, %c0_41] : memref<2x128x128xf32, #tpu.memory_space<vmem>>, vector<1x128x128xf32>
    %95 = vector.shape_cast %94 : vector<1x128x128xf32> to vector<128x128xf32>
    %cst_42 = arith.constant dense<0.000000e+00> : vector<128xf32>
    %96 = vector.multi_reduction <add>, %95, %cst_42 [1] : vector<128x128xf32> to vector<128xf32>
    %97 = vector.shape_cast %96 : vector<128xf32> to vector<128x1xf32>
    %cst_43 = arith.constant 1.280000e+02 : f32
    %98 = vector.broadcast %cst_43 : f32 to vector<128x1xf32>
    %99 = arith.divf %97, %98 : vector<128x1xf32>
    %100 = vector.broadcast %99 : vector<128x1xf32> to vector<128x128xf32>
    %101 = arith.subf %95, %100 : vector<128x128xf32>
    %102 = arith.mulf %101, %101 : vector<128x128xf32>
    %cst_44 = arith.constant dense<0.000000e+00> : vector<128xf32>
    %103 = vector.multi_reduction <add>, %102, %cst_44 [1] : vector<128x128xf32> to vector<128xf32>
    %104 = vector.shape_cast %103 : vector<128xf32> to vector<128x1xf32>
    %cst_45 = arith.constant 1.280000e+02 : f32
    %105 = vector.broadcast %cst_45 : f32 to vector<128x1xf32>
    %106 = arith.divf %104, %105 : vector<128x1xf32>
    %107 = vector.broadcast %99 : vector<128x1xf32> to vector<128x128xf32>
    %108 = arith.subf %95, %107 : vector<128x128xf32>
    %cst_46 = arith.constant 9.99999974E-6 : f32
    %109 = vector.broadcast %cst_46 : f32 to vector<128x1xf32>
    %110 = arith.addf %106, %109 : vector<128x1xf32>
    %111 = math.rsqrt %110 : vector<128x1xf32>
    %112 = vector.broadcast %111 : vector<128x1xf32> to vector<128x128xf32>
    %113 = arith.mulf %108, %112 : vector<128x128xf32>
    %114 = vector.broadcast %0 : vector<1x128xf32> to vector<128x128xf32>
    %115 = arith.mulf %113, %114 : vector<128x128xf32>
    %116 = vector.broadcast %1 : vector<1x128xf32> to vector<128x128xf32>
    %117 = arith.addf %115, %116 : vector<128x128xf32>
    %118 = arith.truncf %117 : vector<128x128xf32> to vector<128x128xbf16>
    %cst_47 = arith.constant 0.000000e+00 : bf16
    %119 = vector.broadcast %cst_47 : bf16 to vector<128x1xbf16>
    %120 = tpu.concatenate %119, %118, %119 in 1 : vector<128x1xbf16>, vector<128x128xbf16>, vector<128x1xbf16> -> vector<128x130xbf16>
    %121 = vector.extract_strided_slice %120 {offsets = [0, 0], sizes = [128, 128], strides = [1, 1]} : vector<128x130xbf16> to vector<128x128xbf16>
    %122 = vector.extract_strided_slice %120 {offsets = [0, 1], sizes = [128, 128], strides = [1, 1]} : vector<128x130xbf16> to vector<128x128xbf16>
    %123 = vector.extract_strided_slice %120 {offsets = [0, 2], sizes = [128, 128], strides = [1, 1]} : vector<128x130xbf16> to vector<128x128xbf16>
    %124 = tpu.concatenate %121, %122, %123 in 0 : vector<128x128xbf16>, vector<128x128xbf16>, vector<128x128xbf16> -> vector<384x128xbf16>
    %cst_48 = arith.constant dense<0.000000e+00> : vector<128x128xf32>
    %125 = tpu.matmul %4, %124, %cst_48 {dimension_numbers = #tpu.dot_dimension_numbers<[1], [0], [0], [1], [0, 0, 1, 1], [], []>} : vector<128x384xbf16>, vector<384x128xbf16>, vector<128x128xf32> -> vector<128x128xf32>
    %126 = vector.broadcast %5 : vector<128x1xf32> to vector<128x128xf32>
    %127 = arith.addf %125, %126 : vector<128x128xf32>
    %cst_49 = arith.constant 5.000000e-01 : f32
    %128 = vector.broadcast %cst_49 : f32 to vector<128x128xf32>
    %129 = arith.mulf %128, %127 : vector<128x128xf32>
    %cst_50 = arith.constant 0.707106769 : f32
    %130 = vector.broadcast %cst_50 : f32 to vector<128x128xf32>
    %131 = arith.mulf %127, %130 : vector<128x128xf32>
    %132 = math.erf %131 : vector<128x128xf32>
    %cst_51 = arith.constant 1.000000e+00 : f32
    %133 = vector.broadcast %cst_51 : f32 to vector<128x128xf32>
    %134 = arith.addf %133, %132 : vector<128x128xf32>
    %135 = arith.mulf %129, %134 : vector<128x128xf32>
    %cst_52 = arith.constant dense<0.000000e+00> : vector<128xf32>
    %136 = vector.multi_reduction <add>, %135, %cst_52 [1] : vector<128x128xf32> to vector<128xf32>
    %137 = vector.shape_cast %136 : vector<128xf32> to vector<128x1xf32>
    %cst_53 = arith.constant 1.280000e+02 : f32
    %138 = vector.broadcast %cst_53 : f32 to vector<128x1xf32>
    %139 = arith.divf %137, %138 : vector<128x1xf32>
    %140 = vector.broadcast %139 : vector<128x1xf32> to vector<128x128xf32>
    %141 = arith.subf %135, %140 : vector<128x128xf32>
    %142 = arith.mulf %141, %141 : vector<128x128xf32>
    %cst_54 = arith.constant dense<0.000000e+00> : vector<128xf32>
    %143 = vector.multi_reduction <add>, %142, %cst_54 [1] : vector<128x128xf32> to vector<128xf32>
    %144 = vector.shape_cast %143 : vector<128xf32> to vector<128x1xf32>
    %cst_55 = arith.constant 1.280000e+02 : f32
    %145 = vector.broadcast %cst_55 : f32 to vector<128x1xf32>
    %146 = arith.divf %144, %145 : vector<128x1xf32>
    %147 = vector.broadcast %139 : vector<128x1xf32> to vector<128x128xf32>
    %148 = arith.subf %135, %147 : vector<128x128xf32>
    %cst_56 = arith.constant 9.99999974E-6 : f32
    %149 = vector.broadcast %cst_56 : f32 to vector<128x1xf32>
    %150 = arith.addf %146, %149 : vector<128x1xf32>
    %151 = math.rsqrt %150 : vector<128x1xf32>
    %152 = vector.broadcast %151 : vector<128x1xf32> to vector<128x128xf32>
    %153 = arith.mulf %148, %152 : vector<128x128xf32>
    %154 = vector.broadcast %2 : vector<1x128xf32> to vector<128x128xf32>
    %155 = arith.mulf %153, %154 : vector<128x128xf32>
    %156 = vector.broadcast %3 : vector<1x128xf32> to vector<128x128xf32>
    %157 = arith.addf %155, %156 : vector<128x128xf32>
    %158 = arith.truncf %157 : vector<128x128xf32> to vector<128x128xbf16>
    %cst_57 = arith.constant 0.000000e+00 : bf16
    %159 = vector.broadcast %cst_57 : bf16 to vector<128x4xbf16>
    %160 = tpu.concatenate %159, %158, %159 in 1 : vector<128x4xbf16>, vector<128x128xbf16>, vector<128x4xbf16> -> vector<128x136xbf16>
    %161 = vector.extract_strided_slice %160 {offsets = [0, 0], sizes = [128, 128], strides = [1, 1]} : vector<128x136xbf16> to vector<128x128xbf16>
    %162 = vector.extract_strided_slice %160 {offsets = [0, 4], sizes = [128, 128], strides = [1, 1]} : vector<128x136xbf16> to vector<128x128xbf16>
    %163 = vector.extract_strided_slice %160 {offsets = [0, 8], sizes = [128, 128], strides = [1, 1]} : vector<128x136xbf16> to vector<128x128xbf16>
    %164 = tpu.concatenate %161, %162, %163 in 0 : vector<128x128xbf16>, vector<128x128xbf16>, vector<128x128xbf16> -> vector<384x128xbf16>
    %cst_58 = arith.constant dense<0.000000e+00> : vector<128x128xf32>
    %165 = tpu.matmul %6, %164, %cst_58 {dimension_numbers = #tpu.dot_dimension_numbers<[1], [0], [0], [1], [0, 0, 1, 1], [], []>} : vector<128x384xbf16>, vector<384x128xbf16>, vector<128x128xf32> -> vector<128x128xf32>
    %166 = vector.broadcast %7 : vector<128x1xf32> to vector<128x128xf32>
    %167 = arith.addf %165, %166 : vector<128x128xf32>
    %cst_59 = arith.constant 5.000000e-01 : f32
    %168 = vector.broadcast %cst_59 : f32 to vector<128x128xf32>
    %169 = arith.mulf %168, %167 : vector<128x128xf32>
    %cst_60 = arith.constant 0.707106769 : f32
    %170 = vector.broadcast %cst_60 : f32 to vector<128x128xf32>
    %171 = arith.mulf %167, %170 : vector<128x128xf32>
    %172 = math.erf %171 : vector<128x128xf32>
    %cst_61 = arith.constant 1.000000e+00 : f32
    %173 = vector.broadcast %cst_61 : f32 to vector<128x128xf32>
    %174 = arith.addf %173, %172 : vector<128x128xf32>
    %175 = arith.mulf %169, %174 : vector<128x128xf32>
    %176 = arith.addf %95, %175 : vector<128x128xf32>
    %c1_62 = arith.constant 1 : index
    %c0_63 = arith.constant 0 : index
    %c0_64 = arith.constant 0 : index
    %177 = vector.load %arg10[%c1_62, %c0_63, %c0_64] : memref<2x128x128xf32, #tpu.memory_space<vmem>>, vector<1x128x128xf32>
    %178 = vector.shape_cast %177 : vector<1x128x128xf32> to vector<128x128xf32>
    %179 = vector.shape_cast %176 : vector<128x128xf32> to vector<1x128x128xf32>
    tpu.vector_store %arg10[%c1_62, %c0_63, %c0_64], %179 {strides = array<i32>} : memref<2x128x128xf32, #tpu.memory_space<vmem>>, vector<1x128x128xf32>,
    return
  }
  func.func @transform_0(%arg0: i32) -> (i32, i32, i32) {
    %c0_i32 = arith.constant 0 : i32
    %c0_i32_0 = arith.constant 0 : i32
    %c0_i32_1 = arith.constant 0 : i32
    return %arg0, %c0_i32, %c0_i32_0 : i32, i32, i32
  }
  func.func @transform_1(%arg0: i32) -> (i32, i32) {
    %c0_i32 = arith.constant 0 : i32
    %c0_i32_0 = arith.constant 0 : i32
    %c0_i32_1 = arith.constant 0 : i32
    return %c0_i32, %c0_i32_0 : i32, i32
  }
  func.func @transform_2(%arg0: i32) -> (i32, i32) {
    %c0_i32 = arith.constant 0 : i32
    %c0_i32_0 = arith.constant 0 : i32
    %c0_i32_1 = arith.constant 0 : i32
    return %c0_i32, %c0_i32_0 : i32, i32
  }
  func.func @transform_3(%arg0: i32) -> (i32, i32) {
    %c0_i32 = arith.constant 0 : i32
    %c0_i32_0 = arith.constant 0 : i32
    %c0_i32_1 = arith.constant 0 : i32
    return %c0_i32, %c0_i32_0 : i32, i32
  }
  func.func @transform_4(%arg0: i32) -> (i32, i32) {
    %c0_i32 = arith.constant 0 : i32
    %c0_i32_0 = arith.constant 0 : i32
    %c0_i32_1 = arith.constant 0 : i32
    return %c0_i32, %c0_i32_0 : i32, i32
  }
  func.func @transform_5(%arg0: i32) -> (i32, i32) {
    %c0_i32 = arith.constant 0 : i32
    %c0_i32_0 = arith.constant 0 : i32
    %c0_i32_1 = arith.constant 0 : i32
    return %c0_i32, %c0_i32_0 : i32, i32
  }
  func.func @transform_6(%arg0: i32) -> (i32, i32) {
    %c0_i32 = arith.constant 0 : i32
    %c0_i32_0 = arith.constant 0 : i32
    %c0_i32_1 = arith.constant 0 : i32
    return %c0_i32, %c0_i32_0 : i32, i32
  }
  func.func @transform_7(%arg0: i32) -> (i32, i32) {
    %c0_i32 = arith.constant 0 : i32
    %c0_i32_0 = arith.constant 0 : i32
    %c0_i32_1 = arith.constant 0 : i32
    return %c0_i32, %c0_i32_0 : i32, i32
  }
  func.func @transform_8(%arg0: i32) -> (i32, i32) {
    %c0_i32 = arith.constant 0 : i32
    %c0_i32_0 = arith.constant 0 : i32
    %c0_i32_1 = arith.constant 0 : i32
    return %c0_i32, %c0_i32_0 : i32, i32
  }
  func.func @transform_9(%arg0: i32) -> (i32, i32, i32) {
    %c0_i32 = arith.constant 0 : i32
    %c0_i32_0 = arith.constant 0 : i32
    %c0_i32_1 = arith.constant 0 : i32
    return %arg0, %c0_i32, %c0_i32_0 : i32, i32, i32
  }
}

</mosaic_0001>

<llo_original>
// kernel: tpu_custom_call.1
$region0: #{tpu_custom_call.1}
  #allocation0 [shape = 'u32[]', space=smem, size = 0x4, offset = 0x4, fixed_abs, tag = 'smem constant byte address 0x4 - core index']
  #allocation1 [shape = 'u32[144,128]{1,0:T(1,128)}', space=vmem, size = 0x12000, scoped, tag = 'internal scratch']
  %s0 = inlined_call_operand.hbm [shape: f32[4,128,128], index: 0, kind: input, shape index: {}]
  %s1 = inlined_call_operand.vmem [shape: f32[1,128], index: 1, kind: input, shape index: {}]
  %s2 = inlined_call_operand.vmem [shape: f32[1,128], index: 2, kind: input, shape index: {}]
  %s3 = inlined_call_operand.vmem [shape: bf16[128,384], index: 3, kind: input, shape index: {}]
  %s4 = inlined_call_operand.vmem [shape: f32[128,1], index: 4, kind: input, shape index: {}]
  %s5 = inlined_call_operand.vmem [shape: f32[1,128], index: 5, kind: input, shape index: {}]
  %s6 = inlined_call_operand.vmem [shape: f32[1,128], index: 6, kind: input, shape index: {}]
  %s7 = inlined_call_operand.hbm [shape: bf16[128,384], index: 7, kind: input, shape index: {}]
  %s8 = inlined_call_operand.vmem [shape: f32[128,1], index: 8, kind: input, shape index: {}]
  %s9 = inlined_call_operand.hbm [shape: f32[4,128,128], index: 9, kind: output, shape index: {}]
  %s10 = sld [smem:[#allocation0]]
  $region77: #{tpu_custom_call.1} parent=0
    _
  %s12 = ssub.s32 1, %s10
  %s13 = scalar_select 0, %s12, %s10
  $region1: #{tpu_custom_call.1} parent=0
    #allocation2 [shape = 'u8[262144]{0}', space=vmem, size = 0x40000, scoped, tag = 'input window, operand 0']
    #allocation3 [shape = 's32[2]{0}', space=sflag, size = 0x8, scoped, tag = 'scoped memory for tpu_custom_call.1']
    #allocation4 [shape = 's32[2]{0}', space=sflag, size = 0x8, scoped, tag = 'scoped memory for tpu_custom_call.1']
    #allocation5 [shape = 'u8[98304]{0}', space=vmem, size = 0x18000, scoped, tag = 'input window, operand 7, single buffered']
    #allocation6 [shape = 's32[1]{0}', space=sflag, size = 0x4, scoped, tag = 'scoped memory for tpu_custom_call.1']
    #allocation7 [shape = 'u8[262144]{0}', space=vmem, size = 0x40000, scoped, tag = 'output window, operand 0']
    %14 = vsyncpa [#allocation3], 0
    %s15 = scalar_lea.sflag [#allocation3], 1
    %16 = vsyncpa %s15, 0
    %17 = vsyncpa [#allocation6], 0
    %18 = vsyncpa [#allocation4], 0
    %s19 = scalar_lea.sflag [#allocation4], 1
    %20 = vsyncpa %s19, 0
    loop: start=0, step=1, limit=4
    $region2: #{tpu_custom_call.1} parent=1 // loop_pre_header
      _
    $region3: #{tpu_custom_call.1} parent=1 // loop_header
      %s22 = sphi 0, %s26
      %p23 = scmp.ge.s32.totalorder %s22, 4
      %s32 = sphi 0, %s34
      %s35 = sphi 0, %s32
      %s36 = sphi 0, %s35
      %s52 = sphi 0, %s36
      %s56 = sphi 0, %s56
      %s58 = sphi 0, %s56
      %s59 = sphi 0, %s58
      %s73 = sphi 0, %s59
      %s77 = sphi 0, %s77
      %s79 = sphi 0, %s77
      %s80 = sphi 0, %s79
      %s94 = sphi 0, %s80
      %s98 = sphi 0, %s98
      %s100 = sphi 0, %s98
      %s101 = sphi 0, %s100
      %s115 = sphi 0, %s101
      %s119 = sphi 0, %s119
      %s121 = sphi 0, %s119
      %s122 = sphi 0, %s121
      %s136 = sphi 0, %s122
      %s140 = sphi 0, %s140
      %s142 = sphi 0, %s140
      %s143 = sphi 0, %s142
      %s157 = sphi 0, %s143
      %s161 = sphi 0, %s161
      %s163 = sphi 0, %s161
      %s164 = sphi 0, %s163
      %s178 = sphi 0, %s164
      %s182 = sphi 0, %s182
      %s184 = sphi 0, %s182
      %s185 = sphi 0, %s184
      %s199 = sphi 0, %s185
      %s203 = sphi 0, %s203
      %s205 = sphi 0, %s203
      %s206 = sphi 0, %s205
      %s220 = sphi 0, %s206
      %s226 = sphi 0, %s228
      %s229 = sphi 0, %s226
      %s230 = sphi 0, %s229
      %s246 = sphi 0, %s230
    $region4: #{tpu_custom_call.1} parent=1 // loop_header_branch
      %25 = sbr.rel (%p23) target = $region8
    $region5: #{tpu_custom_call.1} parent=1 // loop_body
      %s27 = ssub.s32 %s22, 1
      %s28 = ssub.s32 %s22, 2
      %s29 = sadd.s32 %s22, 1
      %s30 = ssub.s32 %s22, %s29
      %p31 = scmp.eq.s32.totalorder %s30, 0
      %s33 = sadd.s32 %s32, 1
      %s34 = scalar_select %p31, %s32, %s33
      %p37 = pneg %p31
      %p38 = scmp.eq.s32.totalorder %s22, 1
      %p39 = por %p37, %p38
      %p40 = scmp.ne.s32.totalorder %s32, %s35
      %p41 = scmp.eq.s32.totalorder %s22, 0
      %p42 = por %p40, %p41
      %p43 = scmp.ne.s32.totalorder %s32, %s35
      %p44 = scmp.eq.s32.totalorder %s27, 1
      %p45 = por %p43, %p44
      %p46 = scmp.ne.s32.totalorder %s35, %s36
      %p47 = scmp.eq.s32.totalorder %s27, 0
      %p48 = por %p46, %p47
      %p49 = scmp.ne.s32.totalorder %s35, %s36
      %p50 = scmp.eq.s32.totalorder %s28, 1
      %p51 = por %p49, %p50
      %p53 = scmp.ne.s32.totalorder %s36, %s52
      %p54 = scmp.eq.s32.totalorder %s28, 0
      %p55 = por %p53, %p54
      %s57 = sadd.s32 %s56, 1
      %p60 = scmp.eq.s32.totalorder %s22, 1
      %p61 = scmp.ne.s32.totalorder %s56, %s58
      %p62 = scmp.eq.s32.totalorder %s22, 0
      %p63 = por %p61, %p62
      %p64 = scmp.ne.s32.totalorder %s56, %s58
      %p65 = scmp.eq.s32.totalorder %s27, 1
      %p66 = por %p64, %p65
      %p67 = scmp.ne.s32.totalorder %s58, %s59
      %p68 = scmp.eq.s32.totalorder %s27, 0
      %p69 = por %p67, %p68
      %p70 = scmp.ne.s32.totalorder %s58, %s59
      %p71 = scmp.eq.s32.totalorder %s28, 1
      %p72 = por %p70, %p71
      %p74 = scmp.ne.s32.totalorder %s59, %s73
      %p75 = scmp.eq.s32.totalorder %s28, 0
      %p76 = por %p74, %p75
      %s78 = sadd.s32 %s77, 1
      %p81 = scmp.eq.s32.totalorder %s22, 1
      %p82 = scmp.ne.s32.totalorder %s77, %s79
      %p83 = scmp.eq.s32.totalorder %s22, 0
      %p84 = por %p82, %p83
      %p85 = scmp.ne.s32.totalorder %s77, %s79
      %p86 = scmp.eq.s32.totalorder %s27, 1
      %p87 = por %p85, %p86
      %p88 = scmp.ne.s32.totalorder %s79, %s80
      %p89 = scmp.eq.s32.totalorder %s27, 0
      %p90 = por %p88, %p89
      %p91 = scmp.ne.s32.totalorder %s79, %s80
      %p92 = scmp.eq.s32.totalorder %s28, 1
      %p93 = por %p91, %p92
      %p95 = scmp.ne.s32.totalorder %s80, %s94
      %p96 = scmp.eq.s32.totalorder %s28, 0
      %p97 = por %p95, %p96
      %s99 = sadd.s32 %s98, 1
      %p102 = scmp.eq.s32.totalorder %s22, 1
      %p103 = scmp.ne.s32.totalorder %s98, %s100
      %p104 = scmp.eq.s32.totalorder %s22, 0
      %p105 = por %p103, %p104
      %p106 = scmp.ne.s32.totalorder %s98, %s100
      %p107 = scmp.eq.s32.totalorder %s27, 1
      %p108 = por %p106, %p107
      %p109 = scmp.ne.s32.totalorder %s100, %s101
      %p110 = scmp.eq.s32.totalorder %s27, 0
      %p111 = por %p109, %p110
      %p112 = scmp.ne.s32.totalorder %s100, %s101
      %p113 = scmp.eq.s32.totalorder %s28, 1
      %p114 = por %p112, %p113
      %p116 = scmp.ne.s32.totalorder %s101, %s115
      %p117 = scmp.eq.s32.totalorder %s28, 0
      %p118 = por %p116, %p117
      %s120 = sadd.s32 %s119, 1
      %p123 = scmp.eq.s32.totalorder %s22, 1
      %p124 = scmp.ne.s32.totalorder %s119, %s121
      %p125 = scmp.eq.s32.totalorder %s22, 0
      %p126 = por %p124, %p125
      %p127 = scmp.ne.s32.totalorder %s119, %s121
      %p128 = scmp.eq.s32.totalorder %s27, 1
      %p129 = por %p127, %p128
      %p130 = scmp.ne.s32.totalorder %s121, %s122
      %p131 = scmp.eq.s32.totalorder %s27, 0
      %p132 = por %p130, %p131
      %p133 = scmp.ne.s32.totalorder %s121, %s122
      %p134 = scmp.eq.s32.totalorder %s28, 1
      %p135 = por %p133, %p134
      %p137 = scmp.ne.s32.totalorder %s122, %s136
      %p138 = scmp.eq.s32.totalorder %s28, 0
      %p139 = por %p137, %p138
      %s141 = sadd.s32 %s140, 1
      %p144 = scmp.eq.s32.totalorder %s22, 1
      %p145 = scmp.ne.s32.totalorder %s140, %s142
      %p146 = scmp.eq.s32.totalorder %s22, 0
      %p147 = por %p145, %p146
      %p148 = scmp.ne.s32.totalorder %s140, %s142
      %p149 = scmp.eq.s32.totalorder %s27, 1
      %p150 = por %p148, %p149
      %p151 = scmp.ne.s32.totalorder %s142, %s143
      %p152 = scmp.eq.s32.totalorder %s27, 0
      %p153 = por %p151, %p152
      %p154 = scmp.ne.s32.totalorder %s142, %s143
      %p155 = scmp.eq.s32.totalorder %s28, 1
      %p156 = por %p154, %p155
      %p158 = scmp.ne.s32.totalorder %s143, %s157
      %p159 = scmp.eq.s32.totalorder %s28, 0
      %p160 = por %p158, %p159
      %s162 = sadd.s32 %s161, 1
      %p165 = scmp.eq.s32.totalorder %s22, 1
      %p166 = scmp.ne.s32.totalorder %s161, %s163
      %p167 = scmp.eq.s32.totalorder %s22, 0
      %p168 = por %p166, %p167
      %p169 = scmp.ne.s32.totalorder %s161, %s163
      %p170 = scmp.eq.s32.totalorder %s27, 1
      %p171 = por %p169, %p170
      %p172 = scmp.ne.s32.totalorder %s163, %s164
      %p173 = scmp.eq.s32.totalorder %s27, 0
      %p174 = por %p172, %p173
      %p175 = scmp.ne.s32.totalorder %s163, %s164
      %p176 = scmp.eq.s32.totalorder %s28, 1
      %p177 = por %p175, %p176
      %p179 = scmp.ne.s32.totalorder %s164, %s178
      %p180 = scmp.eq.s32.totalorder %s28, 0
      %p181 = por %p179, %p180
      %s183 = sadd.s32 %s182, 1
      %p186 = scmp.eq.s32.totalorder %s22, 1
      %p187 = scmp.ne.s32.totalorder %s182, %s184
      %p188 = scmp.eq.s32.totalorder %s22, 0
      %p189 = por %p187, %p188
      %p190 = scmp.ne.s32.totalorder %s182, %s184
      %p191 = scmp.eq.s32.totalorder %s27, 1
      %p192 = por %p190, %p191
      %p193 = scmp.ne.s32.totalorder %s184, %s185
      %p194 = scmp.eq.s32.totalorder %s27, 0
      %p195 = por %p193, %p194
      %p196 = scmp.ne.s32.totalorder %s184, %s185
      %p197 = scmp.eq.s32.totalorder %s28, 1
      %p198 = por %p196, %p197
      %p200 = scmp.ne.s32.totalorder %s185, %s199
      %p201 = scmp.eq.s32.totalorder %s28, 0
      %p202 = por %p200, %p201
      %s204 = sadd.s32 %s203, 1
      %p207 = scmp.eq.s32.totalorder %s22, 1
      %p208 = scmp.ne.s32.totalorder %s203, %s205
      %p209 = scmp.eq.s32.totalorder %s22, 0
      %p210 = por %p208, %p209
      %p211 = scmp.ne.s32.totalorder %s203, %s205
      %p212 = scmp.eq.s32.totalorder %s27, 1
      %p213 = por %p211, %p212
      %p214 = scmp.ne.s32.totalorder %s205, %s206
      %p215 = scmp.eq.s32.totalorder %s27, 0
      %p216 = por %p214, %p215
      %p217 = scmp.ne.s32.totalorder %s205, %s206
      %p218 = scmp.eq.s32.totalorder %s28, 1
      %p219 = por %p217, %p218
      %p221 = scmp.ne.s32.totalorder %s206, %s220
      %p222 = scmp.eq.s32.totalorder %s28, 0
      %p223 = por %p221, %p222
      %s224 = ssub.s32 %s22, %s29
      %p225 = scmp.eq.s32.totalorder %s224, 0
      %s227 = sadd.s32 %s226, 1
      %s228 = scalar_select %p225, %s226, %s227
      %p231 = pneg %p225
      %p232 = scmp.eq.s32.totalorder %s22, 1
      %p233 = por %p231, %p232
      %p234 = scmp.ne.s32.totalorder %s226, %s229
      %p235 = scmp.eq.s32.totalorder %s22, 0
      %p236 = por %p234, %p235
      %p237 = scmp.ne.s32.totalorder %s226, %s229
      %p238 = scmp.eq.s32.totalorder %s27, 1
      %p239 = por %p237, %p238
      %p240 = scmp.ne.s32.totalorder %s229, %s230
      %p241 = scmp.eq.s32.totalorder %s27, 0
      %p242 = por %p240, %p241
      %p243 = scmp.ne.s32.totalorder %s229, %s230
      %p244 = scmp.eq.s32.totalorder %s28, 1
      %p245 = por %p243, %p244
      %p247 = scmp.ne.s32.totalorder %s230, %s246
      %p248 = scmp.eq.s32.totalorder %s28, 0
      %p249 = por %p247, %p248
      %p250 = scmp.le.s32.totalorder 1, %s22
      %p251 = scmp.lt.s32.totalorder %s22, 3
      %p252 = pnand %p250, %p251
      %p253 = pneg %p252
      // Predicated region
      $region9: #{tpu_custom_call.1} parent=5 // pred_check
        _
      $region10: #{tpu_custom_call.1} parent=5 // pred_check_branch
        %255 = sbr.rel (%p252) target = $region12
      $region11: #{tpu_custom_call.1} parent=5 // pred_region
        %s256 = ssub.s32 %s22, 1
        // Predicated region
        $region13: #{tpu_custom_call.1} parent=11 // pred_check
          %p257 = pneg %p69
        $region14: #{tpu_custom_call.1} parent=11 // pred_check_branch
          %259 = sbr.rel (%p257) target = $region16
        $region15: #{tpu_custom_call.1} parent=11 // pred_region
          _
        $region16: #{tpu_custom_call.1} parent=11 // pred_fallthru
          _
        // Predicated region
        $region17: #{tpu_custom_call.1} parent=11 // pred_check
          %p260 = pneg %p90
        $region18: #{tpu_custom_call.1} parent=11 // pred_check_branch
          %262 = sbr.rel (%p260) target = $region20
        $region19: #{tpu_custom_call.1} parent=11 // pred_region
          _
        $region20: #{tpu_custom_call.1} parent=11 // pred_fallthru
          _
        // Predicated region
        $region21: #{tpu_custom_call.1} parent=11 // pred_check
          %p263 = pneg %p111
        $region22: #{tpu_custom_call.1} parent=11 // pred_check_branch
          %265 = sbr.rel (%p263) target = $region24
        $region23: #{tpu_custom_call.1} parent=11 // pred_region
          _
        $region24: #{tpu_custom_call.1} parent=11 // pred_fallthru
          _
        // Predicated region
        $region25: #{tpu_custom_call.1} parent=11 // pred_check
          %p266 = pneg %p132
        $region26: #{tpu_custom_call.1} parent=11 // pred_check_branch
          %268 = sbr.rel (%p266) target = $region28
        $region27: #{tpu_custom_call.1} parent=11 // pred_region
          _
        $region28: #{tpu_custom_call.1} parent=11 // pred_fallthru
          _
        // Predicated region
        $region29: #{tpu_custom_call.1} parent=11 // pred_check
          %p269 = pneg %p153
        $region30: #{tpu_custom_call.1} parent=11 // pred_check_branch
          %271 = sbr.rel (%p269) target = $region32
        $region31: #{tpu_custom_call.1} parent=11 // pred_region
          _
        $region32: #{tpu_custom_call.1} parent=11 // pred_fallthru
          _
        // Predicated region
        $region33: #{tpu_custom_call.1} parent=11 // pred_check
          %p272 = pneg %p174
        $region34: #{tpu_custom_call.1} parent=11 // pred_check_branch
          %274 = sbr.rel (%p272) target = $region36
        $region35: #{tpu_custom_call.1} parent=11 // pred_region
          _
        $region36: #{tpu_custom_call.1} parent=11 // pred_fallthru
          _
        // Predicated region
        $region37: #{tpu_custom_call.1} parent=11 // pred_check
          %p275 = pneg %p195
        $region38: #{tpu_custom_call.1} parent=11 // pred_check_branch
          %277 = sbr.rel (%p275) target = $region40
        $region39: #{tpu_custom_call.1} parent=11 // pred_region
          %s279 = ssub.s32 3072, 3072
          %280 = vsyncadd [#allocation6], %s279
          %s281 = sshll.u32 [#allocation5], 4
          %s282 = int_to_ptr.vmem [resolvable:$true] %s281
          %287 = dma.hbm_to_vmem [thread:$0]  %s7, 3072, %s282, [#allocation6], 192, 192, 12
        $region40: #{tpu_custom_call.1} parent=11 // pred_fallthru
          _
        // Predicated region
        $region41: #{tpu_custom_call.1} parent=11 // pred_check
          %p288 = pneg %p216
        $region42: #{tpu_custom_call.1} parent=11 // pred_check_branch
          %290 = sbr.rel (%p288) target = $region44
        $region43: #{tpu_custom_call.1} parent=11 // pred_region
          _
        $region44: #{tpu_custom_call.1} parent=11 // pred_fallthru
          _
      $region12: #{tpu_custom_call.1} parent=5 // pred_fallthru
        _
      %p291 = scmp.lt.s32.totalorder %s22, 2
      // Predicated region
      $region45: #{tpu_custom_call.1} parent=5 // pred_check
        %p292 = pneg %p291
      $region46: #{tpu_custom_call.1} parent=5 // pred_check_branch
        %294 = sbr.rel (%p292) target = $region48
      $region47: #{tpu_custom_call.1} parent=5 // pred_region
        // Predicated region
        $region49: #{tpu_custom_call.1} parent=47 // pred_check
          %p295 = pneg %p42
        $region50: #{tpu_custom_call.1} parent=47 // pred_check_branch
          %297 = sbr.rel (%p295) target = $region52
        $region51: #{tpu_custom_call.1} parent=47 // pred_region
          %s298 = sand.u32 %s32, 1
          %s299 = scalar_lea.sflag [#allocation3], %s298
          %s300 = sand.u32 %s32, 1
          %s301 = smul.addr %s300, 256
          %s302 = scalar_lea.vmem [#allocation2], %s301
          %s303 = smul.u32 2, %s22
          %s305 = ssub.s32 4096, 4096
          %306 = vsyncadd %s299, %s305
          %s307 = smul.addr %s303, 16
          %s308 = smul.addr %s307, 128
          %s309 = scalar_lea.hbm %s0, %s308
          %s310 = sshll.u32 %s302, 4
          %s311 = int_to_ptr.vmem [resolvable:$true] %s310
          %316 = dma.hbm_to_vmem [thread:$0]  %s309, 4096, %s311, %s299, 128, 128, 8
        $region52: #{tpu_custom_call.1} parent=47 // pred_fallthru
          _
      $region48: #{tpu_custom_call.1} parent=5 // pred_fallthru
        _
      %p317 = scmp.le.s32.totalorder 1, %s22
      %p318 = scmp.lt.s32.totalorder %s22, 3
      %p319 = pnand %p317, %p318
      %p320 = pneg %p319
      // Predicated region
      $region53: #{tpu_custom_call.1} parent=5 // pred_check
        _
      $region54: #{tpu_custom_call.1} parent=5 // pred_check_branch
        %322 = sbr.rel (%p319) target = $region56
      $region55: #{tpu_custom_call.1} parent=5 // pred_region
        %s323 = ssub.s32 %s22, 1
        %s324 = sand.u32 %s35, 1
        %s325 = scalar_lea.sflag [#allocation3], %s324
        %s326 = sand.u32 %s35, 1
        %s327 = smul.addr %s326, 256
        %s328 = scalar_lea.vmem [#allocation2], %s327
        // Predicated region
        $region57: #{tpu_custom_call.1} parent=55 // pred_check
          %p329 = pneg %p48
        $region58: #{tpu_custom_call.1} parent=55 // pred_check_branch
          %331 = sbr.rel (%p329) target = $region60
        $region59: #{tpu_custom_call.1} parent=55 // pred_region
          %332 = dma.done %s325, 4096
        $region60: #{tpu_custom_call.1} parent=55 // pred_fallthru
          _
        // Predicated region
        $region61: #{tpu_custom_call.1} parent=55 // pred_check
          %p333 = pneg %p195
        $region62: #{tpu_custom_call.1} parent=55 // pred_check_branch
          %335 = sbr.rel (%p333) target = $region64
        $region63: #{tpu_custom_call.1} parent=55 // pred_region
          %336 = dma.done [#allocation6], 3072
        $region64: #{tpu_custom_call.1} parent=55 // pred_fallthru
          _
        %s337 = sand.u32 %s35, 1
        %s338 = scalar_lea.sflag [#allocation3], %s337
        %s339 = sand.u32 %s35, 1
        %s340 = smul.addr %s339, 256
        %s341 = scalar_lea.vmem [#allocation2], %s340
        %p342 = pneg %p48
        %p343 = pneg %p45
        %p344 = pneg %p69
        %p345 = pneg %p66
        %p346 = pneg %p90
        %p347 = pneg %p87
        %p348 = pneg %p111
        %p349 = pneg %p108
        %p350 = pneg %p132
        %p351 = pneg %p129
        %p352 = pneg %p153
        %p353 = pneg %p150
        %p354 = pneg %p174
        %p355 = pneg %p171
        %p356 = pneg %p195
        %p357 = pneg %p192
        %p358 = pneg %p216
        %p359 = pneg %p213
        %p360 = pneg %p242
        %p361 = pneg %p239
        %s362 = sand.u32 %s229, 1
        %s363 = scalar_lea.sflag [#allocation4], %s362
        %s364 = sand.u32 %s229, 1
        %s365 = smul.addr %s364, 256
        %s366 = scalar_lea.vmem [#allocation7], %s365
        %s367 = smul.u32 2, %s27
        %s368 = smul.u32 2, %s27
        %v370 = vld [vmem:[%s1] sm:$0x1]
        %v371 = vld [vmem:[%s2] sm:$0x1]
        %v372 = vld [vmem:[%s5] sm:$0x1]
        %v373 = vld [vmem:[%s6] sm:$0x1]
        %v374 = vld [vmem:[%s3] sm:$0xff]
        %v375 = vld [vmem:[%s3 + $0x8] sm:$0xf]
        %v376 = vld [vmem:[%s3 + $0xc] sm:$0xff]
        %v377 = vld [vmem:[%s3 + $0x14] sm:$0xf]
        %v378 = vld [vmem:[%s3 + $0x18] sm:$0xff]
        %v379 = vld [vmem:[%s3 + $0x20] sm:$0xf]
        %v380 = vld [vmem:[%s3 + $0x24] sm:$0xff]
        %v381 = vld [vmem:[%s3 + $0x2c] sm:$0xf]
        %v382 = vld [vmem:[%s3 + $0x30] sm:$0xff]
        %v383 = vld [vmem:[%s3 + $0x38] sm:$0xf]
        %v384 = vld [vmem:[%s3 + $0x3c] sm:$0xff]
        %v385 = vld [vmem:[%s3 + $0x44] sm:$0xf]
        %v386 = vld [vmem:[%s3 + $0x48] sm:$0xff]
        %v387 = vld [vmem:[%s3 + $0x50] sm:$0xf]
        %v388 = vld [vmem:[%s3 + $0x54] sm:$0xff]
        %v389 = vld [vmem:[%s3 + $0x5c] sm:$0xf]
        %v390 = vld [vmem:[%s3 + $0x60] sm:$0xff]
        %v391 = vld [vmem:[%s3 + $0x68] sm:$0xf]
        %v392 = vld [vmem:[%s3 + $0x6c] sm:$0xff]
        %v393 = vld [vmem:[%s3 + $0x74] sm:$0xf]
        %v394 = vld [vmem:[%s3 + $0x78] sm:$0xff]
        %v395 = vld [vmem:[%s3 + $0x80] sm:$0xf]
        %v396 = vld [vmem:[%s3 + $0x84] sm:$0xff]
        %v397 = vld [vmem:[%s3 + $0x8c] sm:$0xf]
        %v398 = vld [vmem:[%s3 + $0x90] sm:$0xff]
        %v399 = vld [vmem:[%s3 + $0x98] sm:$0xf]
        %v400 = vld [vmem:[%s3 + $0x9c] sm:$0xff]
        %v401 = vld [vmem:[%s3 + $0xa4] sm:$0xf]
        %v402 = vld [vmem:[%s3 + $0xa8] sm:$0xff]
        %v403 = vld [vmem:[%s3 + $0xb0] sm:$0xf]
        %v404 = vld [vmem:[%s3 + $0xb4] sm:$0xff]
        %v405 = vld [vmem:[%s3 + $0xbc] sm:$0xf]
        %v406 = vld [vmem:[%s4] sm:$0xff]
        %v407 = vld [vmem:[%s4 + $0x8] sm:$0xff]
        %v408 = vld [vmem:[%s4 + $0x10] sm:$0xff]
        %v409 = vld [vmem:[%s4 + $0x18] sm:$0xff]
        %v410 = vld [vmem:[%s4 + $0x20] sm:$0xff]
        %v411 = vld [vmem:[%s4 + $0x28] sm:$0xff]
        %v412 = vld [vmem:[%s4 + $0x30] sm:$0xff]
        %v413 = vld [vmem:[%s4 + $0x38] sm:$0xff]
        %v414 = vld [vmem:[%s4 + $0x40] sm:$0xff]
        %v415 = vld [vmem:[%s4 + $0x48] sm:$0xff]
        %v416 = vld [vmem:[%s4 + $0x50] sm:$0xff]
        %v417 = vld [vmem:[%s4 + $0x58] sm:$0xff]
        %v418 = vld [vmem:[%s4 + $0x60] sm:$0xff]
        %v419 = vld [vmem:[%s4 + $0x68] sm:$0xff]
        %v420 = vld [vmem:[%s4 + $0x70] sm:$0xff]
        %v421 = vld [vmem:[%s4 + $0x78] sm:$0xff]
        %v422 = vld [vmem:[#allocation5] sm:$0xff]
        %v423 = vld [vmem:[#allocation5 + $0x8] sm:$0xf]
        %v424 = vld [vmem:[#allocation5 + $0xc] sm:$0xff]
        %v425 = vld [vmem:[#allocation5 + $0x14] sm:$0xf]
        %v426 = vld [vmem:[#allocation5 + $0x18] sm:$0xff]
        %v427 = vld [vmem:[#allocation5 + $0x20] sm:$0xf]
        %v428 = vld [vmem:[#allocation5 + $0x24] sm:$0xff]
        %v429 = vld [vmem:[#allocation5 + $0x2c] sm:$0xf]
        %v430 = vld [vmem:[#allocation5 + $0x30] sm:$0xff]
        %v431 = vld [vmem:[#allocation5 + $0x38] sm:$0xf]
        %v432 = vld [vmem:[#allocation5 + $0x3c] sm:$0xff]
        %v433 = vld [vmem:[#allocation5 + $0x44] sm:$0xf]
        %v434 = vld [vmem:[#allocation5 + $0x48] sm:$0xff]
        %v435 = vld [vmem:[#allocation5 + $0x50] sm:$0xf]
        %v436 = vld [vmem:[#allocation5 + $0x54] sm:$0xff]
        %v437 = vld [vmem:[#allocation5 + $0x5c] sm:$0xf]
        %v438 = vld [vmem:[#allocation5 + $0x60] sm:$0xff]
        %v439 = vld [vmem:[#allocation5 + $0x68] sm:$0xf]
        %v440 = vld [vmem:[#allocation5 + $0x6c] sm:$0xff]
        %v441 = vld [vmem:[#allocation5 + $0x74] sm:$0xf]
        %v442 = vld [vmem:[#allocation5 + $0x78] sm:$0xff]
        %v443 = vld [vmem:[#allocation5 + $0x80] sm:$0xf]
        %v444 = vld [vmem:[#allocation5 + $0x84] sm:$0xff]
        %v445 = vld [vmem:[#allocation5 + $0x8c] sm:$0xf]
        %v446 = vld [vmem:[#allocation5 + $0x90] sm:$0xff]
        %v447 = vld [vmem:[#allocation5 + $0x98] sm:$0xf]
        %v448 = vld [vmem:[#allocation5 + $0x9c] sm:$0xff]
        %v449 = vld [vmem:[#allocation5 + $0xa4] sm:$0xf]
        %v450 = vld [vmem:[#allocation5 + $0xa8] sm:$0xff]
        %v451 = vld [vmem:[#allocation5 + $0xb0] sm:$0xf]
        %v452 = vld [vmem:[#allocation5 + $0xb4] sm:$0xff]
        %v453 = vld [vmem:[#allocation5 + $0xbc] sm:$0xf]
        %v454 = vld [vmem:[%s8] sm:$0xff]
        %v455 = vld [vmem:[%s8 + $0x8] sm:$0xff]
        %v456 = vld [vmem:[%s8 + $0x10] sm:$0xff]
        %v457 = vld [vmem:[%s8 + $0x18] sm:$0xff]
        %v458 = vld [vmem:[%s8 + $0x20] sm:$0xff]
        %v459 = vld [vmem:[%s8 + $0x28] sm:$0xff]
        %v460 = vld [vmem:[%s8 + $0x30] sm:$0xff]
        %v461 = vld [vmem:[%s8 + $0x38] sm:$0xff]
        %v462 = vld [vmem:[%s8 + $0x40] sm:$0xff]
        %v463 = vld [vmem:[%s8 + $0x48] sm:$0xff]
        %v464 = vld [vmem:[%s8 + $0x50] sm:$0xff]
        %v465 = vld [vmem:[%s8 + $0x58] sm:$0xff]
        %v466 = vld [vmem:[%s8 + $0x60] sm:$0xff]
        %v467 = vld [vmem:[%s8 + $0x68] sm:$0xff]
        %v468 = vld [vmem:[%s8 + $0x70] sm:$0xff]
        %v469 = vld [vmem:[%s8 + $0x78] sm:$0xff]
        %v470 = vld [vmem:[%s328] sm:$0xff]
        %v471 = vld [vmem:[%s328 + $0x8] sm:$0xff]
        %v472 = vld [vmem:[%s328 + $0x10] sm:$0xff]
        %v473 = vld [vmem:[%s328 + $0x18] sm:$0xff]
        %v474 = vld [vmem:[%s328 + $0x20] sm:$0xff]
        %v475 = vld [vmem:[%s328 + $0x28] sm:$0xff]
        %v476 = vld [vmem:[%s328 + $0x30] sm:$0xff]
        %v477 = vld [vmem:[%s328 + $0x38] sm:$0xff]
        %v478 = vld [vmem:[%s328 + $0x40] sm:$0xff]
        %v479 = vld [vmem:[%s328 + $0x48] sm:$0xff]
        %v480 = vld [vmem:[%s328 + $0x50] sm:$0xff]
        %v481 = vld [vmem:[%s328 + $0x58] sm:$0xff]
        %v482 = vld [vmem:[%s328 + $0x60] sm:$0xff]
        %v483 = vld [vmem:[%s328 + $0x68] sm:$0xff]
        %v484 = vld [vmem:[%s328 + $0x70] sm:$0xff]
        %v485 = vld [vmem:[%s328 + $0x78] sm:$0xff]
        %486 = vadd.xlane.f32.xlu0 %v470
        %v487 = vpop.xlane.xlu0 %486
        %488 = vadd.xlane.f32.xlu0 %v471
        %v489 = vpop.xlane.xlu0 %488
        %490 = vadd.xlane.f32.xlu0 %v472
        %v491 = vpop.xlane.xlu0 %490
        %492 = vadd.xlane.f32.xlu0 %v473
        %v493 = vpop.xlane.xlu0 %492
        %494 = vadd.xlane.f32.xlu0 %v474
        %v495 = vpop.xlane.xlu0 %494
        %496 = vadd.xlane.f32.xlu0 %v475
        %v497 = vpop.xlane.xlu0 %496
        %498 = vadd.xlane.f32.xlu0 %v476
        %v499 = vpop.xlane.xlu0 %498
        %500 = vadd.xlane.f32.xlu0 %v477
        %v501 = vpop.xlane.xlu0 %500
        %502 = vadd.xlane.f32.xlu0 %v478
        %v503 = vpop.xlane.xlu0 %502
        %504 = vadd.xlane.f32.xlu0 %v479
        %v505 = vpop.xlane.xlu0 %504
        %506 = vadd.xlane.f32.xlu0 %v480
        %v507 = vpop.xlane.xlu0 %506
        %508 = vadd.xlane.f32.xlu0 %v481
        %v509 = vpop.xlane.xlu0 %508
        %510 = vadd.xlane.f32.xlu0 %v482
        %v511 = vpop.xlane.xlu0 %510
        %512 = vadd.xlane.f32.xlu0 %v483
        %v513 = vpop.xlane.xlu0 %512
        %514 = vadd.xlane.f32.xlu0 %v484
        %v515 = vpop.xlane.xlu0 %514
        %516 = vadd.xlane.f32.xlu0 %v485
        %v517 = vpop.xlane.xlu0 %516
        %v518 = vrcp.pop 128.0
        %v519 = vmul.f32 %v487, %v518
        %v520 = vmul.f32 %v489, %v518
        %v521 = vmul.f32 %v491, %v518
        %v522 = vmul.f32 %v493, %v518
        %v523 = vmul.f32 %v495, %v518
        %v524 = vmul.f32 %v497, %v518
        %v525 = vmul.f32 %v499, %v518
        %v526 = vmul.f32 %v501, %v518
        %v527 = vmul.f32 %v503, %v518
        %v528 = vmul.f32 %v505, %v518
        %v529 = vmul.f32 %v507, %v518
        %v530 = vmul.f32 %v509, %v518
        %v531 = vmul.f32 %v511, %v518
        %v532 = vmul.f32 %v513, %v518
        %v533 = vmul.f32 %v515, %v518
        %v534 = vmul.f32 %v517, %v518
        %v535 = vsub.f32 %v470, %v519
        %v536 = vsub.f32 %v471, %v520
        %v537 = vsub.f32 %v472, %v521
        %v538 = vsub.f32 %v473, %v522
        %v539 = vsub.f32 %v474, %v523
        %v540 = vsub.f32 %v475, %v524
        %v541 = vsub.f32 %v476, %v525
        %v542 = vsub.f32 %v477, %v526
        %v543 = vsub.f32 %v478, %v527
        %v544 = vsub.f32 %v479, %v528
        %v545 = vsub.f32 %v480, %v529
        %v546 = vsub.f32 %v481, %v530
        %v547 = vsub.f32 %v482, %v531
        %v548 = vsub.f32 %v483, %v532
        %v549 = vsub.f32 %v484, %v533
        %v550 = vsub.f32 %v485, %v534
        %v551 = vmul.f32 %v535, %v535
        %v552 = vmul.f32 %v536, %v536
        %v553 = vmul.f32 %v537, %v537
        %v554 = vmul.f32 %v538, %v538
        %v555 = vmul.f32 %v539, %v539
        %v556 = vmul.f32 %v540, %v540
        %v557 = vmul.f32 %v541, %v541
        %v558 = vmul.f32 %v542, %v542
        %v559 = vmul.f32 %v543, %v543
        %v560 = vmul.f32 %v544, %v544
        %v561 = vmul.f32 %v545, %v545
        %v562 = vmul.f32 %v546, %v546
        %v563 = vmul.f32 %v547, %v547
        %v564 = vmul.f32 %v548, %v548
        %v565 = vmul.f32 %v549, %v549
        %v566 = vmul.f32 %v550, %v550
        %567 = vadd.xlane.f32.xlu0 %v551
        %v568 = vpop.xlane.xlu0 %567
        %569 = vadd.xlane.f32.xlu0 %v552
        %v570 = vpop.xlane.xlu0 %569
        %571 = vadd.xlane.f32.xlu0 %v553
        %v572 = vpop.xlane.xlu0 %571
        %573 = vadd.xlane.f32.xlu0 %v554
        %v574 = vpop.xlane.xlu0 %573
        %575 = vadd.xlane.f32.xlu0 %v555
        %v576 = vpop.xlane.xlu0 %575
        %577 = vadd.xlane.f32.xlu0 %v556
        %v578 = vpop.xlane.xlu0 %577
        %579 = vadd.xlane.f32.xlu0 %v557
        %v580 = vpop.xlane.xlu0 %579
        %581 = vadd.xlane.f32.xlu0 %v558
        %v582 = vpop.xlane.xlu0 %581
        %583 = vadd.xlane.f32.xlu0 %v559
        %v584 = vpop.xlane.xlu0 %583
        %585 = vadd.xlane.f32.xlu0 %v560
        %v586 = vpop.xlane.xlu0 %585
        %587 = vadd.xlane.f32.xlu0 %v561
        %v588 = vpop.xlane.xlu0 %587
        %589 = vadd.xlane.f32.xlu0 %v562
        %v590 = vpop.xlane.xlu0 %589
        %591 = vadd.xlane.f32.xlu0 %v563
        %v592 = vpop.xlane.xlu0 %591
        %593 = vadd.xlane.f32.xlu0 %v564
        %v594 = vpop.xlane.xlu0 %593
        %595 = vadd.xlane.f32.xlu0 %v565
        %v596 = vpop.xlane.xlu0 %595
        %597 = vadd.xlane.f32.xlu0 %v566
        %v598 = vpop.xlane.xlu0 %597
        %v599 = vmul.f32 %v568, %v518
        %v600 = vmul.f32 %v570, %v518
        %v601 = vmul.f32 %v572, %v518
        %v602 = vmul.f32 %v574, %v518
        %v603 = vmul.f32 %v576, %v518
        %v604 = vmul.f32 %v578, %v518
        %v605 = vmul.f32 %v580, %v518
        %v606 = vmul.f32 %v582, %v518
        %v607 = vmul.f32 %v584, %v518
        %v608 = vmul.f32 %v586, %v518
        %v609 = vmul.f32 %v588, %v518
        %v610 = vmul.f32 %v590, %v518
        %v611 = vmul.f32 %v592, %v518
        %v612 = vmul.f32 %v594, %v518
        %v613 = vmul.f32 %v596, %v518
        %v614 = vmul.f32 %v598, %v518
        %v615 = vadd.f32 %v599, 1e-05
        %v616 = vadd.f32 %v600, 1e-05
        %v617 = vadd.f32 %v601, 1e-05
        %v618 = vadd.f32 %v602, 1e-05
        %v619 = vadd.f32 %v603, 1e-05
        %v620 = vadd.f32 %v604, 1e-05
        %v621 = vadd.f32 %v605, 1e-05
        %v622 = vadd.f32 %v606, 1e-05
        %v623 = vadd.f32 %v607, 1e-05
        %v624 = vadd.f32 %v608, 1e-05
        %v625 = vadd.f32 %v609, 1e-05
        %v626 = vadd.f32 %v610, 1e-05
        %v627 = vadd.f32 %v611, 1e-05
        %v628 = vadd.f32 %v612, 1e-05
        %v629 = vadd.f32 %v613, 1e-05
        %v630 = vadd.f32 %v614, 1e-05
        %v631 = vrsqrt.pop %v615
        %v632 = vrsqrt.pop %v616
        %v633 = vrsqrt.pop %v617
        %v634 = vrsqrt.pop %v618
        %v635 = vrsqrt.pop %v619
        %v636 = vrsqrt.pop %v620
        %v637 = vrsqrt.pop %v621
        %v638 = vrsqrt.pop %v622
        %v639 = vrsqrt.pop %v623
        %v640 = vrsqrt.pop %v624
        %v641 = vrsqrt.pop %v625
        %v642 = vrsqrt.pop %v626
        %v643 = vrsqrt.pop %v627
        %v644 = vrsqrt.pop %v628
        %v645 = vrsqrt.pop %v629
        %v646 = vrsqrt.pop %v630
        %v647 = vmul.f32 %v535, %v631
        %v648 = vmul.f32 %v536, %v632
        %v649 = vmul.f32 %v537, %v633
        %v650 = vmul.f32 %v538, %v634
        %v651 = vmul.f32 %v539, %v635
        %v652 = vmul.f32 %v540, %v636
        %v653 = vmul.f32 %v541, %v637
        %v654 = vmul.f32 %v542, %v638
        %v655 = vmul.f32 %v543, %v639
        %v656 = vmul.f32 %v544, %v640
        %v657 = vmul.f32 %v545, %v641
        %v658 = vmul.f32 %v546, %v642
        %v659 = vmul.f32 %v547, %v643
        %v660 = vmul.f32 %v548, %v644
        %v661 = vmul.f32 %v549, %v645
        %v662 = vmul.f32 %v550, %v646
        %v664 = vlaneseq
        %v665 = vshrl.u32 %v664, 7
        %v666 = vsub.s32 0, %v665
        %v667 = vrot.slane %v370, %v666
        %v669 = vmul.f32 %v647, %v667
        %v670 = vmul.f32 %v648, %v667
        %v671 = vmul.f32 %v649, %v667
        %v672 = vmul.f32 %v650, %v667
        %v673 = vmul.f32 %v651, %v667
        %v674 = vmul.f32 %v652, %v667
        %v675 = vmul.f32 %v653, %v667
        %v676 = vmul.f32 %v654, %v667
        %v677 = vmul.f32 %v655, %v667
        %v678 = vmul.f32 %v656, %v667
        %v679 = vmul.f32 %v657, %v667
        %v680 = vmul.f32 %v658, %v667
        %v681 = vmul.f32 %v659, %v667
        %v682 = vmul.f32 %v660, %v667
        %v683 = vmul.f32 %v661, %v667
        %v684 = vmul.f32 %v662, %v667
        %v686 = vlaneseq
        %v687 = vshrl.u32 %v686, 7
        %v688 = vsub.s32 0, %v687
        %v689 = vrot.slane %v371, %v688
        %v691 = vadd.f32 %v669, %v689
        %v692 = vadd.f32 %v670, %v689
        %v693 = vadd.f32 %v671, %v689
        %v694 = vadd.f32 %v672, %v689
        %v695 = vadd.f32 %v673, %v689
        %v696 = vadd.f32 %v674, %v689
        %v697 = vadd.f32 %v675, %v689
        %v698 = vadd.f32 %v676, %v689
        %v699 = vadd.f32 %v677, %v689
        %v700 = vadd.f32 %v678, %v689
        %v701 = vadd.f32 %v679, %v689
        %v702 = vadd.f32 %v680, %v689
        %v703 = vadd.f32 %v681, %v689
        %v704 = vadd.f32 %v682, %v689
        %v705 = vadd.f32 %v683, %v689
        %v706 = vadd.f32 %v684, %v689
        %v707 = vpack.c.bf16 %v692, %v691
        %v708 = vpack.c.bf16 %v694, %v693
        %v709 = vpack.c.bf16 %v696, %v695
        %v710 = vpack.c.bf16 %v698, %v697
        %v711 = vpack.c.bf16 %v700, %v699
        %v712 = vpack.c.bf16 %v702, %v701
        %v713 = vpack.c.bf16 %v704, %v703
        %v714 = vpack.c.bf16 %v706, %v705
        %723 = vrot.lane.b32.xlu0 %v707, 1
        %v724 = vpop.permute.xlu0 %723
        %725 = vrot.lane.b32.xlu0 %v708, 1
        %v726 = vpop.permute.xlu0 %725
        %727 = vrot.lane.b32.xlu0 %v709, 1
        %v728 = vpop.permute.xlu0 %727
        %729 = vrot.lane.b32.xlu0 %v710, 1
        %v730 = vpop.permute.xlu0 %729
        %731 = vrot.lane.b32.xlu0 %v711, 1
        %v732 = vpop.permute.xlu0 %731
        %733 = vrot.lane.b32.xlu0 %v712, 1
        %v734 = vpop.permute.xlu0 %733
        %735 = vrot.lane.b32.xlu0 %v713, 1
        %v736 = vpop.permute.xlu0 %735
        %737 = vrot.lane.b32.xlu0 %v714, 1
        %v738 = vpop.permute.xlu0 %737
        %vm739 = vcmask 7168
        %v742 = vsel %vm739, 0, %v724
        %v745 = vsel %vm739, 0, %v726
        %v748 = vsel %vm739, 0, %v728
        %v751 = vsel %vm739, 0, %v730
        %v754 = vsel %vm739, 0, %v732
        %v757 = vsel %vm739, 0, %v734
        %v760 = vsel %vm739, 0, %v736
        %v763 = vsel %vm739, 0, %v738
        %v765 = vsel %vm739, %v724, 0
        %v766 = vsel %vm739, %v726, 0
        %v767 = vsel %vm739, %v728, 0
        %v768 = vsel %vm739, %v730, 0
        %v769 = vsel %vm739, %v732, 0
        %v770 = vsel %vm739, %v734, 0
        %v771 = vsel %vm739, %v736, 0
        %v772 = vsel %vm739, %v738, 0
        %789 = vrot.lane.b32.xlu0 %v742, 127
        %v790 = vpop.permute.xlu0 %789
        %791 = vrot.lane.b32.xlu0 %v765, 127
        %v792 = vpop.permute.xlu0 %791
        %793 = vrot.lane.b32.xlu0 %v745, 127
        %v794 = vpop.permute.xlu0 %793
        %795 = vrot.lane.b32.xlu0 %v766, 127
        %v796 = vpop.permute.xlu0 %795
        %797 = vrot.lane.b32.xlu0 %v748, 127
        %v798 = vpop.permute.xlu0 %797
        %799 = vrot.lane.b32.xlu0 %v767, 127
        %v800 = vpop.permute.xlu0 %799
        %801 = vrot.lane.b32.xlu0 %v751, 127
        %v802 = vpop.permute.xlu0 %801
        %803 = vrot.lane.b32.xlu0 %v768, 127
        %v804 = vpop.permute.xlu0 %803
        %805 = vrot.lane.b32.xlu0 %v754, 127
        %v806 = vpop.permute.xlu0 %805
        %807 = vrot.lane.b32.xlu0 %v769, 127
        %v808 = vpop.permute.xlu0 %807
        %809 = vrot.lane.b32.xlu0 %v757, 127
        %v810 = vpop.permute.xlu0 %809
        %811 = vrot.lane.b32.xlu0 %v770, 127
        %v812 = vpop.permute.xlu0 %811
        %813 = vrot.lane.b32.xlu0 %v760, 127
        %v814 = vpop.permute.xlu0 %813
        %815 = vrot.lane.b32.xlu0 %v771, 127
        %v816 = vpop.permute.xlu0 %815
        %817 = vrot.lane.b32.xlu0 %v763, 127
        %v818 = vpop.permute.xlu0 %817
        %819 = vrot.lane.b32.xlu0 %v772, 127
        %v820 = vpop.permute.xlu0 %819
        %vm821 = vcmask 1039360
        %v822 = vsel %vm821, %v790, %v792
        %v823 = vsel %vm821, %v794, %v796
        %v824 = vsel %vm821, %v798, %v800
        %v825 = vsel %vm821, %v802, %v804
        %v826 = vsel %vm821, %v806, %v808
        %v827 = vsel %vm821, %v810, %v812
        %v828 = vsel %vm821, %v814, %v816
        %v829 = vsel %vm821, %v818, %v820
        %838 = vrot.lane.b32.xlu0 %v742, 126
        %v839 = vpop.permute.xlu0 %838
        %840 = vrot.lane.b32.xlu0 %v765, 126
        %v841 = vpop.permute.xlu0 %840
        %842 = vrot.lane.b32.xlu0 %v745, 126
        %v843 = vpop.permute.xlu0 %842
        %844 = vrot.lane.b32.xlu0 %v766, 126
        %v845 = vpop.permute.xlu0 %844
        %846 = vrot.lane.b32.xlu0 %v748, 126
        %v847 = vpop.permute.xlu0 %846
        %848 = vrot.lane.b32.xlu0 %v767, 126
        %v849 = vpop.permute.xlu0 %848
        %850 = vrot.lane.b32.xlu0 %v751, 126
        %v851 = vpop.permute.xlu0 %850
        %852 = vrot.lane.b32.xlu0 %v768, 126
        %v853 = vpop.permute.xlu0 %852
        %854 = vrot.lane.b32.xlu0 %v754, 126
        %v855 = vpop.permute.xlu0 %854
        %856 = vrot.lane.b32.xlu0 %v769, 126
        %v857 = vpop.permute.xlu0 %856
        %858 = vrot.lane.b32.xlu0 %v757, 126
        %v859 = vpop.permute.xlu0 %858
        %860 = vrot.lane.b32.xlu0 %v770, 126
        %v861 = vpop.permute.xlu0 %860
        %862 = vrot.lane.b32.xlu0 %v760, 126
        %v863 = vpop.permute.xlu0 %862
        %864 = vrot.lane.b32.xlu0 %v771, 126
        %v865 = vpop.permute.xlu0 %864
        %866 = vrot.lane.b32.xlu0 %v763, 126
        %v867 = vpop.permute.xlu0 %866
        %868 = vrot.lane.b32.xlu0 %v772, 126
        %v869 = vpop.permute.xlu0 %868
        %vm870 = vcmask 1031168
        %v871 = vsel %vm870, %v839, %v841
        %v872 = vsel %vm870, %v843, %v845
        %v873 = vsel %vm870, %v847, %v849
        %v874 = vsel %vm870, %v851, %v853
        %v875 = vsel %vm870, %v855, %v857
        %v876 = vsel %vm870, %v859, %v861
        %v877 = vsel %vm870, %v863, %v865
        %v878 = vsel %vm870, %v867, %v869
        %888 = vset.pattern.permute.xlu0 0
        %889 = vperm.xlu0 %888, %v406
        %v890 = vpop.permute.xlu0 %889
        %893 = vset.pattern.permute.xlu0 0
        %894 = vperm.xlu0 %893, %v407
        %v895 = vpop.permute.xlu0 %894
        %898 = vset.pattern.permute.xlu0 0
        %899 = vperm.xlu0 %898, %v408
        %v900 = vpop.permute.xlu0 %899
        %903 = vset.pattern.permute.xlu0 0
        %904 = vperm.xlu0 %903, %v409
        %v905 = vpop.permute.xlu0 %904
        %908 = vset.pattern.permute.xlu0 0
        %909 = vperm.xlu0 %908, %v410
        %v910 = vpop.permute.xlu0 %909
        %913 = vset.pattern.permute.xlu0 0
        %914 = vperm.xlu0 %913, %v411
        %v915 = vpop.permute.xlu0 %914
        %918 = vset.pattern.permute.xlu0 0
        %919 = vperm.xlu0 %918, %v412
        %v920 = vpop.permute.xlu0 %919
        %923 = vset.pattern.permute.xlu0 0
        %924 = vperm.xlu0 %923, %v413
        %v925 = vpop.permute.xlu0 %924
        %928 = vset.pattern.permute.xlu0 0
        %929 = vperm.xlu0 %928, %v414
        %v930 = vpop.permute.xlu0 %929
        %933 = vset.pattern.permute.xlu0 0
        %934 = vperm.xlu0 %933, %v415
        %v935 = vpop.permute.xlu0 %934
        %938 = vset.pattern.permute.xlu0 0
        %939 = vperm.xlu0 %938, %v416
        %v940 = vpop.permute.xlu0 %939
        %943 = vset.pattern.permute.xlu0 0
        %944 = vperm.xlu0 %943, %v417
        %v945 = vpop.permute.xlu0 %944
        %948 = vset.pattern.permute.xlu0 0
        %949 = vperm.xlu0 %948, %v418
        %v950 = vpop.permute.xlu0 %949
        %953 = vset.pattern.permute.xlu0 0
        %954 = vperm.xlu0 %953, %v419
        %v955 = vpop.permute.xlu0 %954
        %958 = vset.pattern.permute.xlu0 0
        %959 = vperm.xlu0 %958, %v420
        %v960 = vpop.permute.xlu0 %959
        %963 = vset.pattern.permute.xlu0 0
        %964 = vperm.xlu0 %963, %v421
        %v965 = vpop.permute.xlu0 %964
        %v999 = vunpack.c.l.b16 %v374
        %v1000 = vunpack.c.h.b16 %v374
        %v1001 = vunpack.c.l.b16 %v375
        %v1002 = vunpack.c.l.b16 %v376
        %v1003 = vunpack.c.h.b16 %v376
        %v1004 = vunpack.c.l.b16 %v377
        %v1005 = vunpack.c.l.b16 %v378
        %v1006 = vunpack.c.h.b16 %v378
        %v1007 = vunpack.c.l.b16 %v379
        %v1008 = vunpack.c.l.b16 %v380
        %v1009 = vunpack.c.h.b16 %v380
        %v1010 = vunpack.c.l.b16 %v381
        %v1011 = vunpack.c.l.b16 %v382
        %v1012 = vunpack.c.h.b16 %v382
        %v1013 = vunpack.c.l.b16 %v383
        %v1014 = vunpack.c.l.b16 %v384
        %v1015 = vunpack.c.h.b16 %v384
        %v1016 = vunpack.c.l.b16 %v385
        %v1017 = vunpack.c.l.b16 %v386
        %v1018 = vunpack.c.h.b16 %v386
        %v1019 = vunpack.c.l.b16 %v387
        %v1020 = vunpack.c.l.b16 %v388
        %v1021 = vunpack.c.h.b16 %v388
        %v1022 = vunpack.c.l.b16 %v389
        %v1023 = vunpack.c.l.b16 %v390
        %v1024 = vunpack.c.h.b16 %v390
        %v1025 = vunpack.c.l.b16 %v391
        %v1026 = vunpack.c.l.b16 %v392
        %v1027 = vunpack.c.h.b16 %v392
        %v1028 = vunpack.c.l.b16 %v393
        %v1029 = vunpack.c.l.b16 %v394
        %v1030 = vunpack.c.h.b16 %v394
        %v1031 = vunpack.c.l.b16 %v395
        %v1032 = vunpack.c.l.b16 %v396
        %v1033 = vunpack.c.h.b16 %v396
        %v1034 = vunpack.c.l.b16 %v397
        %v1035 = vunpack.c.l.b16 %v398
        %v1036 = vunpack.c.h.b16 %v398
        %v1037 = vunpack.c.l.b16 %v399
        %v1038 = vunpack.c.l.b16 %v400
        %v1039 = vunpack.c.h.b16 %v400
        %v1040 = vunpack.c.l.b16 %v401
        %v1041 = vunpack.c.l.b16 %v402
        %v1042 = vunpack.c.h.b16 %v402
        %v1043 = vunpack.c.l.b16 %v403
        %v1044 = vunpack.c.l.b16 %v404
        %v1045 = vunpack.c.h.b16 %v404
        %v1046 = vunpack.c.l.b16 %v405
        %v1047 = vpack.c.b16 %v1002, %v999
        %v1048 = vpack.c.b16 %v1003, %v1000
        %v1049 = vpack.c.b16 %v1004, %v1001
        %v1050 = vpack.c.b16 %v1008, %v1005
        %v1051 = vpack.c.b16 %v1009, %v1006
        %v1052 = vpack.c.b16 %v1010, %v1007
        %v1053 = vpack.c.b16 %v1014, %v1011
        %v1054 = vpack.c.b16 %v1015, %v1012
        %v1055 = vpack.c.b16 %v1016, %v1013
        %v1056 = vpack.c.b16 %v1020, %v1017
        %v1057 = vpack.c.b16 %v1021, %v1018
        %v1058 = vpack.c.b16 %v1022, %v1019
        %v1059 = vpack.c.b16 %v1026, %v1023
        %v1060 = vpack.c.b16 %v1027, %v1024
        %v1061 = vpack.c.b16 %v1028, %v1025
        %v1062 = vpack.c.b16 %v1032, %v1029
        %v1063 = vpack.c.b16 %v1033, %v1030
        %v1064 = vpack.c.b16 %v1034, %v1031
        %v1065 = vpack.c.b16 %v1038, %v1035
        %v1066 = vpack.c.b16 %v1039, %v1036
        %v1067 = vpack.c.b16 %v1040, %v1037
        %v1068 = vpack.c.b16 %v1044, %v1041
        %v1069 = vpack.c.b16 %v1045, %v1042
        %v1070 = vpack.c.b16 %v1046, %v1043
        %1095 = vmatprep.subr.bf16.mxu0 0
        %1096 = vmatpush1.bf16.msra.mxu0 %v742
        %1097 = vmatprep.subr.bf16.mxu0 0
        %1098 = vmatpush1.bf16.msra.mxu0 %v745
        %1099 = vmatprep.subr.bf16.mxu0 0
        %1100 = vmatpush1.bf16.msra.mxu0 %v748
        %1101 = vmatprep.subr.bf16.mxu0 0
        %1102 = vmatpush1.bf16.msra.mxu0 %v751
        %1103 = vmatprep.subr.bf16.mxu0 0
        %1104 = vmatpush1.bf16.msra.mxu0 %v754
        %1105 = vmatprep.subr.bf16.mxu0 0
        %1106 = vmatpush1.bf16.msra.mxu0 %v757
        %1107 = vmatprep.subr.bf16.mxu0 0
        %1108 = vmatpush1.bf16.msra.mxu0 %v760
        %1109 = vmatprep.subr.bf16.mxu0 0
        %1110 = vmatpush1.bf16.msra.mxu0 %v763
        %1111 = vmatprep.subr.bf16.mxu0 0
        %1112 = vmatpush1.bf16.msra.mxu0 %v822
        %1113 = vmatprep.subr.bf16.mxu0 0
        %1114 = vmatpush1.bf16.msra.mxu0 %v823
        %1115 = vmatprep.subr.bf16.mxu0 0
        %1116 = vmatpush1.bf16.msra.mxu0 %v824
        %1117 = vmatprep.subr.bf16.mxu0 0
        %1118 = vmatpush1.bf16.msra.mxu0 %v825
        %1119 = vmatprep.subr.bf16.mxu0 0
        %1120 = vmatpush1.bf16.msra.mxu0 %v826
        %1121 = vmatprep.subr.bf16.mxu0 0
        %1122 = vmatpush1.bf16.msra.mxu0 %v827
        %1123 = vmatprep.subr.bf16.mxu0 0
        %1124 = vmatpush1.bf16.msra.mxu0 %v828
        %1125 = vmatprep.subr.bf16.mxu0 0
        %1126 = vmatpush1.bf16.msra.mxu0 %v829
        %1127 = vmatprep.mubr.bf16.mxu0 %v1048
        %1128 = vmatmul.mubr.bf16.gmra.mrb[0].mxu0 %v1047
        %v1129 = vpop.f32.mrb[0].mxu0
        %v1130 = vadd.f32 %v890, %v1129
        %v1131 = vpop.f32.mrb[0].mxu0
        %v1132 = vpop.f32.mrb[0].mxu0
        %v1133 = vadd.f32 %v895, %v1132
        %v1134 = vpop.f32.mrb[0].mxu0
        %1135 = vmatprep.mubr.bf16.mxu0 %v1051
        %1136 = vmatmul.mubr.bf16.gmra.mrb[0].mxu0 %v1050
        %v1137 = vpop.f32.mrb[0].mxu0
        %v1138 = vadd.f32 %v900, %v1137
        %v1139 = vpop.f32.mrb[0].mxu0
        %v1140 = vpop.f32.mrb[0].mxu0
        %v1141 = vadd.f32 %v905, %v1140
        %v1142 = vpop.f32.mrb[0].mxu0
        %1143 = vmatprep.mubr.bf16.mxu0 %v1054
        %1144 = vmatmul.mubr.bf16.gmra.mrb[0].mxu0 %v1053
        %v1145 = vpop.f32.mrb[0].mxu0
        %v1146 = vadd.f32 %v910, %v1145
        %v1147 = vpop.f32.mrb[0].mxu0
        %v1148 = vpop.f32.mrb[0].mxu0
        %v1149 = vadd.f32 %v915, %v1148
        %v1150 = vpop.f32.mrb[0].mxu0
        %1151 = vmatprep.mubr.bf16.mxu0 %v1057
        %1152 = vmatmul.mubr.bf16.gmra.mrb[0].mxu0 %v1056
        %v1153 = vpop.f32.mrb[0].mxu0
        %v1154 = vadd.f32 %v920, %v1153
        %v1155 = vpop.f32.mrb[0].mxu0
        %v1156 = vpop.f32.mrb[0].mxu0
        %v1157 = vadd.f32 %v925, %v1156
        %v1158 = vpop.f32.mrb[0].mxu0
        %1159 = vmatprep.mubr.bf16.mxu0 %v1060
        %1160 = vmatmul.mubr.bf16.gmra.mrb[0].mxu0 %v1059
        %v1161 = vpop.f32.mrb[0].mxu0
        %v1162 = vadd.f32 %v930, %v1161
        %v1163 = vpop.f32.mrb[0].mxu0
        %v1164 = vpop.f32.mrb[0].mxu0
        %v1165 = vadd.f32 %v935, %v1164
        %v1166 = vpop.f32.mrb[0].mxu0
        %1167 = vmatprep.mubr.bf16.mxu0 %v1063
        %1168 = vmatmul.mubr.bf16.gmra.mrb[0].mxu0 %v1062
        %v1169 = vpop.f32.mrb[0].mxu0
        %v1170 = vadd.f32 %v940, %v1169
        %v1171 = vpop.f32.mrb[0].mxu0
        %v1172 = vpop.f32.mrb[0].mxu0
        %v1173 = vadd.f32 %v945, %v1172
        %v1174 = vpop.f32.mrb[0].mxu0
        %1175 = vmatprep.mubr.bf16.mxu0 %v1066
        %1176 = vmatmul.mubr.bf16.gmra.mrb[0].mxu0 %v1065
        %v1177 = vpop.f32.mrb[0].mxu0
        %v1178 = vadd.f32 %v950, %v1177
        %v1179 = vpop.f32.mrb[0].mxu0
        %v1180 = vpop.f32.mrb[0].mxu0
        %v1181 = vadd.f32 %v955, %v1180
        %v1182 = vpop.f32.mrb[0].mxu0
        %1183 = vmatprep.mubr.bf16.mxu0 %v1069
        %1184 = vmatmul.mubr.bf16.gmra.mrb[0].mxu0 %v1068
        %v1185 = vpop.f32.mrb[0].mxu0
        %v1186 = vadd.f32 %v960, %v1185
        %v1187 = vpop.f32.mrb[0].mxu0
        %v1188 = vpop.f32.mrb[0].mxu0
        %v1189 = vadd.f32 %v965, %v1188
        %v1190 = vpop.f32.mrb[0].mxu0
        %1191 = vdwg.mxu0
        %1192 = vmatprep.subr.bf16.mxu0 0
        %1193 = vmatpush1.bf16.msra.mxu0 %v871
        %1194 = vmatprep.subr.bf16.mxu0 0
        %1195 = vmatpush1.bf16.msra.mxu0 %v872
        %1196 = vmatprep.subr.bf16.mxu0 0
        %1197 = vmatpush1.bf16.msra.mxu0 %v873
        %1198 = vmatprep.subr.bf16.mxu0 0
        %1199 = vmatpush1.bf16.msra.mxu0 %v874
        %1200 = vmatprep.subr.bf16.mxu0 0
        %1201 = vmatpush1.bf16.msra.mxu0 %v875
        %1202 = vmatprep.subr.bf16.mxu0 0
        %1203 = vmatpush1.bf16.msra.mxu0 %v876
        %1204 = vmatprep.subr.bf16.mxu0 0
        %1205 = vmatpush1.bf16.msra.mxu0 %v877
        %1206 = vmatprep.subr.bf16.mxu0 0
        %1207 = vmatpush1.bf16.msra.mxu0 %v878
        %1208 = vmatprep.subr.bf16.mxu0 0
        %1209 = vmatpush1.bf16.msra.mxu0 0
        %1210 = vmatprep.subr.bf16.mxu0 0
        %1211 = vmatpush1.bf16.msra.mxu0 0
        %1212 = vmatprep.subr.bf16.mxu0 0
        %1213 = vmatpush1.bf16.msra.mxu0 0
        %1214 = vmatprep.subr.bf16.mxu0 0
        %1215 = vmatpush1.bf16.msra.mxu0 0
        %1216 = vmatprep.subr.bf16.mxu0 0
        %1217 = vmatpush1.bf16.msra.mxu0 0
        %1218 = vmatprep.subr.bf16.mxu0 0
        %1219 = vmatpush1.bf16.msra.mxu0 0
        %1220 = vmatprep.subr.bf16.mxu0 0
        %1221 = vmatpush1.bf16.msra.mxu0 0
        %1222 = vmatprep.subr.bf16.mxu0 0
        %1223 = vmatpush1.bf16.msra.mxu0 0
        %1224 = vmatprep.mubr.bf16.mxu0 0
        %1225 = vmatmul.mubr.bf16.gmra.mrb[0].mxu0 %v1049
        %v1226 = vpop.f32.mrb[0].mxu0
        %v1227 = vadd.f32 %v1130, %v1226
        %v1228 = vpop.f32.mrb[0].mxu0
        %v1229 = vpop.f32.mrb[0].mxu0
        %v1230 = vadd.f32 %v1133, %v1229
        %v1231 = vpop.f32.mrb[0].mxu0
        %1232 = vmatprep.mubr.bf16.mxu0 0
        %1233 = vmatmul.mubr.bf16.gmra.mrb[0].mxu0 %v1052
        %v1234 = vpop.f32.mrb[0].mxu0
        %v1235 = vadd.f32 %v1138, %v1234
        %v1236 = vpop.f32.mrb[0].mxu0
        %v1237 = vpop.f32.mrb[0].mxu0
        %v1238 = vadd.f32 %v1141, %v1237
        %v1239 = vpop.f32.mrb[0].mxu0
        %1240 = vmatprep.mubr.bf16.mxu0 0
        %1241 = vmatmul.mubr.bf16.gmra.mrb[0].mxu0 %v1055
        %v1242 = vpop.f32.mrb[0].mxu0
        %v1243 = vadd.f32 %v1146, %v1242
        %v1244 = vpop.f32.mrb[0].mxu0
        %v1245 = vpop.f32.mrb[0].mxu0
        %v1246 = vadd.f32 %v1149, %v1245
        %v1247 = vpop.f32.mrb[0].mxu0
        %1248 = vmatprep.mubr.bf16.mxu0 0
        %1249 = vmatmul.mubr.bf16.gmra.mrb[0].mxu0 %v1058
        %v1250 = vpop.f32.mrb[0].mxu0
        %v1251 = vadd.f32 %v1154, %v1250
        %v1252 = vpop.f32.mrb[0].mxu0
        %v1253 = vpop.f32.mrb[0].mxu0
        %v1254 = vadd.f32 %v1157, %v1253
        %v1255 = vpop.f32.mrb[0].mxu0
        %1256 = vmatprep.mubr.bf16.mxu0 0
        %1257 = vmatmul.mubr.bf16.gmra.mrb[0].mxu0 %v1061
        %v1258 = vpop.f32.mrb[0].mxu0
        %v1259 = vadd.f32 %v1162, %v1258
        %v1260 = vpop.f32.mrb[0].mxu0
        %v1261 = vpop.f32.mrb[0].mxu0
        %v1262 = vadd.f32 %v1165, %v1261
        %v1263 = vpop.f32.mrb[0].mxu0
        %1264 = vmatprep.mubr.bf16.mxu0 0
        %1265 = vmatmul.mubr.bf16.gmra.mrb[0].mxu0 %v1064
        %v1266 = vpop.f32.mrb[0].mxu0
        %v1267 = vadd.f32 %v1170, %v1266
        %v1268 = vpop.f32.mrb[0].mxu0
        %v1269 = vpop.f32.mrb[0].mxu0
        %v1270 = vadd.f32 %v1173, %v1269
        %v1271 = vpop.f32.mrb[0].mxu0
        %1272 = vmatprep.mubr.bf16.mxu0 0
        %1273 = vmatmul.mubr.bf16.gmra.mrb[0].mxu0 %v1067
        %v1274 = vpop.f32.mrb[0].mxu0
        %v1275 = vadd.f32 %v1178, %v1274
        %v1276 = vpop.f32.mrb[0].mxu0
        %v1277 = vpop.f32.mrb[0].mxu0
        %v1278 = vadd.f32 %v1181, %v1277
        %v1279 = vpop.f32.mrb[0].mxu0
        %1280 = vmatprep.mubr.bf16.mxu0 0
        %1281 = vmatmul.mubr.bf16.gmra.mrb[0].mxu0 %v1070
        %v1282 = vpop.f32.mrb[0].mxu0
        %v1283 = vadd.f32 %v1186, %v1282
        %v1284 = vpop.f32.mrb[0].mxu0
        %v1285 = vpop.f32.mrb[0].mxu0
        %v1286 = vadd.f32 %v1189, %v1285
        %v1287 = vpop.f32.mrb[0].mxu0
        %1288 = vdwg.mxu0
        %v1289 = vmul.f32 %v1227, 0.5
        %v1290 = vmul.f32 %v1230, 0.5
        %v1291 = vmul.f32 %v1235, 0.5
        %v1292 = vmul.f32 %v1238, 0.5
        %v1293 = vmul.f32 %v1243, 0.5
        %v1294 = vmul.f32 %v1246, 0.5
        %v1295 = vmul.f32 %v1251, 0.5
        %v1296 = vmul.f32 %v1254, 0.5
        %v1297 = vmul.f32 %v1259, 0.5
        %v1298 = vmul.f32 %v1262, 0.5
        %v1299 = vmul.f32 %v1267, 0.5
        %v1300 = vmul.f32 %v1270, 0.5
        %v1301 = vmul.f32 %v1275, 0.5
        %v1302 = vmul.f32 %v1278, 0.5
        %v1303 = vmul.f32 %v1283, 0.5
        %v1304 = vmul.f32 %v1286, 0.5
        %v1305 = vmul.f32 %v1227, 0.70710677
        %v1306 = vmul.f32 %v1230, 0.70710677
        %v1307 = vmul.f32 %v1235, 0.70710677
        %v1308 = vmul.f32 %v1238, 0.70710677
        %v1309 = vmul.f32 %v1243, 0.70710677
        %v1310 = vmul.f32 %v1246, 0.70710677
        %v1311 = vmul.f32 %v1251, 0.70710677
        %v1312 = vmul.f32 %v1254, 0.70710677
        %v1313 = vmul.f32 %v1259, 0.70710677
        %v1314 = vmul.f32 %v1262, 0.70710677
        %v1315 = vmul.f32 %v1267, 0.70710677
        %v1316 = vmul.f32 %v1270, 0.70710677
        %v1317 = vmul.f32 %v1275, 0.70710677
        %v1318 = vmul.f32 %v1278, 0.70710677
        %v1319 = vmul.f32 %v1283, 0.70710677
        %v1320 = vmul.f32 %v1286, 0.70710677
        %v1321 = verf.f32.pop %v1305
        %v1322 = verf.f32.pop %v1306
        %v1323 = verf.f32.pop %v1307
        %v1324 = verf.f32.pop %v1308
        %v1325 = verf.f32.pop %v1309
        %v1326 = verf.f32.pop %v1310
        %v1327 = verf.f32.pop %v1311
        %v1328 = verf.f32.pop %v1312
        %v1329 = verf.f32.pop %v1313
        %v1330 = verf.f32.pop %v1314
        %v1331 = verf.f32.pop %v1315
        %v1332 = verf.f32.pop %v1316
        %v1333 = verf.f32.pop %v1317
        %v1334 = verf.f32.pop %v1318
        %v1335 = verf.f32.pop %v1319
        %v1336 = verf.f32.pop %v1320
        %v1337 = vadd.f32 %v1321, 1.0
        %v1338 = vadd.f32 %v1322, 1.0
        %v1339 = vadd.f32 %v1323, 1.0
        %v1340 = vadd.f32 %v1324, 1.0
        %v1341 = vadd.f32 %v1325, 1.0
        %v1342 = vadd.f32 %v1326, 1.0
        %v1343 = vadd.f32 %v1327, 1.0
        %v1344 = vadd.f32 %v1328, 1.0
        %v1345 = vadd.f32 %v1329, 1.0
        %v1346 = vadd.f32 %v1330, 1.0
        %v1347 = vadd.f32 %v1331, 1.0
        %v1348 = vadd.f32 %v1332, 1.0
        %v1349 = vadd.f32 %v1333, 1.0
        %v1350 = vadd.f32 %v1334, 1.0
        %v1351 = vadd.f32 %v1335, 1.0
        %v1352 = vadd.f32 %v1336, 1.0
        %v1353 = vmul.f32 %v1289, %v1337
        %v1354 = vmul.f32 %v1290, %v1338
        %v1355 = vmul.f32 %v1291, %v1339
        %v1356 = vmul.f32 %v1292, %v1340
        %v1357 = vmul.f32 %v1293, %v1341
        %v1358 = vmul.f32 %v1294, %v1342
        %v1359 = vmul.f32 %v1295, %v1343
        %v1360 = vmul.f32 %v1296, %v1344
        %v1361 = vmul.f32 %v1297, %v1345
        %v1362 = vmul.f32 %v1298, %v1346
        %v1363 = vmul.f32 %v1299, %v1347
        %v1364 = vmul.f32 %v1300, %v1348
        %v1365 = vmul.f32 %v1301, %v1349
        %v1366 = vmul.f32 %v1302, %v1350
        %v1367 = vmul.f32 %v1303, %v1351
        %v1368 = vmul.f32 %v1304, %v1352
        %1369 = vadd.xlane.f32.xlu0 %v1353
        %v1370 = vpop.xlane.xlu0 %1369
        %1371 = vadd.xlane.f32.xlu0 %v1354
        %v1372 = vpop.xlane.xlu0 %1371
        %1373 = vadd.xlane.f32.xlu0 %v1355
        %v1374 = vpop.xlane.xlu0 %1373
        %1375 = vadd.xlane.f32.xlu0 %v1356
        %v1376 = vpop.xlane.xlu0 %1375
        %1377 = vadd.xlane.f32.xlu0 %v1357
        %v1378 = vpop.xlane.xlu0 %1377
        %1379 = vadd.xlane.f32.xlu0 %v1358
        %v1380 = vpop.xlane.xlu0 %1379
        %1381 = vadd.xlane.f32.xlu0 %v1359
        %v1382 = vpop.xlane.xlu0 %1381
        %1383 = vadd.xlane.f32.xlu0 %v1360
        %v1384 = vpop.xlane.xlu0 %1383
        %1385 = vadd.xlane.f32.xlu0 %v1361
        %v1386 = vpop.xlane.xlu0 %1385
        %1387 = vadd.xlane.f32.xlu0 %v1362
        %v1388 = vpop.xlane.xlu0 %1387
        %1389 = vadd.xlane.f32.xlu0 %v1363
        %v1390 = vpop.xlane.xlu0 %1389
        %1391 = vadd.xlane.f32.xlu0 %v1364
        %v1392 = vpop.xlane.xlu0 %1391
        %1393 = vadd.xlane.f32.xlu0 %v1365
        %v1394 = vpop.xlane.xlu0 %1393
        %1395 = vadd.xlane.f32.xlu0 %v1366
        %v1396 = vpop.xlane.xlu0 %1395
        %1397 = vadd.xlane.f32.xlu0 %v1367
        %v1398 = vpop.xlane.xlu0 %1397
        %1399 = vadd.xlane.f32.xlu0 %v1368
        %v1400 = vpop.xlane.xlu0 %1399
        %v1401 = vmul.f32 %v1370, %v518
        %v1402 = vmul.f32 %v1372, %v518
        %v1403 = vmul.f32 %v1374, %v518
        %v1404 = vmul.f32 %v1376, %v518
        %v1405 = vmul.f32 %v1378, %v518
        %v1406 = vmul.f32 %v1380, %v518
        %v1407 = vmul.f32 %v1382, %v518
        %v1408 = vmul.f32 %v1384, %v518
        %v1409 = vmul.f32 %v1386, %v518
        %v1410 = vmul.f32 %v1388, %v518
        %v1411 = vmul.f32 %v1390, %v518
        %v1412 = vmul.f32 %v1392, %v518
        %v1413 = vmul.f32 %v1394, %v518
        %v1414 = vmul.f32 %v1396, %v518
        %v1415 = vmul.f32 %v1398, %v518
        %v1416 = vmul.f32 %v1400, %v518
        %v1417 = vsub.f32 %v1353, %v1401
        %v1418 = vsub.f32 %v1354, %v1402
        %v1419 = vsub.f32 %v1355, %v1403
        %v1420 = vsub.f32 %v1356, %v1404
        %v1421 = vsub.f32 %v1357, %v1405
        %v1422 = vsub.f32 %v1358, %v1406
        %v1423 = vsub.f32 %v1359, %v1407
        %v1424 = vsub.f32 %v1360, %v1408
        %v1425 = vsub.f32 %v1361, %v1409
        %v1426 = vsub.f32 %v1362, %v1410
        %v1427 = vsub.f32 %v1363, %v1411
        %v1428 = vsub.f32 %v1364, %v1412
        %v1429 = vsub.f32 %v1365, %v1413
        %v1430 = vsub.f32 %v1366, %v1414
        %v1431 = vsub.f32 %v1367, %v1415
        %v1432 = vsub.f32 %v1368, %v1416
        %v1433 = vmul.f32 %v1417, %v1417
        %v1434 = vmul.f32 %v1418, %v1418
        %v1435 = vmul.f32 %v1419, %v1419
        %v1436 = vmul.f32 %v1420, %v1420
        %v1437 = vmul.f32 %v1421, %v1421
        %v1438 = vmul.f32 %v1422, %v1422
        %v1439 = vmul.f32 %v1423, %v1423
        %v1440 = vmul.f32 %v1424, %v1424
        %v1441 = vmul.f32 %v1425, %v1425
        %v1442 = vmul.f32 %v1426, %v1426
        %v1443 = vmul.f32 %v1427, %v1427
        %v1444 = vmul.f32 %v1428, %v1428
        %v1445 = vmul.f32 %v1429, %v1429
        %v1446 = vmul.f32 %v1430, %v1430
        %v1447 = vmul.f32 %v1431, %v1431
        %v1448 = vmul.f32 %v1432, %v1432
        %1449 = vadd.xlane.f32.xlu0 %v1433
        %v1450 = vpop.xlane.xlu0 %1449
        %1451 = vadd.xlane.f32.xlu0 %v1434
        %v1452 = vpop.xlane.xlu0 %1451
        %1453 = vadd.xlane.f32.xlu0 %v1435
        %v1454 = vpop.xlane.xlu0 %1453
        %1455 = vadd.xlane.f32.xlu0 %v1436
        %v1456 = vpop.xlane.xlu0 %1455
        %1457 = vadd.xlane.f32.xlu0 %v1437
        %v1458 = vpop.xlane.xlu0 %1457
        %1459 = vadd.xlane.f32.xlu0 %v1438
        %v1460 = vpop.xlane.xlu0 %1459
        %1461 = vadd.xlane.f32.xlu0 %v1439
        %v1462 = vpop.xlane.xlu0 %1461
        %1463 = vadd.xlane.f32.xlu0 %v1440
        %v1464 = vpop.xlane.xlu0 %1463
        %1465 = vadd.xlane.f32.xlu0 %v1441
        %v1466 = vpop.xlane.xlu0 %1465
        %1467 = vadd.xlane.f32.xlu0 %v1442
        %v1468 = vpop.xlane.xlu0 %1467
        %1469 = vadd.xlane.f32.xlu0 %v1443
        %v1470 = vpop.xlane.xlu0 %1469
        %1471 = vadd.xlane.f32.xlu0 %v1444
        %v1472 = vpop.xlane.xlu0 %1471
        %1473 = vadd.xlane.f32.xlu0 %v1445
        %v1474 = vpop.xlane.xlu0 %1473
        %1475 = vadd.xlane.f32.xlu0 %v1446
        %v1476 = vpop.xlane.xlu0 %1475
        %1477 = vadd.xlane.f32.xlu0 %v1447
        %v1478 = vpop.xlane.xlu0 %1477
        %1479 = vadd.xlane.f32.xlu0 %v1448
        %v1480 = vpop.xlane.xlu0 %1479
        %v1481 = vmul.f32 %v1450, %v518
        %v1482 = vmul.f32 %v1452, %v518
        %v1483 = vmul.f32 %v1454, %v518
        %v1484 = vmul.f32 %v1456, %v518
        %v1485 = vmul.f32 %v1458, %v518
        %v1486 = vmul.f32 %v1460, %v518
        %v1487 = vmul.f32 %v1462, %v518
        %v1488 = vmul.f32 %v1464, %v518
        %v1489 = vmul.f32 %v1466, %v518
        %v1490 = vmul.f32 %v1468, %v518
        %v1491 = vmul.f32 %v1470, %v518
        %v1492 = vmul.f32 %v1472, %v518
        %v1493 = vmul.f32 %v1474, %v518
        %v1494 = vmul.f32 %v1476, %v518
        %v1495 = vmul.f32 %v1478, %v518
        %v1496 = vmul.f32 %v1480, %v518
        %v1497 = vadd.f32 %v1481, 1e-05
        %v1498 = vadd.f32 %v1482, 1e-05
        %v1499 = vadd.f32 %v1483, 1e-05
        %v1500 = vadd.f32 %v1484, 1e-05
        %v1501 = vadd.f32 %v1485, 1e-05
        %v1502 = vadd.f32 %v1486, 1e-05
        %v1503 = vadd.f32 %v1487, 1e-05
        %v1504 = vadd.f32 %v1488, 1e-05
        %v1505 = vadd.f32 %v1489, 1e-05
        %v1506 = vadd.f32 %v1490, 1e-05
        %v1507 = vadd.f32 %v1491, 1e-05
        %v1508 = vadd.f32 %v1492, 1e-05
        %v1509 = vadd.f32 %v1493, 1e-05
        %v1510 = vadd.f32 %v1494, 1e-05
        %v1511 = vadd.f32 %v1495, 1e-05
        %v1512 = vadd.f32 %v1496, 1e-05
        %v1513 = vrsqrt.pop %v1497
        %v1514 = vrsqrt.pop %v1498
        %v1515 = vrsqrt.pop %v1499
        %v1516 = vrsqrt.pop %v1500
        %v1517 = vrsqrt.pop %v1501
        %v1518 = vrsqrt.pop %v1502
        %v1519 = vrsqrt.pop %v1503
        %v1520 = vrsqrt.pop %v1504
        %v1521 = vrsqrt.pop %v1505
        %v1522 = vrsqrt.pop %v1506
        %v1523 = vrsqrt.pop %v1507
        %v1524 = vrsqrt.pop %v1508
        %v1525 = vrsqrt.pop %v1509
        %v1526 = vrsqrt.pop %v1510
        %v1527 = vrsqrt.pop %v1511
        %v1528 = vrsqrt.pop %v1512
        %v1529 = vmul.f32 %v1417, %v1513
        %v1530 = vmul.f32 %v1418, %v1514
        %v1531 = vmul.f32 %v1419, %v1515
        %v1532 = vmul.f32 %v1420, %v1516
        %v1533 = vmul.f32 %v1421, %v1517
        %v1534 = vmul.f32 %v1422, %v1518
        %v1535 = vmul.f32 %v1423, %v1519
        %v1536 = vmul.f32 %v1424, %v1520
        %v1537 = vmul.f32 %v1425, %v1521
        %v1538 = vmul.f32 %v1426, %v1522
        %v1539 = vmul.f32 %v1427, %v1523
        %v1540 = vmul.f32 %v1428, %v1524
        %v1541 = vmul.f32 %v1429, %v1525
        %v1542 = vmul.f32 %v1430, %v1526
        %v1543 = vmul.f32 %v1431, %v1527
        %v1544 = vmul.f32 %v1432, %v1528
        %v1546 = vlaneseq
        %v1547 = vshrl.u32 %v1546, 7
        %v1548 = vsub.s32 0, %v1547
        %v1549 = vrot.slane %v372, %v1548
        %v1551 = vmul.f32 %v1529, %v1549
        %v1552 = vmul.f32 %v1530, %v1549
        %v1553 = vmul.f32 %v1531, %v1549
        %v1554 = vmul.f32 %v1532, %v1549
        %v1555 = vmul.f32 %v1533, %v1549
        %v1556 = vmul.f32 %v1534, %v1549
        %v1557 = vmul.f32 %v1535, %v1549
        %v1558 = vmul.f32 %v1536, %v1549
        %v1559 = vmul.f32 %v1537, %v1549
        %v1560 = vmul.f32 %v1538, %v1549
        %v1561 = vmul.f32 %v1539, %v1549
        %v1562 = vmul.f32 %v1540, %v1549
        %v1563 = vmul.f32 %v1541, %v1549
        %v1564 = vmul.f32 %v1542, %v1549
        %v1565 = vmul.f32 %v1543, %v1549
        %v1566 = vmul.f32 %v1544, %v1549
        %v1568 = vlaneseq
        %v1569 = vshrl.u32 %v1568, 7
        %v1570 = vsub.s32 0, %v1569
        %v1571 = vrot.slane %v373, %v1570
        %v1573 = vadd.f32 %v1551, %v1571
        %v1574 = vadd.f32 %v1552, %v1571
        %v1575 = vadd.f32 %v1553, %v1571
        %v1576 = vadd.f32 %v1554, %v1571
        %v1577 = vadd.f32 %v1555, %v1571
        %v1578 = vadd.f32 %v1556, %v1571
        %v1579 = vadd.f32 %v1557, %v1571
        %v1580 = vadd.f32 %v1558, %v1571
        %v1581 = vadd.f32 %v1559, %v1571
        %v1582 = vadd.f32 %v1560, %v1571
        %v1583 = vadd.f32 %v1561, %v1571
        %v1584 = vadd.f32 %v1562, %v1571
        %v1585 = vadd.f32 %v1563, %v1571
        %v1586 = vadd.f32 %v1564, %v1571
        %v1587 = vadd.f32 %v1565, %v1571
        %v1588 = vadd.f32 %v1566, %v1571
        %v1589 = vpack.c.bf16 %v1574, %v1573
        %v1590 = vpack.c.bf16 %v1576, %v1575
        %v1591 = vpack.c.bf16 %v1578, %v1577
        %v1592 = vpack.c.bf16 %v1580, %v1579
        %v1593 = vpack.c.bf16 %v1582, %v1581
        %v1594 = vpack.c.bf16 %v1584, %v1583
        %v1595 = vpack.c.bf16 %v1586, %v1585
        %v1596 = vpack.c.bf16 %v1588, %v1587
        %1605 = vrot.lane.b32.xlu0 %v1589, 4
        %v1606 = vpop.permute.xlu0 %1605
        %1607 = vrot.lane.b32.xlu0 %v1590, 4
        %v1608 = vpop.permute.xlu0 %1607
        %1609 = vrot.lane.b32.xlu0 %v1591, 4
        %v1610 = vpop.permute.xlu0 %1609
        %1611 = vrot.lane.b32.xlu0 %v1592, 4
        %v1612 = vpop.permute.xlu0 %1611
        %1613 = vrot.lane.b32.xlu0 %v1593, 4
        %v1614 = vpop.permute.xlu0 %1613
        %1615 = vrot.lane.b32.xlu0 %v1594, 4
        %v1616 = vpop.permute.xlu0 %1615
        %1617 = vrot.lane.b32.xlu0 %v1595, 4
        %v1618 = vpop.permute.xlu0 %1617
        %1619 = vrot.lane.b32.xlu0 %v1596, 4
        %v1620 = vpop.permute.xlu0 %1619
        %vm1621 = vcmask 31744
        %v1623 = vsel %vm1621, 0, %v1606
        %v1626 = vsel %vm1621, 0, %v1608
        %v1629 = vsel %vm1621, 0, %v1610
        %v1632 = vsel %vm1621, 0, %v1612
        %v1635 = vsel %vm1621, 0, %v1614
        %v1638 = vsel %vm1621, 0, %v1616
        %v1641 = vsel %vm1621, 0, %v1618
        %v1644 = vsel %vm1621, 0, %v1620
        %v1646 = vsel %vm1621, %v1606, 0
        %v1647 = vsel %vm1621, %v1608, 0
        %v1648 = vsel %vm1621, %v1610, 0
        %v1649 = vsel %vm1621, %v1612, 0
        %v1650 = vsel %vm1621, %v1614, 0
        %v1651 = vsel %vm1621, %v1616, 0
        %v1652 = vsel %vm1621, %v1618, 0
        %v1653 = vsel %vm1621, %v1620, 0
        %1670 = vrot.lane.b32.xlu0 %v1623, 124
        %v1671 = vpop.permute.xlu0 %1670
        %1672 = vrot.lane.b32.xlu0 %v1646, 124
        %v1673 = vpop.permute.xlu0 %1672
        %1674 = vrot.lane.b32.xlu0 %v1626, 124
        %v1675 = vpop.permute.xlu0 %1674
        %1676 = vrot.lane.b32.xlu0 %v1647, 124
        %v1677 = vpop.permute.xlu0 %1676
        %1678 = vrot.lane.b32.xlu0 %v1629, 124
        %v1679 = vpop.permute.xlu0 %1678
        %1680 = vrot.lane.b32.xlu0 %v1648, 124
        %v1681 = vpop.permute.xlu0 %1680
        %1682 = vrot.lane.b32.xlu0 %v1632, 124
        %v1683 = vpop.permute.xlu0 %1682
        %1684 = vrot.lane.b32.xlu0 %v1649, 124
        %v1685 = vpop.permute.xlu0 %1684
        %1686 = vrot.lane.b32.xlu0 %v1635, 124
        %v1687 = vpop.permute.xlu0 %1686
        %1688 = vrot.lane.b32.xlu0 %v1650, 124
        %v1689 = vpop.permute.xlu0 %1688
        %1690 = vrot.lane.b32.xlu0 %v1638, 124
        %v1691 = vpop.permute.xlu0 %1690
        %1692 = vrot.lane.b32.xlu0 %v1651, 124
        %v1693 = vpop.permute.xlu0 %1692
        %1694 = vrot.lane.b32.xlu0 %v1641, 124
        %v1695 = vpop.permute.xlu0 %1694
        %1696 = vrot.lane.b32.xlu0 %v1652, 124
        %v1697 = vpop.permute.xlu0 %1696
        %1698 = vrot.lane.b32.xlu0 %v1644, 124
        %v1699 = vpop.permute.xlu0 %1698
        %1700 = vrot.lane.b32.xlu0 %v1653, 124
        %v1701 = vpop.permute.xlu0 %1700
        %vm1702 = vcmask 1014784
        %v1703 = vsel %vm1702, %v1671, %v1673
        %v1704 = vsel %vm1702, %v1675, %v1677
        %v1705 = vsel %vm1702, %v1679, %v1681
        %v1706 = vsel %vm1702, %v1683, %v1685
        %v1707 = vsel %vm1702, %v1687, %v1689
        %v1708 = vsel %vm1702, %v1691, %v1693
        %v1709 = vsel %vm1702, %v1695, %v1697
        %v1710 = vsel %vm1702, %v1699, %v1701
        %1719 = vrot.lane.b32.xlu0 %v1623, 120
        %v1720 = vpop.permute.xlu0 %1719
        %1721 = vrot.lane.b32.xlu0 %v1646, 120
        %v1722 = vpop.permute.xlu0 %1721
        %1723 = vrot.lane.b32.xlu0 %v1626, 120
        %v1724 = vpop.permute.xlu0 %1723
        %1725 = vrot.lane.b32.xlu0 %v1647, 120
        %v1726 = vpop.permute.xlu0 %1725
        %1727 = vrot.lane.b32.xlu0 %v1629, 120
        %v1728 = vpop.permute.xlu0 %1727
        %1729 = vrot.lane.b32.xlu0 %v1648, 120
        %v1730 = vpop.permute.xlu0 %1729
        %1731 = vrot.lane.b32.xlu0 %v1632, 120
        %v1732 = vpop.permute.xlu0 %1731
        %1733 = vrot.lane.b32.xlu0 %v1649, 120
        %v1734 = vpop.permute.xlu0 %1733
        %1735 = vrot.lane.b32.xlu0 %v1635, 120
        %v1736 = vpop.permute.xlu0 %1735
        %1737 = vrot.lane.b32.xlu0 %v1650, 120
        %v1738 = vpop.permute.xlu0 %1737
        %1739 = vrot.lane.b32.xlu0 %v1638, 120
        %v1740 = vpop.permute.xlu0 %1739
        %1741 = vrot.lane.b32.xlu0 %v1651, 120
        %v1742 = vpop.permute.xlu0 %1741
        %1743 = vrot.lane.b32.xlu0 %v1641, 120
        %v1744 = vpop.permute.xlu0 %1743
        %1745 = vrot.lane.b32.xlu0 %v1652, 120
        %v1746 = vpop.permute.xlu0 %1745
        %1747 = vrot.lane.b32.xlu0 %v1644, 120
        %v1748 = vpop.permute.xlu0 %1747
        %1749 = vrot.lane.b32.xlu0 %v1653, 120
        %v1750 = vpop.permute.xlu0 %1749
        %vm1751 = vcmask 982016
        %v1752 = vsel %vm1751, %v1720, %v1722
        %v1753 = vsel %vm1751, %v1724, %v1726
        %v1754 = vsel %vm1751, %v1728, %v1730
        %v1755 = vsel %vm1751, %v1732, %v1734
        %v1756 = vsel %vm1751, %v1736, %v1738
        %v1757 = vsel %vm1751, %v1740, %v1742
        %v1758 = vsel %vm1751, %v1744, %v1746
        %v1759 = vsel %vm1751, %v1748, %v1750
        %1769 = vset.pattern.permute.xlu0 0
        %1770 = vperm.xlu0 %1769, %v454
        %v1771 = vpop.permute.xlu0 %1770
        %1774 = vset.pattern.permute.xlu0 0
        %1775 = vperm.xlu0 %1774, %v455
        %v1776 = vpop.permute.xlu0 %1775
        %1779 = vset.pattern.permute.xlu0 0
        %1780 = vperm.xlu0 %1779, %v456
        %v1781 = vpop.permute.xlu0 %1780
        %1784 = vset.pattern.permute.xlu0 0
        %1785 = vperm.xlu0 %1784, %v457
        %v1786 = vpop.permute.xlu0 %1785
        %1789 = vset.pattern.permute.xlu0 0
        %1790 = vperm.xlu0 %1789, %v458
        %v1791 = vpop.permute.xlu0 %1790
        %1794 = vset.pattern.permute.xlu0 0
        %1795 = vperm.xlu0 %1794, %v459
        %v1796 = vpop.permute.xlu0 %1795
        %1799 = vset.pattern.permute.xlu0 0
        %1800 = vperm.xlu0 %1799, %v460
        %v1801 = vpop.permute.xlu0 %1800
        %1804 = vset.pattern.permute.xlu0 0
        %1805 = vperm.xlu0 %1804, %v461
        %v1806 = vpop.permute.xlu0 %1805
        %1809 = vset.pattern.permute.xlu0 0
        %1810 = vperm.xlu0 %1809, %v462
        %v1811 = vpop.permute.xlu0 %1810
        %1814 = vset.pattern.permute.xlu0 0
        %1815 = vperm.xlu0 %1814, %v463
        %v1816 = vpop.permute.xlu0 %1815
        %1819 = vset.pattern.permute.xlu0 0
        %1820 = vperm.xlu0 %1819, %v464
        %v1821 = vpop.permute.xlu0 %1820
        %1824 = vset.pattern.permute.xlu0 0
        %1825 = vperm.xlu0 %1824, %v465
        %v1826 = vpop.permute.xlu0 %1825
        %1829 = vset.pattern.permute.xlu0 0
        %1830 = vperm.xlu0 %1829, %v466
        %v1831 = vpop.permute.xlu0 %1830
        %1834 = vset.pattern.permute.xlu0 0
        %1835 = vperm.xlu0 %1834, %v467
        %v1836 = vpop.permute.xlu0 %1835
        %1839 = vset.pattern.permute.xlu0 0
        %1840 = vperm.xlu0 %1839, %v468
        %v1841 = vpop.permute.xlu0 %1840
        %1844 = vset.pattern.permute.xlu0 0
        %1845 = vperm.xlu0 %1844, %v469
        %v1846 = vpop.permute.xlu0 %1845
        %v1880 = vunpack.c.l.b16 %v422
        %v1881 = vunpack.c.h.b16 %v422
        %v1882 = vunpack.c.l.b16 %v423
        %v1883 = vunpack.c.l.b16 %v424
        %v1884 = vunpack.c.h.b16 %v424
        %v1885 = vunpack.c.l.b16 %v425
        %v1886 = vunpack.c.l.b16 %v426
        %v1887 = vunpack.c.h.b16 %v426
        %v1888 = vunpack.c.l.b16 %v427
        %v1889 = vunpack.c.l.b16 %v428
        %v1890 = vunpack.c.h.b16 %v428
        %v1891 = vunpack.c.l.b16 %v429
        %v1892 = vunpack.c.l.b16 %v430
        %v1893 = vunpack.c.h.b16 %v430
        %v1894 = vunpack.c.l.b16 %v431
        %v1895 = vunpack.c.l.b16 %v432
        %v1896 = vunpack.c.h.b16 %v432
        %v1897 = vunpack.c.l.b16 %v433
        %v1898 = vunpack.c.l.b16 %v434
        %v1899 = vunpack.c.h.b16 %v434
        %v1900 = vunpack.c.l.b16 %v435
        %v1901 = vunpack.c.l.b16 %v436
        %v1902 = vunpack.c.h.b16 %v436
        %v1903 = vunpack.c.l.b16 %v437
        %v1904 = vunpack.c.l.b16 %v438
        %v1905 = vunpack.c.h.b16 %v438
        %v1906 = vunpack.c.l.b16 %v439
        %v1907 = vunpack.c.l.b16 %v440
        %v1908 = vunpack.c.h.b16 %v440
        %v1909 = vunpack.c.l.b16 %v441
        %v1910 = vunpack.c.l.b16 %v442
        %v1911 = vunpack.c.h.b16 %v442
        %v1912 = vunpack.c.l.b16 %v443
        %v1913 = vunpack.c.l.b16 %v444
        %v1914 = vunpack.c.h.b16 %v444
        %v1915 = vunpack.c.l.b16 %v445
        %v1916 = vunpack.c.l.b16 %v446
        %v1917 = vunpack.c.h.b16 %v446
        %v1918 = vunpack.c.l.b16 %v447
        %v1919 = vunpack.c.l.b16 %v448
        %v1920 = vunpack.c.h.b16 %v448
        %v1921 = vunpack.c.l.b16 %v449
        %v1922 = vunpack.c.l.b16 %v450
        %v1923 = vunpack.c.h.b16 %v450
        %v1924 = vunpack.c.l.b16 %v451
        %v1925 = vunpack.c.l.b16 %v452
        %v1926 = vunpack.c.h.b16 %v452
        %v1927 = vunpack.c.l.b16 %v453
        %v1928 = vpack.c.b16 %v1883, %v1880
        %v1929 = vpack.c.b16 %v1884, %v1881
        %v1930 = vpack.c.b16 %v1885, %v1882
        %v1931 = vpack.c.b16 %v1889, %v1886
        %v1932 = vpack.c.b16 %v1890, %v1887
        %v1933 = vpack.c.b16 %v1891, %v1888
        %v1934 = vpack.c.b16 %v1895, %v1892
        %v1935 = vpack.c.b16 %v1896, %v1893
        %v1936 = vpack.c.b16 %v1897, %v1894
        %v1937 = vpack.c.b16 %v1901, %v1898
        %v1938 = vpack.c.b16 %v1902, %v1899
        %v1939 = vpack.c.b16 %v1903, %v1900
        %v1940 = vpack.c.b16 %v1907, %v1904
        %v1941 = vpack.c.b16 %v1908, %v1905
        %v1942 = vpack.c.b16 %v1909, %v1906
        %v1943 = vpack.c.b16 %v1913, %v1910
        %v1944 = vpack.c.b16 %v1914, %v1911
        %v1945 = vpack.c.b16 %v1915, %v1912
        %v1946 = vpack.c.b16 %v1919, %v1916
        %v1947 = vpack.c.b16 %v1920, %v1917
        %v1948 = vpack.c.b16 %v1921, %v1918
        %v1949 = vpack.c.b16 %v1925, %v1922
        %v1950 = vpack.c.b16 %v1926, %v1923
        %v1951 = vpack.c.b16 %v1927, %v1924
        %1976 = vmatprep.subr.bf16.mxu0 0
        %1977 = vmatpush1.bf16.msra.mxu0 %v1623
        %1978 = vmatprep.subr.bf16.mxu0 0
        %1979 = vmatpush1.bf16.msra.mxu0 %v1626
        %1980 = vmatprep.subr.bf16.mxu0 0
        %1981 = vmatpush1.bf16.msra.mxu0 %v1629
        %1982 = vmatprep.subr.bf16.mxu0 0
        %1983 = vmatpush1.bf16.msra.mxu0 %v1632
        %1984 = vmatprep.subr.bf16.mxu0 0
        %1985 = vmatpush1.bf16.msra.mxu0 %v1635
        %1986 = vmatprep.subr.bf16.mxu0 0
        %1987 = vmatpush1.bf16.msra.mxu0 %v1638
        %1988 = vmatprep.subr.bf16.mxu0 0
        %1989 = vmatpush1.bf16.msra.mxu0 %v1641
        %1990 = vmatprep.subr.bf16.mxu0 0
        %1991 = vmatpush1.bf16.msra.mxu0 %v1644
        %1992 = vmatprep.subr.bf16.mxu0 0
        %1993 = vmatpush1.bf16.msra.mxu0 %v1703
        %1994 = vmatprep.subr.bf16.mxu0 0
        %1995 = vmatpush1.bf16.msra.mxu0 %v1704
        %1996 = vmatprep.subr.bf16.mxu0 0
        %1997 = vmatpush1.bf16.msra.mxu0 %v1705
        %1998 = vmatprep.subr.bf16.mxu0 0
        %1999 = vmatpush1.bf16.msra.mxu0 %v1706
        %2000 = vmatprep.subr.bf16.mxu0 0
        %2001 = vmatpush1.bf16.msra.mxu0 %v1707
        %2002 = vmatprep.subr.bf16.mxu0 0
        %2003 = vmatpush1.bf16.msra.mxu0 %v1708
        %2004 = vmatprep.subr.bf16.mxu0 0
        %2005 = vmatpush1.bf16.msra.mxu0 %v1709
        %2006 = vmatprep.subr.bf16.mxu0 0
        %2007 = vmatpush1.bf16.msra.mxu0 %v1710
        %2008 = vmatprep.mubr.bf16.mxu0 %v1929
        %2009 = vmatmul.mubr.bf16.gmra.mrb[0].mxu0 %v1928
        %v2010 = vpop.f32.mrb[0].mxu0
        %v2011 = vadd.f32 %v1771, %v2010
        %v2012 = vpop.f32.mrb[0].mxu0
        %v2013 = vpop.f32.mrb[0].mxu0
        %v2014 = vadd.f32 %v1776, %v2013
        %v2015 = vpop.f32.mrb[0].mxu0
        %2016 = vmatprep.mubr.bf16.mxu0 %v1932
        %2017 = vmatmul.mubr.bf16.gmra.mrb[0].mxu0 %v1931
        %v2018 = vpop.f32.mrb[0].mxu0
        %v2019 = vadd.f32 %v1781, %v2018
        %v2020 = vpop.f32.mrb[0].mxu0
        %v2021 = vpop.f32.mrb[0].mxu0
        %v2022 = vadd.f32 %v1786, %v2021
        %v2023 = vpop.f32.mrb[0].mxu0
        %2024 = vmatprep.mubr.bf16.mxu0 %v1935
        %2025 = vmatmul.mubr.bf16.gmra.mrb[0].mxu0 %v1934
        %v2026 = vpop.f32.mrb[0].mxu0
        %v2027 = vadd.f32 %v1791, %v2026
        %v2028 = vpop.f32.mrb[0].mxu0
        %v2029 = vpop.f32.mrb[0].mxu0
        %v2030 = vadd.f32 %v1796, %v2029
        %v2031 = vpop.f32.mrb[0].mxu0
        %2032 = vmatprep.mubr.bf16.mxu0 %v1938
        %2033 = vmatmul.mubr.bf16.gmra.mrb[0].mxu0 %v1937
        %v2034 = vpop.f32.mrb[0].mxu0
        %v2035 = vadd.f32 %v1801, %v2034
        %v2036 = vpop.f32.mrb[0].mxu0
        %v2037 = vpop.f32.mrb[0].mxu0
        %v2038 = vadd.f32 %v1806, %v2037
        %v2039 = vpop.f32.mrb[0].mxu0
        %2040 = vmatprep.mubr.bf16.mxu0 %v1941
        %2041 = vmatmul.mubr.bf16.gmra.mrb[0].mxu0 %v1940
        %v2042 = vpop.f32.mrb[0].mxu0
        %v2043 = vadd.f32 %v1811, %v2042
        %v2044 = vpop.f32.mrb[0].mxu0
        %v2045 = vpop.f32.mrb[0].mxu0
        %v2046 = vadd.f32 %v1816, %v2045
        %v2047 = vpop.f32.mrb[0].mxu0
        %2048 = vmatprep.mubr.bf16.mxu0 %v1944
        %2049 = vmatmul.mubr.bf16.gmra.mrb[0].mxu0 %v1943
        %v2050 = vpop.f32.mrb[0].mxu0
        %v2051 = vadd.f32 %v1821, %v2050
        %v2052 = vpop.f32.mrb[0].mxu0
        %v2053 = vpop.f32.mrb[0].mxu0
        %v2054 = vadd.f32 %v1826, %v2053
        %v2055 = vpop.f32.mrb[0].mxu0
        %2056 = vmatprep.mubr.bf16.mxu0 %v1947
        %2057 = vmatmul.mubr.bf16.gmra.mrb[0].mxu0 %v1946
        %v2058 = vpop.f32.mrb[0].mxu0
        %v2059 = vadd.f32 %v1831, %v2058
        %v2060 = vpop.f32.mrb[0].mxu0
        %v2061 = vpop.f32.mrb[0].mxu0
        %v2062 = vadd.f32 %v1836, %v2061
        %v2063 = vpop.f32.mrb[0].mxu0
        %2064 = vmatprep.mubr.bf16.mxu0 %v1950
        %2065 = vmatmul.mubr.bf16.gmra.mrb[0].mxu0 %v1949
        %v2066 = vpop.f32.mrb[0].mxu0
        %v2067 = vadd.f32 %v1841, %v2066
        %v2068 = vpop.f32.mrb[0].mxu0
        %v2069 = vpop.f32.mrb[0].mxu0
        %v2070 = vadd.f32 %v1846, %v2069
        %v2071 = vpop.f32.mrb[0].mxu0
        %2072 = vdwg.mxu0
        %2073 = vmatprep.subr.bf16.mxu0 0
        %2074 = vmatpush1.bf16.msra.mxu0 %v1752
        %2075 = vmatprep.subr.bf16.mxu0 0
        %2076 = vmatpush1.bf16.msra.mxu0 %v1753
        %2077 = vmatprep.subr.bf16.mxu0 0
        %2078 = vmatpush1.bf16.msra.mxu0 %v1754
        %2079 = vmatprep.subr.bf16.mxu0 0
        %2080 = vmatpush1.bf16.msra.mxu0 %v1755
        %2081 = vmatprep.subr.bf16.mxu0 0
        %2082 = vmatpush1.bf16.msra.mxu0 %v1756
        %2083 = vmatprep.subr.bf16.mxu0 0
        %2084 = vmatpush1.bf16.msra.mxu0 %v1757
        %2085 = vmatprep.subr.bf16.mxu0 0
        %2086 = vmatpush1.bf16.msra.mxu0 %v1758
        %2087 = vmatprep.subr.bf16.mxu0 0
        %2088 = vmatpush1.bf16.msra.mxu0 %v1759
        %2089 = vmatprep.subr.bf16.mxu0 0
        %2090 = vmatpush1.bf16.msra.mxu0 0
        %2091 = vmatprep.subr.bf16.mxu0 0
        %2092 = vmatpush1.bf16.msra.mxu0 0
        %2093 = vmatprep.subr.bf16.mxu0 0
        %2094 = vmatpush1.bf16.msra.mxu0 0
        %2095 = vmatprep.subr.bf16.mxu0 0
        %2096 = vmatpush1.bf16.msra.mxu0 0
        %2097 = vmatprep.subr.bf16.mxu0 0
        %2098 = vmatpush1.bf16.msra.mxu0 0
        %2099 = vmatprep.subr.bf16.mxu0 0
        %2100 = vmatpush1.bf16.msra.mxu0 0
        %2101 = vmatprep.subr.bf16.mxu0 0
        %2102 = vmatpush1.bf16.msra.mxu0 0
        %2103 = vmatprep.subr.bf16.mxu0 0
        %2104 = vmatpush1.bf16.msra.mxu0 0
        %2105 = vmatprep.mubr.bf16.mxu0 0
        %2106 = vmatmul.mubr.bf16.gmra.mrb[0].mxu0 %v1930
        %v2107 = vpop.f32.mrb[0].mxu0
        %v2108 = vadd.f32 %v2011, %v2107
        %v2109 = vpop.f32.mrb[0].mxu0
        %v2110 = vpop.f32.mrb[0].mxu0
        %v2111 = vadd.f32 %v2014, %v2110
        %v2112 = vpop.f32.mrb[0].mxu0
        %2113 = vmatprep.mubr.bf16.mxu0 0
        %2114 = vmatmul.mubr.bf16.gmra.mrb[0].mxu0 %v1933
        %v2115 = vpop.f32.mrb[0].mxu0
        %v2116 = vadd.f32 %v2019, %v2115
        %v2117 = vpop.f32.mrb[0].mxu0
        %v2118 = vpop.f32.mrb[0].mxu0
        %v2119 = vadd.f32 %v2022, %v2118
        %v2120 = vpop.f32.mrb[0].mxu0
        %2121 = vmatprep.mubr.bf16.mxu0 0
        %2122 = vmatmul.mubr.bf16.gmra.mrb[0].mxu0 %v1936
        %v2123 = vpop.f32.mrb[0].mxu0
        %v2124 = vadd.f32 %v2027, %v2123
        %v2125 = vpop.f32.mrb[0].mxu0
        %v2126 = vpop.f32.mrb[0].mxu0
        %v2127 = vadd.f32 %v2030, %v2126
        %v2128 = vpop.f32.mrb[0].mxu0
        %2129 = vmatprep.mubr.bf16.mxu0 0
        %2130 = vmatmul.mubr.bf16.gmra.mrb[0].mxu0 %v1939
        %v2131 = vpop.f32.mrb[0].mxu0
        %v2132 = vadd.f32 %v2035, %v2131
        %v2133 = vpop.f32.mrb[0].mxu0
        %v2134 = vpop.f32.mrb[0].mxu0
        %v2135 = vadd.f32 %v2038, %v2134
        %v2136 = vpop.f32.mrb[0].mxu0
        %2137 = vmatprep.mubr.bf16.mxu0 0
        %2138 = vmatmul.mubr.bf16.gmra.mrb[0].mxu0 %v1942
        %v2139 = vpop.f32.mrb[0].mxu0
        %v2140 = vadd.f32 %v2043, %v2139
        %v2141 = vpop.f32.mrb[0].mxu0
        %v2142 = vpop.f32.mrb[0].mxu0
        %v2143 = vadd.f32 %v2046, %v2142
        %v2144 = vpop.f32.mrb[0].mxu0
        %2145 = vmatprep.mubr.bf16.mxu0 0
        %2146 = vmatmul.mubr.bf16.gmra.mrb[0].mxu0 %v1945
        %v2147 = vpop.f32.mrb[0].mxu0
        %v2148 = vadd.f32 %v2051, %v2147
        %v2149 = vpop.f32.mrb[0].mxu0
        %v2150 = vpop.f32.mrb[0].mxu0
        %v2151 = vadd.f32 %v2054, %v2150
        %v2152 = vpop.f32.mrb[0].mxu0
        %2153 = vmatprep.mubr.bf16.mxu0 0
        %2154 = vmatmul.mubr.bf16.gmra.mrb[0].mxu0 %v1948
        %v2155 = vpop.f32.mrb[0].mxu0
        %v2156 = vadd.f32 %v2059, %v2155
        %v2157 = vpop.f32.mrb[0].mxu0
        %v2158 = vpop.f32.mrb[0].mxu0
        %v2159 = vadd.f32 %v2062, %v2158
        %v2160 = vpop.f32.mrb[0].mxu0
        %2161 = vmatprep.mubr.bf16.mxu0 0
        %2162 = vmatmul.mubr.bf16.gmra.mrb[0].mxu0 %v1951
        %v2163 = vpop.f32.mrb[0].mxu0
        %v2164 = vadd.f32 %v2067, %v2163
        %v2165 = vpop.f32.mrb[0].mxu0
        %v2166 = vpop.f32.mrb[0].mxu0
        %v2167 = vadd.f32 %v2070, %v2166
        %v2168 = vpop.f32.mrb[0].mxu0
        %2169 = vdwg.mxu0
        %v2170 = vmul.f32 %v2108, 0.5
        %v2171 = vmul.f32 %v2111, 0.5
        %v2172 = vmul.f32 %v2116, 0.5
        %v2173 = vmul.f32 %v2119, 0.5
        %v2174 = vmul.f32 %v2124, 0.5
        %v2175 = vmul.f32 %v2127, 0.5
        %v2176 = vmul.f32 %v2132, 0.5
        %v2177 = vmul.f32 %v2135, 0.5
        %v2178 = vmul.f32 %v2140, 0.5
        %v2179 = vmul.f32 %v2143, 0.5
        %v2180 = vmul.f32 %v2148, 0.5
        %v2181 = vmul.f32 %v2151, 0.5
        %v2182 = vmul.f32 %v2156, 0.5
        %v2183 = vmul.f32 %v2159, 0.5
        %v2184 = vmul.f32 %v2164, 0.5
        %v2185 = vmul.f32 %v2167, 0.5
        %v2186 = vmul.f32 %v2108, 0.70710677
        %v2187 = vmul.f32 %v2111, 0.70710677
        %v2188 = vmul.f32 %v2116, 0.70710677
        %v2189 = vmul.f32 %v2119, 0.70710677
        %v2190 = vmul.f32 %v2124, 0.70710677
        %v2191 = vmul.f32 %v2127, 0.70710677
        %v2192 = vmul.f32 %v2132, 0.70710677
        %v2193 = vmul.f32 %v2135, 0.70710677
        %v2194 = vmul.f32 %v2140, 0.70710677
        %v2195 = vmul.f32 %v2143, 0.70710677
        %v2196 = vmul.f32 %v2148, 0.70710677
        %v2197 = vmul.f32 %v2151, 0.70710677
        %v2198 = vmul.f32 %v2156, 0.70710677
        %v2199 = vmul.f32 %v2159, 0.70710677
        %v2200 = vmul.f32 %v2164, 0.70710677
        %v2201 = vmul.f32 %v2167, 0.70710677
        %v2202 = verf.f32.pop %v2186
        %v2203 = verf.f32.pop %v2187
        %v2204 = verf.f32.pop %v2188
        %v2205 = verf.f32.pop %v2189
        %v2206 = verf.f32.pop %v2190
        %v2207 = verf.f32.pop %v2191
        %v2208 = verf.f32.pop %v2192
        %v2209 = verf.f32.pop %v2193
        %v2210 = verf.f32.pop %v2194
        %v2211 = verf.f32.pop %v2195
        %v2212 = verf.f32.pop %v2196
        %v2213 = verf.f32.pop %v2197
        %v2214 = verf.f32.pop %v2198
        %v2215 = verf.f32.pop %v2199
        %v2216 = verf.f32.pop %v2200
        %v2217 = verf.f32.pop %v2201
        %v2218 = vadd.f32 %v2202, 1.0
        %v2219 = vadd.f32 %v2203, 1.0
        %v2220 = vadd.f32 %v2204, 1.0
        %v2221 = vadd.f32 %v2205, 1.0
        %v2222 = vadd.f32 %v2206, 1.0
        %v2223 = vadd.f32 %v2207, 1.0
        %v2224 = vadd.f32 %v2208, 1.0
        %v2225 = vadd.f32 %v2209, 1.0
        %v2226 = vadd.f32 %v2210, 1.0
        %v2227 = vadd.f32 %v2211, 1.0
        %v2228 = vadd.f32 %v2212, 1.0
        %v2229 = vadd.f32 %v2213, 1.0
        %v2230 = vadd.f32 %v2214, 1.0
        %v2231 = vadd.f32 %v2215, 1.0
        %v2232 = vadd.f32 %v2216, 1.0
        %v2233 = vadd.f32 %v2217, 1.0
        %v2234 = vmul.f32 %v2170, %v2218
        %v2235 = vmul.f32 %v2171, %v2219
        %v2236 = vmul.f32 %v2172, %v2220
        %v2237 = vmul.f32 %v2173, %v2221
        %v2238 = vmul.f32 %v2174, %v2222
        %v2239 = vmul.f32 %v2175, %v2223
        %v2240 = vmul.f32 %v2176, %v2224
        %v2241 = vmul.f32 %v2177, %v2225
        %v2242 = vmul.f32 %v2178, %v2226
        %v2243 = vmul.f32 %v2179, %v2227
        %v2244 = vmul.f32 %v2180, %v2228
        %v2245 = vmul.f32 %v2181, %v2229
        %v2246 = vmul.f32 %v2182, %v2230
        %v2247 = vmul.f32 %v2183, %v2231
        %v2248 = vmul.f32 %v2184, %v2232
        %v2249 = vmul.f32 %v2185, %v2233
        %v2250 = vadd.f32 %v470, %v2234
        %v2251 = vadd.f32 %v471, %v2235
        %v2252 = vadd.f32 %v472, %v2236
        %v2253 = vadd.f32 %v473, %v2237
        %v2254 = vadd.f32 %v474, %v2238
        %v2255 = vadd.f32 %v475, %v2239
        %v2256 = vadd.f32 %v476, %v2240
        %v2257 = vadd.f32 %v477, %v2241
        %v2258 = vadd.f32 %v478, %v2242
        %v2259 = vadd.f32 %v479, %v2243
        %v2260 = vadd.f32 %v480, %v2244
        %v2261 = vadd.f32 %v481, %v2245
        %v2262 = vadd.f32 %v482, %v2246
        %v2263 = vadd.f32 %v483, %v2247
        %v2264 = vadd.f32 %v484, %v2248
        %v2265 = vadd.f32 %v485, %v2249
        %2266 = vst [vmem:[%s366] sm:$0xff] %v2250
        %2267 = vst [vmem:[%s366 + $0x8] sm:$0xff] %v2251
        %2268 = vst [vmem:[%s366 + $0x10] sm:$0xff] %v2252
        %2269 = vst [vmem:[%s366 + $0x18] sm:$0xff] %v2253
        %2270 = vst [vmem:[%s366 + $0x20] sm:$0xff] %v2254
        %2271 = vst [vmem:[%s366 + $0x28] sm:$0xff] %v2255
        %2272 = vst [vmem:[%s366 + $0x30] sm:$0xff] %v2256
        %2273 = vst [vmem:[%s366 + $0x38] sm:$0xff] %v2257
        %2274 = vst [vmem:[%s366 + $0x40] sm:$0xff] %v2258
        %2275 = vst [vmem:[%s366 + $0x48] sm:$0xff] %v2259
        %2276 = vst [vmem:[%s366 + $0x50] sm:$0xff] %v2260
        %2277 = vst [vmem:[%s366 + $0x58] sm:$0xff] %v2261
        %2278 = vst [vmem:[%s366 + $0x60] sm:$0xff] %v2262
        %2279 = vst [vmem:[%s366 + $0x68] sm:$0xff] %v2263
        %2280 = vst [vmem:[%s366 + $0x70] sm:$0xff] %v2264
        %2281 = vst [vmem:[%s366 + $0x78] sm:$0xff] %v2265
        %s2282 = scalar_lea.vmem %s328, 128 [#allocation2]
        %v2283 = vld [vmem:[%s2282] sm:$0xff]
        %v2284 = vld [vmem:[%s2282 + $0x8] sm:$0xff]
        %v2285 = vld [vmem:[%s2282 + $0x10] sm:$0xff]
        %v2286 = vld [vmem:[%s2282 + $0x18] sm:$0xff]
        %v2287 = vld [vmem:[%s2282 + $0x20] sm:$0xff]
        %v2288 = vld [vmem:[%s2282 + $0x28] sm:$0xff]
        %v2289 = vld [vmem:[%s2282 + $0x30] sm:$0xff]
        %v2290 = vld [vmem:[%s2282 + $0x38] sm:$0xff]
        %v2291 = vld [vmem:[%s2282 + $0x40] sm:$0xff]
        %v2292 = vld [vmem:[%s2282 + $0x48] sm:$0xff]
        %v2293 = vld [vmem:[%s2282 + $0x50] sm:$0xff]
        %v2294 = vld [vmem:[%s2282 + $0x58] sm:$0xff]
        %v2295 = vld [vmem:[%s2282 + $0x60] sm:$0xff]
        %v2296 = vld [vmem:[%s2282 + $0x68] sm:$0xff]
        %v2297 = vld [vmem:[%s2282 + $0x70] sm:$0xff]
        %v2298 = vld [vmem:[%s2282 + $0x78] sm:$0xff]
        %2299 = vadd.xlane.f32.xlu0 %v2283
        %v2300 = vpop.xlane.xlu0 %2299
        %2301 = vadd.xlane.f32.xlu0 %v2284
        %v2302 = vpop.xlane.xlu0 %2301
        %2303 = vadd.xlane.f32.xlu0 %v2285
        %v2304 = vpop.xlane.xlu0 %2303
        %2305 = vadd.xlane.f32.xlu0 %v2286
        %v2306 = vpop.xlane.xlu0 %2305
        %2307 = vadd.xlane.f32.xlu0 %v2287
        %v2308 = vpop.xlane.xlu0 %2307
        %2309 = vadd.xlane.f32.xlu0 %v2288
        %v2310 = vpop.xlane.xlu0 %2309
        %2311 = vadd.xlane.f32.xlu0 %v2289
        %v2312 = vpop.xlane.xlu0 %2311
        %2313 = vadd.xlane.f32.xlu0 %v2290
        %v2314 = vpop.xlane.xlu0 %2313
        %2315 = vadd.xlane.f32.xlu0 %v2291
        %v2316 = vpop.xlane.xlu0 %2315
        %2317 = vadd.xlane.f32.xlu0 %v2292
        %v2318 = vpop.xlane.xlu0 %2317
        %2319 = vadd.xlane.f32.xlu0 %v2293
        %v2320 = vpop.xlane.xlu0 %2319
        %2321 = vadd.xlane.f32.xlu0 %v2294
        %v2322 = vpop.xlane.xlu0 %2321
        %2323 = vadd.xlane.f32.xlu0 %v2295
        %v2324 = vpop.xlane.xlu0 %2323
        %2325 = vadd.xlane.f32.xlu0 %v2296
        %v2326 = vpop.xlane.xlu0 %2325
        %2327 = vadd.xlane.f32.xlu0 %v2297
        %v2328 = vpop.xlane.xlu0 %2327
        %2329 = vadd.xlane.f32.xlu0 %v2298
        %v2330 = vpop.xlane.xlu0 %2329
        %v2331 = vmul.f32 %v2300, %v518
        %v2332 = vmul.f32 %v2302, %v518
        %v2333 = vmul.f32 %v2304, %v518
        %v2334 = vmul.f32 %v2306, %v518
        %v2335 = vmul.f32 %v2308, %v518
        %v2336 = vmul.f32 %v2310, %v518
        %v2337 = vmul.f32 %v2312, %v518
        %v2338 = vmul.f32 %v2314, %v518
        %v2339 = vmul.f32 %v2316, %v518
        %v2340 = vmul.f32 %v2318, %v518
        %v2341 = vmul.f32 %v2320, %v518
        %v2342 = vmul.f32 %v2322, %v518
        %v2343 = vmul.f32 %v2324, %v518
        %v2344 = vmul.f32 %v2326, %v518
        %v2345 = vmul.f32 %v2328, %v518
        %v2346 = vmul.f32 %v2330, %v518
        %v2347 = vsub.f32 %v2283, %v2331
        %v2348 = vsub.f32 %v2284, %v2332
        %v2349 = vsub.f32 %v2285, %v2333
        %v2350 = vsub.f32 %v2286, %v2334
        %v2351 = vsub.f32 %v2287, %v2335
        %v2352 = vsub.f32 %v2288, %v2336
        %v2353 = vsub.f32 %v2289, %v2337
        %v2354 = vsub.f32 %v2290, %v2338
        %v2355 = vsub.f32 %v2291, %v2339
        %v2356 = vsub.f32 %v2292, %v2340
        %v2357 = vsub.f32 %v2293, %v2341
        %v2358 = vsub.f32 %v2294, %v2342
        %v2359 = vsub.f32 %v2295, %v2343
        %v2360 = vsub.f32 %v2296, %v2344
        %v2361 = vsub.f32 %v2297, %v2345
        %v2362 = vsub.f32 %v2298, %v2346
        %v2363 = vmul.f32 %v2347, %v2347
        %v2364 = vmul.f32 %v2348, %v2348
        %v2365 = vmul.f32 %v2349, %v2349
        %v2366 = vmul.f32 %v2350, %v2350
        %v2367 = vmul.f32 %v2351, %v2351
        %v2368 = vmul.f32 %v2352, %v2352
        %v2369 = vmul.f32 %v2353, %v2353
        %v2370 = vmul.f32 %v2354, %v2354
        %v2371 = vmul.f32 %v2355, %v2355
        %v2372 = vmul.f32 %v2356, %v2356
        %v2373 = vmul.f32 %v2357, %v2357
        %v2374 = vmul.f32 %v2358, %v2358
        %v2375 = vmul.f32 %v2359, %v2359
        %v2376 = vmul.f32 %v2360, %v2360
        %v2377 = vmul.f32 %v2361, %v2361
        %v2378 = vmul.f32 %v2362, %v2362
        %2379 = vadd.xlane.f32.xlu0 %v2363
        %v2380 = vpop.xlane.xlu0 %2379
        %2381 = vadd.xlane.f32.xlu0 %v2364
        %v2382 = vpop.xlane.xlu0 %2381
        %2383 = vadd.xlane.f32.xlu0 %v2365
        %v2384 = vpop.xlane.xlu0 %2383
        %2385 = vadd.xlane.f32.xlu0 %v2366
        %v2386 = vpop.xlane.xlu0 %2385
        %2387 = vadd.xlane.f32.xlu0 %v2367
        %v2388 = vpop.xlane.xlu0 %2387
        %2389 = vadd.xlane.f32.xlu0 %v2368
        %v2390 = vpop.xlane.xlu0 %2389
        %2391 = vadd.xlane.f32.xlu0 %v2369
        %v2392 = vpop.xlane.xlu0 %2391
        %2393 = vadd.xlane.f32.xlu0 %v2370
        %v2394 = vpop.xlane.xlu0 %2393
        %2395 = vadd.xlane.f32.xlu0 %v2371
        %v2396 = vpop.xlane.xlu0 %2395
        %2397 = vadd.xlane.f32.xlu0 %v2372
        %v2398 = vpop.xlane.xlu0 %2397
        %2399 = vadd.xlane.f32.xlu0 %v2373
        %v2400 = vpop.xlane.xlu0 %2399
        %2401 = vadd.xlane.f32.xlu0 %v2374
        %v2402 = vpop.xlane.xlu0 %2401
        %2403 = vadd.xlane.f32.xlu0 %v2375
        %v2404 = vpop.xlane.xlu0 %2403
        %2405 = vadd.xlane.f32.xlu0 %v2376
        %v2406 = vpop.xlane.xlu0 %2405
        %2407 = vadd.xlane.f32.xlu0 %v2377
        %v2408 = vpop.xlane.xlu0 %2407
        %2409 = vadd.xlane.f32.xlu0 %v2378
        %v2410 = vpop.xlane.xlu0 %2409
        %v2411 = vmul.f32 %v2380, %v518
        %v2412 = vmul.f32 %v2382, %v518
        %v2413 = vmul.f32 %v2384, %v518
        %v2414 = vmul.f32 %v2386, %v518
        %v2415 = vmul.f32 %v2388, %v518
        %v2416 = vmul.f32 %v2390, %v518
        %v2417 = vmul.f32 %v2392, %v518
        %v2418 = vmul.f32 %v2394, %v518
        %v2419 = vmul.f32 %v2396, %v518
        %v2420 = vmul.f32 %v2398, %v518
        %v2421 = vmul.f32 %v2400, %v518
        %v2422 = vmul.f32 %v2402, %v518
        %v2423 = vmul.f32 %v2404, %v518
        %v2424 = vmul.f32 %v2406, %v518
        %v2425 = vmul.f32 %v2408, %v518
        %v2426 = vmul.f32 %v2410, %v518
        %v2427 = vadd.f32 %v2411, 1e-05
        %v2428 = vadd.f32 %v2412, 1e-05
        %v2429 = vadd.f32 %v2413, 1e-05
        %v2430 = vadd.f32 %v2414, 1e-05
        %v2431 = vadd.f32 %v2415, 1e-05
        %v2432 = vadd.f32 %v2416, 1e-05
        %v2433 = vadd.f32 %v2417, 1e-05
        %v2434 = vadd.f32 %v2418, 1e-05
        %v2435 = vadd.f32 %v2419, 1e-05
        %v2436 = vadd.f32 %v2420, 1e-05
        %v2437 = vadd.f32 %v2421, 1e-05
        %v2438 = vadd.f32 %v2422, 1e-05
        %v2439 = vadd.f32 %v2423, 1e-05
        %v2440 = vadd.f32 %v2424, 1e-05
        %v2441 = vadd.f32 %v2425, 1e-05
        %v2442 = vadd.f32 %v2426, 1e-05
        %v2443 = vrsqrt.pop %v2427
        %v2444 = vrsqrt.pop %v2428
        %v2445 = vrsqrt.pop %v2429
        %v2446 = vrsqrt.pop %v2430
        %v2447 = vrsqrt.pop %v2431
        %v2448 = vrsqrt.pop %v2432
        %v2449 = vrsqrt.pop %v2433
        %v2450 = vrsqrt.pop %v2434
        %v2451 = vrsqrt.pop %v2435
        %v2452 = vrsqrt.pop %v2436
        %v2453 = vrsqrt.pop %v2437
        %v2454 = vrsqrt.pop %v2438
        %v2455 = vrsqrt.pop %v2439
        %v2456 = vrsqrt.pop %v2440
        %v2457 = vrsqrt.pop %v2441
        %v2458 = vrsqrt.pop %v2442
        %v2459 = vmul.f32 %v2347, %v2443
        %v2460 = vmul.f32 %v2348, %v2444
        %v2461 = vmul.f32 %v2349, %v2445
        %v2462 = vmul.f32 %v2350, %v2446
        %v2463 = vmul.f32 %v2351, %v2447
        %v2464 = vmul.f32 %v2352, %v2448
        %v2465 = vmul.f32 %v2353, %v2449
        %v2466 = vmul.f32 %v2354, %v2450
        %v2467 = vmul.f32 %v2355, %v2451
        %v2468 = vmul.f32 %v2356, %v2452
        %v2469 = vmul.f32 %v2357, %v2453
        %v2470 = vmul.f32 %v2358, %v2454
        %v2471 = vmul.f32 %v2359, %v2455
        %v2472 = vmul.f32 %v2360, %v2456
        %v2473 = vmul.f32 %v2361, %v2457
        %v2474 = vmul.f32 %v2362, %v2458
        %v2475 = vmul.f32 %v2459, %v667
        %v2476 = vmul.f32 %v2460, %v667
        %v2477 = vmul.f32 %v2461, %v667
        %v2478 = vmul.f32 %v2462, %v667
        %v2479 = vmul.f32 %v2463, %v667
        %v2480 = vmul.f32 %v2464, %v667
        %v2481 = vmul.f32 %v2465, %v667
        %v2482 = vmul.f32 %v2466, %v667
        %v2483 = vmul.f32 %v2467, %v667
        %v2484 = vmul.f32 %v2468, %v667
        %v2485 = vmul.f32 %v2469, %v667
        %v2486 = vmul.f32 %v2470, %v667
        %v2487 = vmul.f32 %v2471, %v667
        %v2488 = vmul.f32 %v2472, %v667
        %v2489 = vmul.f32 %v2473, %v667
        %v2490 = vmul.f32 %v2474, %v667
        %v2491 = vadd.f32 %v2475, %v689
        %v2492 = vadd.f32 %v2476, %v689
        %v2493 = vadd.f32 %v2477, %v689
        %v2494 = vadd.f32 %v2478, %v689
        %v2495 = vadd.f32 %v2479, %v689
        %v2496 = vadd.f32 %v2480, %v689
        %v2497 = vadd.f32 %v2481, %v689
        %v2498 = vadd.f32 %v2482, %v689
        %v2499 = vadd.f32 %v2483, %v689
        %v2500 = vadd.f32 %v2484, %v689
        %v2501 = vadd.f32 %v2485, %v689
        %v2502 = vadd.f32 %v2486, %v689
        %v2503 = vadd.f32 %v2487, %v689
        %v2504 = vadd.f32 %v2488, %v689
        %v2505 = vadd.f32 %v2489, %v689
        %v2506 = vadd.f32 %v2490, %v689
        %v2507 = vpack.c.bf16 %v2492, %v2491
        %v2508 = vpack.c.bf16 %v2494, %v2493
        %v2509 = vpack.c.bf16 %v2496, %v2495
        %v2510 = vpack.c.bf16 %v2498, %v2497
        %v2511 = vpack.c.bf16 %v2500, %v2499
        %v2512 = vpack.c.bf16 %v2502, %v2501
        %v2513 = vpack.c.bf16 %v2504, %v2503
        %v2514 = vpack.c.bf16 %v2506, %v2505
        %2523 = vrot.lane.b32.xlu0 %v2507, 1
        %v2524 = vpop.permute.xlu0 %2523
        %2525 = vrot.lane.b32.xlu0 %v2508, 1
        %v2526 = vpop.permute.xlu0 %2525
        %2527 = vrot.lane.b32.xlu0 %v2509, 1
        %v2528 = vpop.permute.xlu0 %2527
        %2529 = vrot.lane.b32.xlu0 %v2510, 1
        %v2530 = vpop.permute.xlu0 %2529
        %2531 = vrot.lane.b32.xlu0 %v2511, 1
        %v2532 = vpop.permute.xlu0 %2531
        %2533 = vrot.lane.b32.xlu0 %v2512, 1
        %v2534 = vpop.permute.xlu0 %2533
        %2535 = vrot.lane.b32.xlu0 %v2513, 1
        %v2536 = vpop.permute.xlu0 %2535
        %2537 = vrot.lane.b32.xlu0 %v2514, 1
        %v2538 = vpop.permute.xlu0 %2537
        %v2540 = vsel %vm739, 0, %v2524
        %v2543 = vsel %vm739, 0, %v2526
        %v2546 = vsel %vm739, 0, %v2528
        %v2549 = vsel %vm739, 0, %v2530
        %v2552 = vsel %vm739, 0, %v2532
        %v2555 = vsel %vm739, 0, %v2534
        %v2558 = vsel %vm739, 0, %v2536
        %v2561 = vsel %vm739, 0, %v2538
        %v2563 = vsel %vm739, %v2524, 0
        %v2564 = vsel %vm739, %v2526, 0
        %v2565 = vsel %vm739, %v2528, 0
        %v2566 = vsel %vm739, %v2530, 0
        %v2567 = vsel %vm739, %v2532, 0
        %v2568 = vsel %vm739, %v2534, 0
        %v2569 = vsel %vm739, %v2536, 0
        %v2570 = vsel %vm739, %v2538, 0
        %2587 = vrot.lane.b32.xlu0 %v2540, 127
        %v2588 = vpop.permute.xlu0 %2587
        %2589 = vrot.lane.b32.xlu0 %v2563, 127
        %v2590 = vpop.permute.xlu0 %2589
        %2591 = vrot.lane.b32.xlu0 %v2543, 127
        %v2592 = vpop.permute.xlu0 %2591
        %2593 = vrot.lane.b32.xlu0 %v2564, 127
        %v2594 = vpop.permute.xlu0 %2593
        %2595 = vrot.lane.b32.xlu0 %v2546, 127
        %v2596 = vpop.permute.xlu0 %2595
        %2597 = vrot.lane.b32.xlu0 %v2565, 127
        %v2598 = vpop.permute.xlu0 %2597
        %2599 = vrot.lane.b32.xlu0 %v2549, 127
        %v2600 = vpop.permute.xlu0 %2599
        %2601 = vrot.lane.b32.xlu0 %v2566, 127
        %v2602 = vpop.permute.xlu0 %2601
        %2603 = vrot.lane.b32.xlu0 %v2552, 127
        %v2604 = vpop.permute.xlu0 %2603
        %2605 = vrot.lane.b32.xlu0 %v2567, 127
        %v2606 = vpop.permute.xlu0 %2605
        %2607 = vrot.lane.b32.xlu0 %v2555, 127
        %v2608 = vpop.permute.xlu0 %2607
        %2609 = vrot.lane.b32.xlu0 %v2568, 127
        %v2610 = vpop.permute.xlu0 %2609
        %2611 = vrot.lane.b32.xlu0 %v2558, 127
        %v2612 = vpop.permute.xlu0 %2611
        %2613 = vrot.lane.b32.xlu0 %v2569, 127
        %v2614 = vpop.permute.xlu0 %2613
        %2615 = vrot.lane.b32.xlu0 %v2561, 127
        %v2616 = vpop.permute.xlu0 %2615
        %2617 = vrot.lane.b32.xlu0 %v2570, 127
        %v2618 = vpop.permute.xlu0 %2617
        %v2619 = vsel %vm821, %v2588, %v2590
        %v2620 = vsel %vm821, %v2592, %v2594
        %v2621 = vsel %vm821, %v2596, %v2598
        %v2622 = vsel %vm821, %v2600, %v2602
        %v2623 = vsel %vm821, %v2604, %v2606
        %v2624 = vsel %vm821, %v2608, %v2610
        %v2625 = vsel %vm821, %v2612, %v2614
        %v2626 = vsel %vm821, %v2616, %v2618
        %2635 = vrot.lane.b32.xlu0 %v2540, 126
        %v2636 = vpop.permute.xlu0 %2635
        %2637 = vrot.lane.b32.xlu0 %v2563, 126
        %v2638 = vpop.permute.xlu0 %2637
        %2639 = vrot.lane.b32.xlu0 %v2543, 126
        %v2640 = vpop.permute.xlu0 %2639
        %2641 = vrot.lane.b32.xlu0 %v2564, 126
        %v2642 = vpop.permute.xlu0 %2641
        %2643 = vrot.lane.b32.xlu0 %v2546, 126
        %v2644 = vpop.permute.xlu0 %2643
        %2645 = vrot.lane.b32.xlu0 %v2565, 126
        %v2646 = vpop.permute.xlu0 %2645
        %2647 = vrot.lane.b32.xlu0 %v2549, 126
        %v2648 = vpop.permute.xlu0 %2647
        %2649 = vrot.lane.b32.xlu0 %v2566, 126
        %v2650 = vpop.permute.xlu0 %2649
        %2651 = vrot.lane.b32.xlu0 %v2552, 126
        %v2652 = vpop.permute.xlu0 %2651
        %2653 = vrot.lane.b32.xlu0 %v2567, 126
        %v2654 = vpop.permute.xlu0 %2653
        %2655 = vrot.lane.b32.xlu0 %v2555, 126
        %v2656 = vpop.permute.xlu0 %2655
        %2657 = vrot.lane.b32.xlu0 %v2568, 126
        %v2658 = vpop.permute.xlu0 %2657
        %2659 = vrot.lane.b32.xlu0 %v2558, 126
        %v2660 = vpop.permute.xlu0 %2659
        %2661 = vrot.lane.b32.xlu0 %v2569, 126
        %v2662 = vpop.permute.xlu0 %2661
        %2663 = vrot.lane.b32.xlu0 %v2561, 126
        %v2664 = vpop.permute.xlu0 %2663
        %2665 = vrot.lane.b32.xlu0 %v2570, 126
        %v2666 = vpop.permute.xlu0 %2665
        %v2667 = vsel %vm870, %v2636, %v2638
        %v2668 = vsel %vm870, %v2640, %v2642
        %v2669 = vsel %vm870, %v2644, %v2646
        %v2670 = vsel %vm870, %v2648, %v2650
        %v2671 = vsel %vm870, %v2652, %v2654
        %v2672 = vsel %vm870, %v2656, %v2658
        %v2673 = vsel %vm870, %v2660, %v2662
        %v2674 = vsel %vm870, %v2664, %v2666
        %2683 = vmatprep.subr.bf16.mxu0 0
        %2684 = vmatpush1.bf16.msra.mxu0 %v2540
        %2685 = vmatprep.subr.bf16.mxu0 0
        %2686 = vmatpush1.bf16.msra.mxu0 %v2543
        %2687 = vmatprep.subr.bf16.mxu0 0
        %2688 = vmatpush1.bf16.msra.mxu0 %v2546
        %2689 = vmatprep.subr.bf16.mxu0 0
        %2690 = vmatpush1.bf16.msra.mxu0 %v2549
        %2691 = vmatprep.subr.bf16.mxu0 0
        %2692 = vmatpush1.bf16.msra.mxu0 %v2552
        %2693 = vmatprep.subr.bf16.mxu0 0
        %2694 = vmatpush1.bf16.msra.mxu0 %v2555
        %2695 = vmatprep.subr.bf16.mxu0 0
        %2696 = vmatpush1.bf16.msra.mxu0 %v2558
        %2697 = vmatprep.subr.bf16.mxu0 0
        %2698 = vmatpush1.bf16.msra.mxu0 %v2561
        %2699 = vmatprep.subr.bf16.mxu0 0
        %2700 = vmatpush1.bf16.msra.mxu0 %v2619
        %2701 = vmatprep.subr.bf16.mxu0 0
        %2702 = vmatpush1.bf16.msra.mxu0 %v2620
        %2703 = vmatprep.subr.bf16.mxu0 0
        %2704 = vmatpush1.bf16.msra.mxu0 %v2621
        %2705 = vmatprep.subr.bf16.mxu0 0
        %2706 = vmatpush1.bf16.msra.mxu0 %v2622
        %2707 = vmatprep.subr.bf16.mxu0 0
        %2708 = vmatpush1.bf16.msra.mxu0 %v2623
        %2709 = vmatprep.subr.bf16.mxu0 0
        %2710 = vmatpush1.bf16.msra.mxu0 %v2624
        %2711 = vmatprep.subr.bf16.mxu0 0
        %2712 = vmatpush1.bf16.msra.mxu0 %v2625
        %2713 = vmatprep.subr.bf16.mxu0 0
        %2714 = vmatpush1.bf16.msra.mxu0 %v2626
        %2715 = vmatprep.mubr.bf16.mxu0 %v1048
        %2716 = vmatmul.mubr.bf16.gmra.mrb[0].mxu0 %v1047
        %v2717 = vpop.f32.mrb[0].mxu0
        %v2718 = vadd.f32 %v890, %v2717
        %v2719 = vpop.f32.mrb[0].mxu0
        %v2720 = vpop.f32.mrb[0].mxu0
        %v2721 = vadd.f32 %v895, %v2720
        %v2722 = vpop.f32.mrb[0].mxu0
        %2723 = vmatprep.mubr.bf16.mxu0 %v1051
        %2724 = vmatmul.mubr.bf16.gmra.mrb[0].mxu0 %v1050
        %v2725 = vpop.f32.mrb[0].mxu0
        %v2726 = vadd.f32 %v900, %v2725
        %v2727 = vpop.f32.mrb[0].mxu0
        %v2728 = vpop.f32.mrb[0].mxu0
        %v2729 = vadd.f32 %v905, %v2728
        %v2730 = vpop.f32.mrb[0].mxu0
        %2731 = vmatprep.mubr.bf16.mxu0 %v1054
        %2732 = vmatmul.mubr.bf16.gmra.mrb[0].mxu0 %v1053
        %v2733 = vpop.f32.mrb[0].mxu0
        %v2734 = vadd.f32 %v910, %v2733
        %v2735 = vpop.f32.mrb[0].mxu0
        %v2736 = vpop.f32.mrb[0].mxu0
        %v2737 = vadd.f32 %v915, %v2736
        %v2738 = vpop.f32.mrb[0].mxu0
        %2739 = vmatprep.mubr.bf16.mxu0 %v1057
        %2740 = vmatmul.mubr.bf16.gmra.mrb[0].mxu0 %v1056
        %v2741 = vpop.f32.mrb[0].mxu0
        %v2742 = vadd.f32 %v920, %v2741
        %v2743 = vpop.f32.mrb[0].mxu0
        %v2744 = vpop.f32.mrb[0].mxu0
        %v2745 = vadd.f32 %v925, %v2744
        %v2746 = vpop.f32.mrb[0].mxu0
        %2747 = vmatprep.mubr.bf16.mxu0 %v1060
        %2748 = vmatmul.mubr.bf16.gmra.mrb[0].mxu0 %v1059
        %v2749 = vpop.f32.mrb[0].mxu0
        %v2750 = vadd.f32 %v930, %v2749
        %v2751 = vpop.f32.mrb[0].mxu0
        %v2752 = vpop.f32.mrb[0].mxu0
        %v2753 = vadd.f32 %v935, %v2752
        %v2754 = vpop.f32.mrb[0].mxu0
        %2755 = vmatprep.mubr.bf16.mxu0 %v1063
        %2756 = vmatmul.mubr.bf16.gmra.mrb[0].mxu0 %v1062
        %v2757 = vpop.f32.mrb[0].mxu0
        %v2758 = vadd.f32 %v940, %v2757
        %v2759 = vpop.f32.mrb[0].mxu0
        %v2760 = vpop.f32.mrb[0].mxu0
        %v2761 = vadd.f32 %v945, %v2760
        %v2762 = vpop.f32.mrb[0].mxu0
        %2763 = vmatprep.mubr.bf16.mxu0 %v1066
        %2764 = vmatmul.mubr.bf16.gmra.mrb[0].mxu0 %v1065
        %v2765 = vpop.f32.mrb[0].mxu0
        %v2766 = vadd.f32 %v950, %v2765
        %v2767 = vpop.f32.mrb[0].mxu0
        %v2768 = vpop.f32.mrb[0].mxu0
        %v2769 = vadd.f32 %v955, %v2768
        %v2770 = vpop.f32.mrb[0].mxu0
        %2771 = vmatprep.mubr.bf16.mxu0 %v1069
        %2772 = vmatmul.mubr.bf16.gmra.mrb[0].mxu0 %v1068
        %v2773 = vpop.f32.mrb[0].mxu0
        %v2774 = vadd.f32 %v960, %v2773
        %v2775 = vpop.f32.mrb[0].mxu0
        %v2776 = vpop.f32.mrb[0].mxu0
        %v2777 = vadd.f32 %v965, %v2776
        %v2778 = vpop.f32.mrb[0].mxu0
        %2779 = vdwg.mxu0
        %2780 = vmatprep.subr.bf16.mxu0 0
        %2781 = vmatpush1.bf16.msra.mxu0 %v2667
        %2782 = vmatprep.subr.bf16.mxu0 0
        %2783 = vmatpush1.bf16.msra.mxu0 %v2668
        %2784 = vmatprep.subr.bf16.mxu0 0
        %2785 = vmatpush1.bf16.msra.mxu0 %v2669
        %2786 = vmatprep.subr.bf16.mxu0 0
        %2787 = vmatpush1.bf16.msra.mxu0 %v2670
        %2788 = vmatprep.subr.bf16.mxu0 0
        %2789 = vmatpush1.bf16.msra.mxu0 %v2671
        %2790 = vmatprep.subr.bf16.mxu0 0
        %2791 = vmatpush1.bf16.msra.mxu0 %v2672
        %2792 = vmatprep.subr.bf16.mxu0 0
        %2793 = vmatpush1.bf16.msra.mxu0 %v2673
        %2794 = vmatprep.subr.bf16.mxu0 0
        %2795 = vmatpush1.bf16.msra.mxu0 %v2674
        %2796 = vmatprep.subr.bf16.mxu0 0
        %2797 = vmatpush1.bf16.msra.mxu0 0
        %2798 = vmatprep.subr.bf16.mxu0 0
        %2799 = vmatpush1.bf16.msra.mxu0 0
        %2800 = vmatprep.subr.bf16.mxu0 0
        %2801 = vmatpush1.bf16.msra.mxu0 0
        %2802 = vmatprep.subr.bf16.mxu0 0
        %2803 = vmatpush1.bf16.msra.mxu0 0
        %2804 = vmatprep.subr.bf16.mxu0 0
        %2805 = vmatpush1.bf16.msra.mxu0 0
        %2806 = vmatprep.subr.bf16.mxu0 0
        %2807 = vmatpush1.bf16.msra.mxu0 0
        %2808 = vmatprep.subr.bf16.mxu0 0
        %2809 = vmatpush1.bf16.msra.mxu0 0
        %2810 = vmatprep.subr.bf16.mxu0 0
        %2811 = vmatpush1.bf16.msra.mxu0 0
        %2812 = vmatprep.mubr.bf16.mxu0 0
        %2813 = vmatmul.mubr.bf16.gmra.mrb[0].mxu0 %v1049
        %v2814 = vpop.f32.mrb[0].mxu0
        %v2815 = vadd.f32 %v2718, %v2814
        %v2816 = vpop.f32.mrb[0].mxu0
        %v2817 = vpop.f32.mrb[0].mxu0
        %v2818 = vadd.f32 %v2721, %v2817
        %v2819 = vpop.f32.mrb[0].mxu0
        %2820 = vmatprep.mubr.bf16.mxu0 0
        %2821 = vmatmul.mubr.bf16.gmra.mrb[0].mxu0 %v1052
        %v2822 = vpop.f32.mrb[0].mxu0
        %v2823 = vadd.f32 %v2726, %v2822
        %v2824 = vpop.f32.mrb[0].mxu0
        %v2825 = vpop.f32.mrb[0].mxu0
        %v2826 = vadd.f32 %v2729, %v2825
        %v2827 = vpop.f32.mrb[0].mxu0
        %2828 = vmatprep.mubr.bf16.mxu0 0
        %2829 = vmatmul.mubr.bf16.gmra.mrb[0].mxu0 %v1055
        %v2830 = vpop.f32.mrb[0].mxu0
        %v2831 = vadd.f32 %v2734, %v2830
        %v2832 = vpop.f32.mrb[0].mxu0
        %v2833 = vpop.f32.mrb[0].mxu0
        %v2834 = vadd.f32 %v2737, %v2833
        %v2835 = vpop.f32.mrb[0].mxu0
        %2836 = vmatprep.mubr.bf16.mxu0 0
        %2837 = vmatmul.mubr.bf16.gmra.mrb[0].mxu0 %v1058
        %v2838 = vpop.f32.mrb[0].mxu0
        %v2839 = vadd.f32 %v2742, %v2838
        %v2840 = vpop.f32.mrb[0].mxu0
        %v2841 = vpop.f32.mrb[0].mxu0
        %v2842 = vadd.f32 %v2745, %v2841
        %v2843 = vpop.f32.mrb[0].mxu0
        %2844 = vmatprep.mubr.bf16.mxu0 0
        %2845 = vmatmul.mubr.bf16.gmra.mrb[0].mxu0 %v1061
        %v2846 = vpop.f32.mrb[0].mxu0
        %v2847 = vadd.f32 %v2750, %v2846
        %v2848 = vpop.f32.mrb[0].mxu0
        %v2849 = vpop.f32.mrb[0].mxu0
        %v2850 = vadd.f32 %v2753, %v2849
        %v2851 = vpop.f32.mrb[0].mxu0
        %2852 = vmatprep.mubr.bf16.mxu0 0
        %2853 = vmatmul.mubr.bf16.gmra.mrb[0].mxu0 %v1064
        %v2854 = vpop.f32.mrb[0].mxu0
        %v2855 = vadd.f32 %v2758, %v2854
        %v2856 = vpop.f32.mrb[0].mxu0
        %v2857 = vpop.f32.mrb[0].mxu0
        %v2858 = vadd.f32 %v2761, %v2857
        %v2859 = vpop.f32.mrb[0].mxu0
        %2860 = vmatprep.mubr.bf16.mxu0 0
        %2861 = vmatmul.mubr.bf16.gmra.mrb[0].mxu0 %v1067
        %v2862 = vpop.f32.mrb[0].mxu0
        %v2863 = vadd.f32 %v2766, %v2862
        %v2864 = vpop.f32.mrb[0].mxu0
        %v2865 = vpop.f32.mrb[0].mxu0
        %v2866 = vadd.f32 %v2769, %v2865
        %v2867 = vpop.f32.mrb[0].mxu0
        %2868 = vmatprep.mubr.bf16.mxu0 0
        %2869 = vmatmul.mubr.bf16.gmra.mrb[0].mxu0 %v1070
        %v2870 = vpop.f32.mrb[0].mxu0
        %v2871 = vadd.f32 %v2774, %v2870
        %v2872 = vpop.f32.mrb[0].mxu0
        %v2873 = vpop.f32.mrb[0].mxu0
        %v2874 = vadd.f32 %v2777, %v2873
        %v2875 = vpop.f32.mrb[0].mxu0
        %2876 = vdwg.mxu0
        %v2877 = vmul.f32 %v2815, 0.5
        %v2878 = vmul.f32 %v2818, 0.5
        %v2879 = vmul.f32 %v2823, 0.5
        %v2880 = vmul.f32 %v2826, 0.5
        %v2881 = vmul.f32 %v2831, 0.5
        %v2882 = vmul.f32 %v2834, 0.5
        %v2883 = vmul.f32 %v2839, 0.5
        %v2884 = vmul.f32 %v2842, 0.5
        %v2885 = vmul.f32 %v2847, 0.5
        %v2886 = vmul.f32 %v2850, 0.5
        %v2887 = vmul.f32 %v2855, 0.5
        %v2888 = vmul.f32 %v2858, 0.5
        %v2889 = vmul.f32 %v2863, 0.5
        %v2890 = vmul.f32 %v2866, 0.5
        %v2891 = vmul.f32 %v2871, 0.5
        %v2892 = vmul.f32 %v2874, 0.5
        %v2893 = vmul.f32 %v2815, 0.70710677
        %v2894 = vmul.f32 %v2818, 0.70710677
        %v2895 = vmul.f32 %v2823, 0.70710677
        %v2896 = vmul.f32 %v2826, 0.70710677
        %v2897 = vmul.f32 %v2831, 0.70710677
        %v2898 = vmul.f32 %v2834, 0.70710677
        %v2899 = vmul.f32 %v2839, 0.70710677
        %v2900 = vmul.f32 %v2842, 0.70710677
        %v2901 = vmul.f32 %v2847, 0.70710677
        %v2902 = vmul.f32 %v2850, 0.70710677
        %v2903 = vmul.f32 %v2855, 0.70710677
        %v2904 = vmul.f32 %v2858, 0.70710677
        %v2905 = vmul.f32 %v2863, 0.70710677
        %v2906 = vmul.f32 %v2866, 0.70710677
        %v2907 = vmul.f32 %v2871, 0.70710677
        %v2908 = vmul.f32 %v2874, 0.70710677
        %v2909 = verf.f32.pop %v2893
        %v2910 = verf.f32.pop %v2894
        %v2911 = verf.f32.pop %v2895
        %v2912 = verf.f32.pop %v2896
        %v2913 = verf.f32.pop %v2897
        %v2914 = verf.f32.pop %v2898
        %v2915 = verf.f32.pop %v2899
        %v2916 = verf.f32.pop %v2900
        %v2917 = verf.f32.pop %v2901
        %v2918 = verf.f32.pop %v2902
        %v2919 = verf.f32.pop %v2903
        %v2920 = verf.f32.pop %v2904
        %v2921 = verf.f32.pop %v2905
        %v2922 = verf.f32.pop %v2906
        %v2923 = verf.f32.pop %v2907
        %v2924 = verf.f32.pop %v2908
        %v2925 = vadd.f32 %v2909, 1.0
        %v2926 = vadd.f32 %v2910, 1.0
        %v2927 = vadd.f32 %v2911, 1.0
        %v2928 = vadd.f32 %v2912, 1.0
        %v2929 = vadd.f32 %v2913, 1.0
        %v2930 = vadd.f32 %v2914, 1.0
        %v2931 = vadd.f32 %v2915, 1.0
        %v2932 = vadd.f32 %v2916, 1.0
        %v2933 = vadd.f32 %v2917, 1.0
        %v2934 = vadd.f32 %v2918, 1.0
        %v2935 = vadd.f32 %v2919, 1.0
        %v2936 = vadd.f32 %v2920, 1.0
        %v2937 = vadd.f32 %v2921, 1.0
        %v2938 = vadd.f32 %v2922, 1.0
        %v2939 = vadd.f32 %v2923, 1.0
        %v2940 = vadd.f32 %v2924, 1.0
        %v2941 = vmul.f32 %v2877, %v2925
        %v2942 = vmul.f32 %v2878, %v2926
        %v2943 = vmul.f32 %v2879, %v2927
        %v2944 = vmul.f32 %v2880, %v2928
        %v2945 = vmul.f32 %v2881, %v2929
        %v2946 = vmul.f32 %v2882, %v2930
        %v2947 = vmul.f32 %v2883, %v2931
        %v2948 = vmul.f32 %v2884, %v2932
        %v2949 = vmul.f32 %v2885, %v2933
        %v2950 = vmul.f32 %v2886, %v2934
        %v2951 = vmul.f32 %v2887, %v2935
        %v2952 = vmul.f32 %v2888, %v2936
        %v2953 = vmul.f32 %v2889, %v2937
        %v2954 = vmul.f32 %v2890, %v2938
        %v2955 = vmul.f32 %v2891, %v2939
        %v2956 = vmul.f32 %v2892, %v2940
        %2957 = vadd.xlane.f32.xlu0 %v2941
        %v2958 = vpop.xlane.xlu0 %2957
        %2959 = vadd.xlane.f32.xlu0 %v2942
        %v2960 = vpop.xlane.xlu0 %2959
        %2961 = vadd.xlane.f32.xlu0 %v2943
        %v2962 = vpop.xlane.xlu0 %2961
        %2963 = vadd.xlane.f32.xlu0 %v2944
        %v2964 = vpop.xlane.xlu0 %2963
        %2965 = vadd.xlane.f32.xlu0 %v2945
        %v2966 = vpop.xlane.xlu0 %2965
        %2967 = vadd.xlane.f32.xlu0 %v2946
        %v2968 = vpop.xlane.xlu0 %2967
        %2969 = vadd.xlane.f32.xlu0 %v2947
        %v2970 = vpop.xlane.xlu0 %2969
        %2971 = vadd.xlane.f32.xlu0 %v2948
        %v2972 = vpop.xlane.xlu0 %2971
        %2973 = vadd.xlane.f32.xlu0 %v2949
        %v2974 = vpop.xlane.xlu0 %2973
        %2975 = vadd.xlane.f32.xlu0 %v2950
        %v2976 = vpop.xlane.xlu0 %2975
        %2977 = vadd.xlane.f32.xlu0 %v2951
        %v2978 = vpop.xlane.xlu0 %2977
        %2979 = vadd.xlane.f32.xlu0 %v2952
        %v2980 = vpop.xlane.xlu0 %2979
        %2981 = vadd.xlane.f32.xlu0 %v2953
        %v2982 = vpop.xlane.xlu0 %2981
        %2983 = vadd.xlane.f32.xlu0 %v2954
        %v2984 = vpop.xlane.xlu0 %2983
        %2985 = vadd.xlane.f32.xlu0 %v2955
        %v2986 = vpop.xlane.xlu0 %2985
        %2987 = vadd.xlane.f32.xlu0 %v2956
        %v2988 = vpop.xlane.xlu0 %2987
        %v2989 = vmul.f32 %v2958, %v518
        %v2990 = vmul.f32 %v2960, %v518
        %v2991 = vmul.f32 %v2962, %v518
        %v2992 = vmul.f32 %v2964, %v518
        %v2993 = vmul.f32 %v2966, %v518
        %v2994 = vmul.f32 %v2968, %v518
        %v2995 = vmul.f32 %v2970, %v518
        %v2996 = vmul.f32 %v2972, %v518
        %v2997 = vmul.f32 %v2974, %v518
        %v2998 = vmul.f32 %v2976, %v518
        %v2999 = vmul.f32 %v2978, %v518
        %v3000 = vmul.f32 %v2980, %v518
        %v3001 = vmul.f32 %v2982, %v518
        %v3002 = vmul.f32 %v2984, %v518
        %v3003 = vmul.f32 %v2986, %v518
        %v3004 = vmul.f32 %v2988, %v518
        %v3005 = vsub.f32 %v2941, %v2989
        %v3006 = vsub.f32 %v2942, %v2990
        %v3007 = vsub.f32 %v2943, %v2991
        %v3008 = vsub.f32 %v2944, %v2992
        %v3009 = vsub.f32 %v2945, %v2993
        %v3010 = vsub.f32 %v2946, %v2994
        %v3011 = vsub.f32 %v2947, %v2995
        %v3012 = vsub.f32 %v2948, %v2996
        %v3013 = vsub.f32 %v2949, %v2997
        %v3014 = vsub.f32 %v2950, %v2998
        %v3015 = vsub.f32 %v2951, %v2999
        %v3016 = vsub.f32 %v2952, %v3000
        %v3017 = vsub.f32 %v2953, %v3001
        %v3018 = vsub.f32 %v2954, %v3002
        %v3019 = vsub.f32 %v2955, %v3003
        %v3020 = vsub.f32 %v2956, %v3004
        %v3021 = vmul.f32 %v3005, %v3005
        %v3022 = vmul.f32 %v3006, %v3006
        %v3023 = vmul.f32 %v3007, %v3007
        %v3024 = vmul.f32 %v3008, %v3008
        %v3025 = vmul.f32 %v3009, %v3009
        %v3026 = vmul.f32 %v3010, %v3010
        %v3027 = vmul.f32 %v3011, %v3011
        %v3028 = vmul.f32 %v3012, %v3012
        %v3029 = vmul.f32 %v3013, %v3013
        %v3030 = vmul.f32 %v3014, %v3014
        %v3031 = vmul.f32 %v3015, %v3015
        %v3032 = vmul.f32 %v3016, %v3016
        %v3033 = vmul.f32 %v3017, %v3017
        %v3034 = vmul.f32 %v3018, %v3018
        %v3035 = vmul.f32 %v3019, %v3019
        %v3036 = vmul.f32 %v3020, %v3020
        %3037 = vadd.xlane.f32.xlu0 %v3021
        %v3038 = vpop.xlane.xlu0 %3037
        %3039 = vadd.xlane.f32.xlu0 %v3022
        %v3040 = vpop.xlane.xlu0 %3039
        %3041 = vadd.xlane.f32.xlu0 %v3023
        %v3042 = vpop.xlane.xlu0 %3041
        %3043 = vadd.xlane.f32.xlu0 %v3024
        %v3044 = vpop.xlane.xlu0 %3043
        %3045 = vadd.xlane.f32.xlu0 %v3025
        %v3046 = vpop.xlane.xlu0 %3045
        %3047 = vadd.xlane.f32.xlu0 %v3026
        %v3048 = vpop.xlane.xlu0 %3047
        %3049 = vadd.xlane.f32.xlu0 %v3027
        %v3050 = vpop.xlane.xlu0 %3049
        %3051 = vadd.xlane.f32.xlu0 %v3028
        %v3052 = vpop.xlane.xlu0 %3051
        %3053 = vadd.xlane.f32.xlu0 %v3029
        %v3054 = vpop.xlane.xlu0 %3053
        %3055 = vadd.xlane.f32.xlu0 %v3030
        %v3056 = vpop.xlane.xlu0 %3055
        %3057 = vadd.xlane.f32.xlu0 %v3031
        %v3058 = vpop.xlane.xlu0 %3057
        %3059 = vadd.xlane.f32.xlu0 %v3032
        %v3060 = vpop.xlane.xlu0 %3059
        %3061 = vadd.xlane.f32.xlu0 %v3033
        %v3062 = vpop.xlane.xlu0 %3061
        %3063 = vadd.xlane.f32.xlu0 %v3034
        %v3064 = vpop.xlane.xlu0 %3063
        %3065 = vadd.xlane.f32.xlu0 %v3035
        %v3066 = vpop.xlane.xlu0 %3065
        %3067 = vadd.xlane.f32.xlu0 %v3036
        %v3068 = vpop.xlane.xlu0 %3067
        %v3069 = vmul.f32 %v3038, %v518
        %v3070 = vmul.f32 %v3040, %v518
        %v3071 = vmul.f32 %v3042, %v518
        %v3072 = vmul.f32 %v3044, %v518
        %v3073 = vmul.f32 %v3046, %v518
        %v3074 = vmul.f32 %v3048, %v518
        %v3075 = vmul.f32 %v3050, %v518
        %v3076 = vmul.f32 %v3052, %v518
        %v3077 = vmul.f32 %v3054, %v518
        %v3078 = vmul.f32 %v3056, %v518
        %v3079 = vmul.f32 %v3058, %v518
        %v3080 = vmul.f32 %v3060, %v518
        %v3081 = vmul.f32 %v3062, %v518
        %v3082 = vmul.f32 %v3064, %v518
        %v3083 = vmul.f32 %v3066, %v518
        %v3084 = vmul.f32 %v3068, %v518
        %v3085 = vadd.f32 %v3069, 1e-05
        %v3086 = vadd.f32 %v3070, 1e-05
        %v3087 = vadd.f32 %v3071, 1e-05
        %v3088 = vadd.f32 %v3072, 1e-05
        %v3089 = vadd.f32 %v3073, 1e-05
        %v3090 = vadd.f32 %v3074, 1e-05
        %v3091 = vadd.f32 %v3075, 1e-05
        %v3092 = vadd.f32 %v3076, 1e-05
        %v3093 = vadd.f32 %v3077, 1e-05
        %v3094 = vadd.f32 %v3078, 1e-05
        %v3095 = vadd.f32 %v3079, 1e-05
        %v3096 = vadd.f32 %v3080, 1e-05
        %v3097 = vadd.f32 %v3081, 1e-05
        %v3098 = vadd.f32 %v3082, 1e-05
        %v3099 = vadd.f32 %v3083, 1e-05
        %v3100 = vadd.f32 %v3084, 1e-05
        %v3101 = vrsqrt.pop %v3085
        %v3102 = vrsqrt.pop %v3086
        %v3103 = vrsqrt.pop %v3087
        %v3104 = vrsqrt.pop %v3088
        %v3105 = vrsqrt.pop %v3089
        %v3106 = vrsqrt.pop %v3090
        %v3107 = vrsqrt.pop %v3091
        %v3108 = vrsqrt.pop %v3092
        %v3109 = vrsqrt.pop %v3093
        %v3110 = vrsqrt.pop %v3094
        %v3111 = vrsqrt.pop %v3095
        %v3112 = vrsqrt.pop %v3096
        %v3113 = vrsqrt.pop %v3097
        %v3114 = vrsqrt.pop %v3098
        %v3115 = vrsqrt.pop %v3099
        %v3116 = vrsqrt.pop %v3100
        %v3117 = vmul.f32 %v3005, %v3101
        %v3118 = vmul.f32 %v3006, %v3102
        %v3119 = vmul.f32 %v3007, %v3103
        %v3120 = vmul.f32 %v3008, %v3104
        %v3121 = vmul.f32 %v3009, %v3105
        %v3122 = vmul.f32 %v3010, %v3106
        %v3123 = vmul.f32 %v3011, %v3107
        %v3124 = vmul.f32 %v3012, %v3108
        %v3125 = vmul.f32 %v3013, %v3109
        %v3126 = vmul.f32 %v3014, %v3110
        %v3127 = vmul.f32 %v3015, %v3111
        %v3128 = vmul.f32 %v3016, %v3112
        %v3129 = vmul.f32 %v3017, %v3113
        %v3130 = vmul.f32 %v3018, %v3114
        %v3131 = vmul.f32 %v3019, %v3115
        %v3132 = vmul.f32 %v3020, %v3116
        %v3133 = vmul.f32 %v3117, %v1549
        %v3134 = vmul.f32 %v3118, %v1549
        %v3135 = vmul.f32 %v3119, %v1549
        %v3136 = vmul.f32 %v3120, %v1549
        %v3137 = vmul.f32 %v3121, %v1549
        %v3138 = vmul.f32 %v3122, %v1549
        %v3139 = vmul.f32 %v3123, %v1549
        %v3140 = vmul.f32 %v3124, %v1549
        %v3141 = vmul.f32 %v3125, %v1549
        %v3142 = vmul.f32 %v3126, %v1549
        %v3143 = vmul.f32 %v3127, %v1549
        %v3144 = vmul.f32 %v3128, %v1549
        %v3145 = vmul.f32 %v3129, %v1549
        %v3146 = vmul.f32 %v3130, %v1549
        %v3147 = vmul.f32 %v3131, %v1549
        %v3148 = vmul.f32 %v3132, %v1549
        %v3149 = vadd.f32 %v3133, %v1571
        %v3150 = vadd.f32 %v3134, %v1571
        %v3151 = vadd.f32 %v3135, %v1571
        %v3152 = vadd.f32 %v3136, %v1571
        %v3153 = vadd.f32 %v3137, %v1571
        %v3154 = vadd.f32 %v3138, %v1571
        %v3155 = vadd.f32 %v3139, %v1571
        %v3156 = vadd.f32 %v3140, %v1571
        %v3157 = vadd.f32 %v3141, %v1571
        %v3158 = vadd.f32 %v3142, %v1571
        %v3159 = vadd.f32 %v3143, %v1571
        %v3160 = vadd.f32 %v3144, %v1571
        %v3161 = vadd.f32 %v3145, %v1571
        %v3162 = vadd.f32 %v3146, %v1571
        %v3163 = vadd.f32 %v3147, %v1571
        %v3164 = vadd.f32 %v3148, %v1571
        %v3165 = vpack.c.bf16 %v3150, %v3149
        %v3166 = vpack.c.bf16 %v3152, %v3151
        %v3167 = vpack.c.bf16 %v3154, %v3153
        %v3168 = vpack.c.bf16 %v3156, %v3155
        %v3169 = vpack.c.bf16 %v3158, %v3157
        %v3170 = vpack.c.bf16 %v3160, %v3159
        %v3171 = vpack.c.bf16 %v3162, %v3161
        %v3172 = vpack.c.bf16 %v3164, %v3163
        %3181 = vrot.lane.b32.xlu0 %v3165, 4
        %v3182 = vpop.permute.xlu0 %3181
        %3183 = vrot.lane.b32.xlu0 %v3166, 4
        %v3184 = vpop.permute.xlu0 %3183
        %3185 = vrot.lane.b32.xlu0 %v3167, 4
        %v3186 = vpop.permute.xlu0 %3185
        %3187 = vrot.lane.b32.xlu0 %v3168, 4
        %v3188 = vpop.permute.xlu0 %3187
        %3189 = vrot.lane.b32.xlu0 %v3169, 4
        %v3190 = vpop.permute.xlu0 %3189
        %3191 = vrot.lane.b32.xlu0 %v3170, 4
        %v3192 = vpop.permute.xlu0 %3191
        %3193 = vrot.lane.b32.xlu0 %v3171, 4
        %v3194 = vpop.permute.xlu0 %3193
        %3195 = vrot.lane.b32.xlu0 %v3172, 4
        %v3196 = vpop.permute.xlu0 %3195
        %v3198 = vsel %vm1621, 0, %v3182
        %v3201 = vsel %vm1621, 0, %v3184
        %v3204 = vsel %vm1621, 0, %v3186
        %v3207 = vsel %vm1621, 0, %v3188
        %v3210 = vsel %vm1621, 0, %v3190
        %v3213 = vsel %vm1621, 0, %v3192
        %v3216 = vsel %vm1621, 0, %v3194
        %v3219 = vsel %vm1621, 0, %v3196
        %v3221 = vsel %vm1621, %v3182, 0
        %v3222 = vsel %vm1621, %v3184, 0
        %v3223 = vsel %vm1621, %v3186, 0
        %v3224 = vsel %vm1621, %v3188, 0
        %v3225 = vsel %vm1621, %v3190, 0
        %v3226 = vsel %vm1621, %v3192, 0
        %v3227 = vsel %vm1621, %v3194, 0
        %v3228 = vsel %vm1621, %v3196, 0
        %3245 = vrot.lane.b32.xlu0 %v3198, 124
        %v3246 = vpop.permute.xlu0 %3245
        %3247 = vrot.lane.b32.xlu0 %v3221, 124
        %v3248 = vpop.permute.xlu0 %3247
        %3249 = vrot.lane.b32.xlu0 %v3201, 124
        %v3250 = vpop.permute.xlu0 %3249
        %3251 = vrot.lane.b32.xlu0 %v3222, 124
        %v3252 = vpop.permute.xlu0 %3251
        %3253 = vrot.lane.b32.xlu0 %v3204, 124
        %v3254 = vpop.permute.xlu0 %3253
        %3255 = vrot.lane.b32.xlu0 %v3223, 124
        %v3256 = vpop.permute.xlu0 %3255
        %3257 = vrot.lane.b32.xlu0 %v3207, 124
        %v3258 = vpop.permute.xlu0 %3257
        %3259 = vrot.lane.b32.xlu0 %v3224, 124
        %v3260 = vpop.permute.xlu0 %3259
        %3261 = vrot.lane.b32.xlu0 %v3210, 124
        %v3262 = vpop.permute.xlu0 %3261
        %3263 = vrot.lane.b32.xlu0 %v3225, 124
        %v3264 = vpop.permute.xlu0 %3263
        %3265 = vrot.lane.b32.xlu0 %v3213, 124
        %v3266 = vpop.permute.xlu0 %3265
        %3267 = vrot.lane.b32.xlu0 %v3226, 124
        %v3268 = vpop.permute.xlu0 %3267
        %3269 = vrot.lane.b32.xlu0 %v3216, 124
        %v3270 = vpop.permute.xlu0 %3269
        %3271 = vrot.lane.b32.xlu0 %v3227, 124
        %v3272 = vpop.permute.xlu0 %3271
        %3273 = vrot.lane.b32.xlu0 %v3219, 124
        %v3274 = vpop.permute.xlu0 %3273
        %3275 = vrot.lane.b32.xlu0 %v3228, 124
        %v3276 = vpop.permute.xlu0 %3275
        %v3277 = vsel %vm1702, %v3246, %v3248
        %v3278 = vsel %vm1702, %v3250, %v3252
        %v3279 = vsel %vm1702, %v3254, %v3256
        %v3280 = vsel %vm1702, %v3258, %v3260
        %v3281 = vsel %vm1702, %v3262, %v3264
        %v3282 = vsel %vm1702, %v3266, %v3268
        %v3283 = vsel %vm1702, %v3270, %v3272
        %v3284 = vsel %vm1702, %v3274, %v3276
        %3293 = vrot.lane.b32.xlu0 %v3198, 120
        %v3294 = vpop.permute.xlu0 %3293
        %3295 = vrot.lane.b32.xlu0 %v3221, 120
        %v3296 = vpop.permute.xlu0 %3295
        %3297 = vrot.lane.b32.xlu0 %v3201, 120
        %v3298 = vpop.permute.xlu0 %3297
        %3299 = vrot.lane.b32.xlu0 %v3222, 120
        %v3300 = vpop.permute.xlu0 %3299
        %3301 = vrot.lane.b32.xlu0 %v3204, 120
        %v3302 = vpop.permute.xlu0 %3301
        %3303 = vrot.lane.b32.xlu0 %v3223, 120
        %v3304 = vpop.permute.xlu0 %3303
        %3305 = vrot.lane.b32.xlu0 %v3207, 120
        %v3306 = vpop.permute.xlu0 %3305
        %3307 = vrot.lane.b32.xlu0 %v3224, 120
        %v3308 = vpop.permute.xlu0 %3307
        %3309 = vrot.lane.b32.xlu0 %v3210, 120
        %v3310 = vpop.permute.xlu0 %3309
        %3311 = vrot.lane.b32.xlu0 %v3225, 120
        %v3312 = vpop.permute.xlu0 %3311
        %3313 = vrot.lane.b32.xlu0 %v3213, 120
        %v3314 = vpop.permute.xlu0 %3313
        %3315 = vrot.lane.b32.xlu0 %v3226, 120
        %v3316 = vpop.permute.xlu0 %3315
        %3317 = vrot.lane.b32.xlu0 %v3216, 120
        %v3318 = vpop.permute.xlu0 %3317
        %3319 = vrot.lane.b32.xlu0 %v3227, 120
        %v3320 = vpop.permute.xlu0 %3319
        %3321 = vrot.lane.b32.xlu0 %v3219, 120
        %v3322 = vpop.permute.xlu0 %3321
        %3323 = vrot.lane.b32.xlu0 %v3228, 120
        %v3324 = vpop.permute.xlu0 %3323
        %v3325 = vsel %vm1751, %v3294, %v3296
        %v3326 = vsel %vm1751, %v3298, %v3300
        %v3327 = vsel %vm1751, %v3302, %v3304
        %v3328 = vsel %vm1751, %v3306, %v3308
        %v3329 = vsel %vm1751, %v3310, %v3312
        %v3330 = vsel %vm1751, %v3314, %v3316
        %v3331 = vsel %vm1751, %v3318, %v3320
        %v3332 = vsel %vm1751, %v3322, %v3324
        %3341 = vmatprep.subr.bf16.mxu0 0
        %3342 = vmatpush1.bf16.msra.mxu0 %v3198
        %3343 = vmatprep.subr.bf16.mxu0 0
        %3344 = vmatpush1.bf16.msra.mxu0 %v3201
        %3345 = vmatprep.subr.bf16.mxu0 0
        %3346 = vmatpush1.bf16.msra.mxu0 %v3204
        %3347 = vmatprep.subr.bf16.mxu0 0
        %3348 = vmatpush1.bf16.msra.mxu0 %v3207
        %3349 = vmatprep.subr.bf16.mxu0 0
        %3350 = vmatpush1.bf16.msra.mxu0 %v3210
        %3351 = vmatprep.subr.bf16.mxu0 0
        %3352 = vmatpush1.bf16.msra.mxu0 %v3213
        %3353 = vmatprep.subr.bf16.mxu0 0
        %3354 = vmatpush1.bf16.msra.mxu0 %v3216
        %3355 = vmatprep.subr.bf16.mxu0 0
        %3356 = vmatpush1.bf16.msra.mxu0 %v3219
        %3357 = vmatprep.subr.bf16.mxu0 0
        %3358 = vmatpush1.bf16.msra.mxu0 %v3277
        %3359 = vmatprep.subr.bf16.mxu0 0
        %3360 = vmatpush1.bf16.msra.mxu0 %v3278
        %3361 = vmatprep.subr.bf16.mxu0 0
        %3362 = vmatpush1.bf16.msra.mxu0 %v3279
        %3363 = vmatprep.subr.bf16.mxu0 0
        %3364 = vmatpush1.bf16.msra.mxu0 %v3280
        %3365 = vmatprep.subr.bf16.mxu0 0
        %3366 = vmatpush1.bf16.msra.mxu0 %v3281
        %3367 = vmatprep.subr.bf16.mxu0 0
        %3368 = vmatpush1.bf16.msra.mxu0 %v3282
        %3369 = vmatprep.subr.bf16.mxu0 0
        %3370 = vmatpush1.bf16.msra.mxu0 %v3283
        %3371 = vmatprep.subr.bf16.mxu0 0
        %3372 = vmatpush1.bf16.msra.mxu0 %v3284
        %3373 = vmatprep.mubr.bf16.mxu0 %v1929
        %3374 = vmatmul.mubr.bf16.gmra.mrb[0].mxu0 %v1928
        %v3375 = vpop.f32.mrb[0].mxu0
        %v3376 = vadd.f32 %v1771, %v3375
        %v3377 = vpop.f32.mrb[0].mxu0
        %v3378 = vpop.f32.mrb[0].mxu0
        %v3379 = vadd.f32 %v1776, %v3378
        %v3380 = vpop.f32.mrb[0].mxu0
        %3381 = vmatprep.mubr.bf16.mxu0 %v1932
        %3382 = vmatmul.mubr.bf16.gmra.mrb[0].mxu0 %v1931
        %v3383 = vpop.f32.mrb[0].mxu0
        %v3384 = vadd.f32 %v1781, %v3383
        %v3385 = vpop.f32.mrb[0].mxu0
        %v3386 = vpop.f32.mrb[0].mxu0
        %v3387 = vadd.f32 %v1786, %v3386
        %v3388 = vpop.f32.mrb[0].mxu0
        %3389 = vmatprep.mubr.bf16.mxu0 %v1935
        %3390 = vmatmul.mubr.bf16.gmra.mrb[0].mxu0 %v1934
        %v3391 = vpop.f32.mrb[0].mxu0
        %v3392 = vadd.f32 %v1791, %v3391
        %v3393 = vpop.f32.mrb[0].mxu0
        %v3394 = vpop.f32.mrb[0].mxu0
        %v3395 = vadd.f32 %v1796, %v3394
        %v3396 = vpop.f32.mrb[0].mxu0
        %3397 = vmatprep.mubr.bf16.mxu0 %v1938
        %3398 = vmatmul.mubr.bf16.gmra.mrb[0].mxu0 %v1937
        %v3399 = vpop.f32.mrb[0].mxu0
        %v3400 = vadd.f32 %v1801, %v3399
        %v3401 = vpop.f32.mrb[0].mxu0
        %v3402 = vpop.f32.mrb[0].mxu0
        %v3403 = vadd.f32 %v1806, %v3402
        %v3404 = vpop.f32.mrb[0].mxu0
        %3405 = vmatprep.mubr.bf16.mxu0 %v1941
        %3406 = vmatmul.mubr.bf16.gmra.mrb[0].mxu0 %v1940
        %v3407 = vpop.f32.mrb[0].mxu0
        %v3408 = vadd.f32 %v1811, %v3407
        %v3409 = vpop.f32.mrb[0].mxu0
        %v3410 = vpop.f32.mrb[0].mxu0
        %v3411 = vadd.f32 %v1816, %v3410
        %v3412 = vpop.f32.mrb[0].mxu0
        %3413 = vmatprep.mubr.bf16.mxu0 %v1944
        %3414 = vmatmul.mubr.bf16.gmra.mrb[0].mxu0 %v1943
        %v3415 = vpop.f32.mrb[0].mxu0
        %v3416 = vadd.f32 %v1821, %v3415
        %v3417 = vpop.f32.mrb[0].mxu0
        %v3418 = vpop.f32.mrb[0].mxu0
        %v3419 = vadd.f32 %v1826, %v3418
        %v3420 = vpop.f32.mrb[0].mxu0
        %3421 = vmatprep.mubr.bf16.mxu0 %v1947
        %3422 = vmatmul.mubr.bf16.gmra.mrb[0].mxu0 %v1946
        %v3423 = vpop.f32.mrb[0].mxu0
        %v3424 = vadd.f32 %v1831, %v3423
        %v3425 = vpop.f32.mrb[0].mxu0
        %v3426 = vpop.f32.mrb[0].mxu0
        %v3427 = vadd.f32 %v1836, %v3426
        %v3428 = vpop.f32.mrb[0].mxu0
        %3429 = vmatprep.mubr.bf16.mxu0 %v1950
        %3430 = vmatmul.mubr.bf16.gmra.mrb[0].mxu0 %v1949
        %v3431 = vpop.f32.mrb[0].mxu0
        %v3432 = vadd.f32 %v1841, %v3431
        %v3433 = vpop.f32.mrb[0].mxu0
        %v3434 = vpop.f32.mrb[0].mxu0
        %v3435 = vadd.f32 %v1846, %v3434
        %v3436 = vpop.f32.mrb[0].mxu0
        %3437 = vdwg.mxu0
        %3438 = vmatprep.subr.bf16.mxu0 0
        %3439 = vmatpush1.bf16.msra.mxu0 %v3325
        %3440 = vmatprep.subr.bf16.mxu0 0
        %3441 = vmatpush1.bf16.msra.mxu0 %v3326
        %3442 = vmatprep.subr.bf16.mxu0 0
        %3443 = vmatpush1.bf16.msra.mxu0 %v3327
        %3444 = vmatprep.subr.bf16.mxu0 0
        %3445 = vmatpush1.bf16.msra.mxu0 %v3328
        %3446 = vmatprep.subr.bf16.mxu0 0
        %3447 = vmatpush1.bf16.msra.mxu0 %v3329
        %3448 = vmatprep.subr.bf16.mxu0 0
        %3449 = vmatpush1.bf16.msra.mxu0 %v3330
        %3450 = vmatprep.subr.bf16.mxu0 0
        %3451 = vmatpush1.bf16.msra.mxu0 %v3331
        %3452 = vmatprep.subr.bf16.mxu0 0
        %3453 = vmatpush1.bf16.msra.mxu0 %v3332
        %3454 = vmatprep.subr.bf16.mxu0 0
        %3455 = vmatpush1.bf16.msra.mxu0 0
        %3456 = vmatprep.subr.bf16.mxu0 0
        %3457 = vmatpush1.bf16.msra.mxu0 0
        %3458 = vmatprep.subr.bf16.mxu0 0
        %3459 = vmatpush1.bf16.msra.mxu0 0
        %3460 = vmatprep.subr.bf16.mxu0 0
        %3461 = vmatpush1.bf16.msra.mxu0 0
        %3462 = vmatprep.subr.bf16.mxu0 0
        %3463 = vmatpush1.bf16.msra.mxu0 0
        %3464 = vmatprep.subr.bf16.mxu0 0
        %3465 = vmatpush1.bf16.msra.mxu0 0
        %3466 = vmatprep.subr.bf16.mxu0 0
        %3467 = vmatpush1.bf16.msra.mxu0 0
        %3468 = vmatprep.subr.bf16.mxu0 0
        %3469 = vmatpush1.bf16.msra.mxu0 0
        %3470 = vmatprep.mubr.bf16.mxu0 0
        %3471 = vmatmul.mubr.bf16.gmra.mrb[0].mxu0 %v1930
        %v3472 = vpop.f32.mrb[0].mxu0
        %v3473 = vadd.f32 %v3376, %v3472
        %v3474 = vpop.f32.mrb[0].mxu0
        %v3475 = vpop.f32.mrb[0].mxu0
        %v3476 = vadd.f32 %v3379, %v3475
        %v3477 = vpop.f32.mrb[0].mxu0
        %3478 = vmatprep.mubr.bf16.mxu0 0
        %3479 = vmatmul.mubr.bf16.gmra.mrb[0].mxu0 %v1933
        %v3480 = vpop.f32.mrb[0].mxu0
        %v3481 = vadd.f32 %v3384, %v3480
        %v3482 = vpop.f32.mrb[0].mxu0
        %v3483 = vpop.f32.mrb[0].mxu0
        %v3484 = vadd.f32 %v3387, %v3483
        %v3485 = vpop.f32.mrb[0].mxu0
        %3486 = vmatprep.mubr.bf16.mxu0 0
        %3487 = vmatmul.mubr.bf16.gmra.mrb[0].mxu0 %v1936
        %v3488 = vpop.f32.mrb[0].mxu0
        %v3489 = vadd.f32 %v3392, %v3488
        %v3490 = vpop.f32.mrb[0].mxu0
        %v3491 = vpop.f32.mrb[0].mxu0
        %v3492 = vadd.f32 %v3395, %v3491
        %v3493 = vpop.f32.mrb[0].mxu0
        %3494 = vmatprep.mubr.bf16.mxu0 0
        %3495 = vmatmul.mubr.bf16.gmra.mrb[0].mxu0 %v1939
        %v3496 = vpop.f32.mrb[0].mxu0
        %v3497 = vadd.f32 %v3400, %v3496
        %v3498 = vpop.f32.mrb[0].mxu0
        %v3499 = vpop.f32.mrb[0].mxu0
        %v3500 = vadd.f32 %v3403, %v3499
        %v3501 = vpop.f32.mrb[0].mxu0
        %3502 = vmatprep.mubr.bf16.mxu0 0
        %3503 = vmatmul.mubr.bf16.gmra.mrb[0].mxu0 %v1942
        %v3504 = vpop.f32.mrb[0].mxu0
        %v3505 = vadd.f32 %v3408, %v3504
        %v3506 = vpop.f32.mrb[0].mxu0
        %v3507 = vpop.f32.mrb[0].mxu0
        %v3508 = vadd.f32 %v3411, %v3507
        %v3509 = vpop.f32.mrb[0].mxu0
        %3510 = vmatprep.mubr.bf16.mxu0 0
        %3511 = vmatmul.mubr.bf16.gmra.mrb[0].mxu0 %v1945
        %v3512 = vpop.f32.mrb[0].mxu0
        %v3513 = vadd.f32 %v3416, %v3512
        %v3514 = vpop.f32.mrb[0].mxu0
        %v3515 = vpop.f32.mrb[0].mxu0
        %v3516 = vadd.f32 %v3419, %v3515
        %v3517 = vpop.f32.mrb[0].mxu0
        %3518 = vmatprep.mubr.bf16.mxu0 0
        %3519 = vmatmul.mubr.bf16.gmra.mrb[0].mxu0 %v1948
        %v3520 = vpop.f32.mrb[0].mxu0
        %v3521 = vadd.f32 %v3424, %v3520
        %v3522 = vpop.f32.mrb[0].mxu0
        %v3523 = vpop.f32.mrb[0].mxu0
        %v3524 = vadd.f32 %v3427, %v3523
        %v3525 = vpop.f32.mrb[0].mxu0
        %3526 = vmatprep.mubr.bf16.mxu0 0
        %3527 = vmatmul.mubr.bf16.gmra.mrb[0].mxu0 %v1951
        %v3528 = vpop.f32.mrb[0].mxu0
        %v3529 = vadd.f32 %v3432, %v3528
        %v3530 = vpop.f32.mrb[0].mxu0
        %v3531 = vpop.f32.mrb[0].mxu0
        %v3532 = vadd.f32 %v3435, %v3531
        %v3533 = vpop.f32.mrb[0].mxu0
        %3534 = vdwg.mxu0
        %v3535 = vmul.f32 %v3473, 0.5
        %v3536 = vmul.f32 %v3476, 0.5
        %v3537 = vmul.f32 %v3481, 0.5
        %v3538 = vmul.f32 %v3484, 0.5
        %v3539 = vmul.f32 %v3489, 0.5
        %v3540 = vmul.f32 %v3492, 0.5
        %v3541 = vmul.f32 %v3497, 0.5
        %v3542 = vmul.f32 %v3500, 0.5
        %v3543 = vmul.f32 %v3505, 0.5
        %v3544 = vmul.f32 %v3508, 0.5
        %v3545 = vmul.f32 %v3513, 0.5
        %v3546 = vmul.f32 %v3516, 0.5
        %v3547 = vmul.f32 %v3521, 0.5
        %v3548 = vmul.f32 %v3524, 0.5
        %v3549 = vmul.f32 %v3529, 0.5
        %v3550 = vmul.f32 %v3532, 0.5
        %v3551 = vmul.f32 %v3473, 0.70710677
        %v3552 = vmul.f32 %v3476, 0.70710677
        %v3553 = vmul.f32 %v3481, 0.70710677
        %v3554 = vmul.f32 %v3484, 0.70710677
        %v3555 = vmul.f32 %v3489, 0.70710677
        %v3556 = vmul.f32 %v3492, 0.70710677
        %v3557 = vmul.f32 %v3497, 0.70710677
        %v3558 = vmul.f32 %v3500, 0.70710677
        %v3559 = vmul.f32 %v3505, 0.70710677
        %v3560 = vmul.f32 %v3508, 0.70710677
        %v3561 = vmul.f32 %v3513, 0.70710677
        %v3562 = vmul.f32 %v3516, 0.70710677
        %v3563 = vmul.f32 %v3521, 0.70710677
        %v3564 = vmul.f32 %v3524, 0.70710677
        %v3565 = vmul.f32 %v3529, 0.70710677
        %v3566 = vmul.f32 %v3532, 0.70710677
        %v3567 = verf.f32.pop %v3551
        %v3568 = verf.f32.pop %v3552
        %v3569 = verf.f32.pop %v3553
        %v3570 = verf.f32.pop %v3554
        %v3571 = verf.f32.pop %v3555
        %v3572 = verf.f32.pop %v3556
        %v3573 = verf.f32.pop %v3557
        %v3574 = verf.f32.pop %v3558
        %v3575 = verf.f32.pop %v3559
        %v3576 = verf.f32.pop %v3560
        %v3577 = verf.f32.pop %v3561
        %v3578 = verf.f32.pop %v3562
        %v3579 = verf.f32.pop %v3563
        %v3580 = verf.f32.pop %v3564
        %v3581 = verf.f32.pop %v3565
        %v3582 = verf.f32.pop %v3566
        %v3583 = vadd.f32 %v3567, 1.0
        %v3584 = vadd.f32 %v3568, 1.0
        %v3585 = vadd.f32 %v3569, 1.0
        %v3586 = vadd.f32 %v3570, 1.0
        %v3587 = vadd.f32 %v3571, 1.0
        %v3588 = vadd.f32 %v3572, 1.0
        %v3589 = vadd.f32 %v3573, 1.0
        %v3590 = vadd.f32 %v3574, 1.0
        %v3591 = vadd.f32 %v3575, 1.0
        %v3592 = vadd.f32 %v3576, 1.0
        %v3593 = vadd.f32 %v3577, 1.0
        %v3594 = vadd.f32 %v3578, 1.0
        %v3595 = vadd.f32 %v3579, 1.0
        %v3596 = vadd.f32 %v3580, 1.0
        %v3597 = vadd.f32 %v3581, 1.0
        %v3598 = vadd.f32 %v3582, 1.0
        %v3599 = vmul.f32 %v3535, %v3583
        %v3600 = vmul.f32 %v3536, %v3584
        %v3601 = vmul.f32 %v3537, %v3585
        %v3602 = vmul.f32 %v3538, %v3586
        %v3603 = vmul.f32 %v3539, %v3587
        %v3604 = vmul.f32 %v3540, %v3588
        %v3605 = vmul.f32 %v3541, %v3589
        %v3606 = vmul.f32 %v3542, %v3590
        %v3607 = vmul.f32 %v3543, %v3591
        %v3608 = vmul.f32 %v3544, %v3592
        %v3609 = vmul.f32 %v3545, %v3593
        %v3610 = vmul.f32 %v3546, %v3594
        %v3611 = vmul.f32 %v3547, %v3595
        %v3612 = vmul.f32 %v3548, %v3596
        %v3613 = vmul.f32 %v3549, %v3597
        %v3614 = vmul.f32 %v3550, %v3598
        %v3615 = vadd.f32 %v2283, %v3599
        %v3616 = vadd.f32 %v2284, %v3600
        %v3617 = vadd.f32 %v2285, %v3601
        %v3618 = vadd.f32 %v2286, %v3602
        %v3619 = vadd.f32 %v2287, %v3603
        %v3620 = vadd.f32 %v2288, %v3604
        %v3621 = vadd.f32 %v2289, %v3605
        %v3622 = vadd.f32 %v2290, %v3606
        %v3623 = vadd.f32 %v2291, %v3607
        %v3624 = vadd.f32 %v2292, %v3608
        %v3625 = vadd.f32 %v2293, %v3609
        %v3626 = vadd.f32 %v2294, %v3610
        %v3627 = vadd.f32 %v2295, %v3611
        %v3628 = vadd.f32 %v2296, %v3612
        %v3629 = vadd.f32 %v2297, %v3613
        %v3630 = vadd.f32 %v2298, %v3614
        %s3631 = scalar_lea.vmem %s366, 128 [#allocation7]
        %3632 = vst [vmem:[%s3631] sm:$0xff] %v3615
        %3633 = vst [vmem:[%s3631 + $0x8] sm:$0xff] %v3616
        %3634 = vst [vmem:[%s3631 + $0x10] sm:$0xff] %v3617
        %3635 = vst [vmem:[%s3631 + $0x18] sm:$0xff] %v3618
        %3636 = vst [vmem:[%s3631 + $0x20] sm:$0xff] %v3619
        %3637 = vst [vmem:[%s3631 + $0x28] sm:$0xff] %v3620
        %3638 = vst [vmem:[%s3631 + $0x30] sm:$0xff] %v3621
        %3639 = vst [vmem:[%s3631 + $0x38] sm:$0xff] %v3622
        %3640 = vst [vmem:[%s3631 + $0x40] sm:$0xff] %v3623
        %3641 = vst [vmem:[%s3631 + $0x48] sm:$0xff] %v3624
        %3642 = vst [vmem:[%s3631 + $0x50] sm:$0xff] %v3625
        %3643 = vst [vmem:[%s3631 + $0x58] sm:$0xff] %v3626
        %3644 = vst [vmem:[%s3631 + $0x60] sm:$0xff] %v3627
        %3645 = vst [vmem:[%s3631 + $0x68] sm:$0xff] %v3628
        %3646 = vst [vmem:[%s3631 + $0x70] sm:$0xff] %v3629
        %3647 = vst [vmem:[%s3631 + $0x78] sm:$0xff] %v3630
        %s3648 = sand.u32 %s229, 1
        %s3649 = scalar_lea.sflag [#allocation4], %s3648
        %s3650 = sand.u32 %s229, 1
        %s3651 = smul.addr %s3650, 256
        %s3652 = scalar_lea.vmem [#allocation7], %s3651
        // Predicated region
        $region65: #{tpu_custom_call.1} parent=55 // pred_check
          %p3653 = pneg %p239
        $region66: #{tpu_custom_call.1} parent=55 // pred_check_branch
          %3655 = sbr.rel (%p3653) target = $region68
        $region67: #{tpu_custom_call.1} parent=55 // pred_region
          %s3656 = smul.u32 2, %s27
          %s3658 = ssub.s32 4096, 4096
          %3659 = vsyncadd %s3649, %s3658
          %s3660 = smul.addr %s3656, 16
          %s3661 = smul.addr %s3660, 128
          %s3662 = scalar_lea.hbm %s9, %s3661
          %s3663 = sshll.u32 %s3652, 4
          %s3664 = int_to_ptr.vmem [resolvable:$true] %s3663
          %3669 = dma.vmem_to_hbm [thread:$0]  %s3664, 4096, %s3662, %s3649, 128, 128, 8
        $region68: #{tpu_custom_call.1} parent=55 // pred_fallthru
          _
      $region56: #{tpu_custom_call.1} parent=5 // pred_fallthru
        _
      %p3670 = scmp.le.s32.totalorder 2, %s22
      // Predicated region
      $region69: #{tpu_custom_call.1} parent=5 // pred_check
        %p3671 = pneg %p3670
      $region70: #{tpu_custom_call.1} parent=5 // pred_check_branch
        %3673 = sbr.rel (%p3671) target = $region72
      $region71: #{tpu_custom_call.1} parent=5 // pred_region
        %s3674 = ssub.s32 %s22, 2
        // Predicated region
        $region73: #{tpu_custom_call.1} parent=71 // pred_check
          %p3675 = pneg %p245
        $region74: #{tpu_custom_call.1} parent=71 // pred_check_branch
          %3677 = sbr.rel (%p3675) target = $region76
        $region75: #{tpu_custom_call.1} parent=71 // pred_region
          %s3678 = sand.u32 %s230, 1
          %s3679 = scalar_lea.sflag [#allocation4], %s3678
          %s3680 = sand.u32 %s230, 1
          %s3681 = smul.addr %s3680, 256
          %s3682 = scalar_lea.vmem [#allocation7], %s3681
          %3683 = dma.done %s3679, 4096
        $region76: #{tpu_custom_call.1} parent=71 // pred_fallthru
          _
      $region72: #{tpu_custom_call.1} parent=5 // pred_fallthru
        _
    $region6: #{tpu_custom_call.1} parent=1 // loop_footer
      %s26 = sadd.s32 1, %s22
    $region7: #{tpu_custom_call.1} parent=1 // loop_footer_branch
      %21 = sbr.rel target = $region3
    $region8: #{tpu_custom_call.1} parent=1 // loop_exit
      _
    %3684 = vsyncpa [#allocation3], 1
    %s3685 = scalar_lea.sflag [#allocation3], 1
    %3686 = vsyncpa %s3685, 1
    %3687 = vsyncpa [#allocation6], 1
    %3688 = vsyncpa [#allocation4], 1
    %s3689 = scalar_lea.sflag [#allocation4], 1
    %3690 = vsyncpa %s3689, 1

</llo_original>
